<compile_context>
chip_gen: v7x
topology: tpu7x:2x2x1
jax: 0.10.0
libtpu: 0.0.40
codegen_flags: <defaults>
</compile_context>

<pallas_src>
import jax
import jax.numpy as jnp
from jax import lax
from jax.experimental import pallas as pl
from jax.experimental.pallas import tpu as pltpu

EPS = 1e-5


def fused_kernel(x_ref, r_ref, w1_ref, bn_ref, w2_hbm, o_ref, w2_vmem, w2_sem):
    # x_ref, r_ref, o_ref : (C, M) f32  (channels-major activations, M = N*H*W)
    # w1_ref              : (Cout, Cin) bf16 in VMEM (auto-DMA'd, needed first)
    # bn_ref              : (C, 4) f32  -> columns [g1, b1, g2, b2]
    # w2_hbm              : (Cout, Cin) bf16 raw HBM ref (memory_space=pl.ANY)
    # w2_vmem, w2_sem     : VMEM scratch + DMA semaphore for w2
    #
    # Kick off w2's HBM->VMEM DMA immediately so the ~320 KB transfer overlaps
    # conv1 + BN1 + ReLU instead of serializing ahead of the body.
    w2_copy = pltpu.make_async_copy(w2_hbm, w2_vmem, w2_sem)
    w2_copy.start()

    m = x_ref.shape[1]
    inv_m = 1.0 / m                                    # static python constant

    x = x_ref[...]                                     # (Cin, M) f32
    r = r_ref[...]                                     # (C,   M) f32
    bn = bn_ref[...]                                   # (C, 4)  f32
    g1 = bn[:, 0:1]
    b1 = bn[:, 1:2]
    g2 = bn[:, 2:3]
    b2 = bn[:, 3:4]

    # ---- conv2d67 (1x1, no bias): bf16 MXU matmul, f32 accumulation --------
    y = jnp.dot(w1_ref[...], x.astype(jnp.bfloat16),
                preferred_element_type=jnp.float32)    # (C, M) f32

    # ---- batchnorm2d67 (training-mode batch stats), two-pass variance ------
    mean1 = jnp.sum(y, axis=1, keepdims=True) * inv_m  # (C, 1)
    d1 = y - mean1                                     # (C, M)
    var1 = jnp.sum(d1 * d1, axis=1, keepdims=True) * inv_m
    s1 = g1 * lax.rsqrt(var1 + EPS)                    # (C, 1)

    # ---- residual add (x211) + ReLU -----------------------------------------
    z = jnp.maximum(d1 * s1 + b1 + r, 0.0)             # (C, M) f32

    # ---- conv2d68 (1x1, no bias) --------------------------------------------
    w2_copy.wait()                                     # w2 now resident in VMEM
    y2 = jnp.dot(w2_vmem[...], z.astype(jnp.bfloat16),
                 preferred_element_type=jnp.float32)   # (C, M) f32

    # ---- batchnorm2d68 -------------------------------------------------------
    mean2 = jnp.sum(y2, axis=1, keepdims=True) * inv_m
    d2 = y2 - mean2
    var2 = jnp.sum(d2 * d2, axis=1, keepdims=True) * inv_m
    s2 = g2 * lax.rsqrt(var2 + EPS)

    o_ref[...] = (d2 * s2 + b2).astype(o_ref.dtype)


def prepare_params(w1, g1, b1, w2, g2, b2):
    """One-time (outside-jit) parameter prep:
       PyTorch (Cout, Cin, 1, 1) f32 conv weights -> (Cout, Cin) bf16,
       four (C,) BN affine params -> one packed (C, 4) f32 array."""
    c = w1.shape[0]
    w1_bf = jnp.asarray(w1).reshape(c, c).astype(jnp.bfloat16)
    w2_bf = jnp.asarray(w2).reshape(c, c).astype(jnp.bfloat16)
    bn_params = jnp.stack([g1, b1, g2, b2], axis=1).astype(jnp.float32)  # (C,4)
    return w1_bf, w2_bf, bn_params


@jax.jit
def model_forward(x217, x211, w1_bf, w2_bf, bn_params):
    """x217, x211: NCHW f32.  w1_bf, w2_bf: (C, C) bf16 (pre-cast once via
    prepare_params).  bn_params: (C, 4) f32 = [g1, b1, g2, b2] columns.
    Returns NCHW f32.  BatchNorm uses training-mode batch statistics
    (biased variance), matching the PyTorch module called in train mode."""
    N, C, H, W = x217.shape
    M = N * H * W

    # Channels-major (C, M) views.  For N == 1 this is a pure reshape
    # (no data movement), which is the shape this module is built for.
    if N == 1:
        x_cm = x217.reshape(C, M)
        r_cm = x211.reshape(C, M)
    else:
        # TODO(synk): for N>1, fold N into a kernel grid axis (accumulating BN
        # partial sums in scratch) instead of paying two XLA transposes here.
        x_cm = jnp.transpose(x217, (1, 0, 2, 3)).reshape(C, M)
        r_cm = jnp.transpose(x211, (1, 0, 2, 3)).reshape(C, M)

    vmem = pl.BlockSpec(memory_space=pltpu.MemorySpace.VMEM)

    out_cm = pl.pallas_call(
        fused_kernel,
        out_shape=jax.ShapeDtypeStruct((C, M), jnp.float32),
        in_specs=[vmem,                                  # x  (C, M)
                  vmem,                                  # r  (C, M)
                  vmem,                                  # w1 (C, C) bf16
                  vmem,                                  # bn (C, 4)
                  pl.BlockSpec(memory_space=pl.ANY)],    # w2 stays in HBM
        out_specs=vmem,
        scratch_shapes=[pltpu.VMEM((C, C), jnp.bfloat16),  # w2 landing buffer
                        pltpu.SemaphoreType.DMA],           # its DMA semaphore
        cost_estimate=pl.CostEstimate(
            flops=2 * 2 * C * C * M,                      # two CxC @ CxM matmuls
            transcendentals=2 * C,                        # two per-channel rsqrt
            bytes_accessed=(3 * C * M * 4                 # x, r in + out
                            + 2 * C * C * 2               # w1, w2 bf16
                            + C * 4 * 4)),                # packed BN params
    )(x_cm, r_cm, w1_bf, bn_params, w2_bf)

    if N == 1:
        return out_cm.reshape(N, C, H, W)
    return jnp.transpose(out_cm.reshape(C, N, H, W), (1, 0, 2, 3))


def reference(x217, x211, w1, g1, b1, w2, g2, b2):
    """Pure-JAX f32 reference matching the PyTorch module (training-mode BN)."""
    w1m = w1.reshape(w1.shape[0], w1.shape[1])
    w2m = w2.reshape(w2.shape[0], w2.shape[1])

    def conv1x1(x, w):
        return jnp.einsum('nchw,oc->nohw', x, w,
                          precision=jax.lax.Precision.HIGHEST)

    def bn(x, gamma, beta):
        mean = jnp.mean(x, axis=(0, 2, 3), keepdims=True)
        var = jnp.mean((x - mean) ** 2, axis=(0, 2, 3), keepdims=True)
        inv = lax.rsqrt(var + EPS)
        return ((x - mean) * inv * gamma.reshape(1, -1, 1, 1)
                + beta.reshape(1, -1, 1, 1))

    y = bn(conv1x1(x217, w1m), g1, b1)
    z = jnp.maximum(x211 + y, 0.0)
    return bn(conv1x1(z, w2m), g2, b2)


if __name__ == "__main__":
    # Shapes fixed by the module: 1x400x7x7 activations, 400->400 1x1 convs.
    N, C, H, W = 1, 400, 7, 7

    key = jax.random.PRNGKey(0)
    k = jax.random.split(key, 8)

    x217 = jax.random.normal(k[0], (N, C, H, W), jnp.float32)
    x211 = jax.random.normal(k[1], (N, C, H, W), jnp.float32)

    # conv weights in PyTorch layout (Cout, Cin, 1, 1), no bias.
    w1 = jax.random.normal(k[2], (C, C, 1, 1), jnp.float32) * 0.05
    w2 = jax.random.normal(k[3], (C, C, 1, 1), jnp.float32) * 0.05

    # batchnorm affine params.
    g1 = 1.0 + 0.1 * jax.random.normal(k[4], (C,), jnp.float32)
    b1 = 0.1 * jax.random.normal(k[5], (C,), jnp.float32)
    g2 = 1.0 + 0.1 * jax.random.normal(k[6], (C,), jnp.float32)
    b2 = 0.1 * jax.random.normal(k[7], (C,), jnp.float32)

    # One-time parameter prep OUTSIDE the jitted step (bf16 cast, BN packing).
    w1_bf, w2_bf, bn_params = prepare_params(w1, g1, b1, w2, g2, b2)
    w1_bf, w2_bf, bn_params = jax.block_until_ready((w1_bf, w2_bf, bn_params))

    out = model_forward(x217, x211, w1_bf, w2_bf, bn_params)
    out = jax.block_until_ready(out)
    assert out.shape == (N, C, H, W), out.shape

    # Correctness vs a pure-JAX f32 reference (bf16 matmul operands in the
    # kernel -> loose tolerance; structural bugs would show O(1) errors).
    ref = reference(x217, x211, w1, g1, b1, w2, g2, b2)
    max_err = float(jnp.max(jnp.abs(out - ref)))
    assert max_err < 0.2, f"max abs err too large: {max_err}"

    print("KERNEL_OK")
</pallas_src>

<mosaic_0001>
module attributes {stable_mosaic.version = 11 : i64} {
  func.func @fused_kernel(%arg0: memref<400x49xf32, #tpu.memory_space<vmem>>, %arg1: memref<400x49xf32, #tpu.memory_space<vmem>>, %arg2: memref<400x400xbf16, #tpu.memory_space<vmem>>, %arg3: memref<400x4xf32, #tpu.memory_space<vmem>>, %arg4: memref<400x400xbf16, #tpu.memory_space<any>>, %arg5: memref<400x49xf32, #tpu.memory_space<vmem>>, %arg6: memref<400x400xbf16, #tpu.memory_space<vmem>>, %arg7: memref<!tpu.dma_semaphore, #tpu.memory_space<semaphore_mem>>) attributes {dimension_semantics = [], scalar_prefetch = 0 : i64, scratch_operands = 2 : i64, tpu.core_type = #tpu.core_type<tc>} {
    tpu.enqueue_dma source(%arg4 : memref<400x400xbf16, #tpu.memory_space<any>>) target(%arg6 : memref<400x400xbf16, #tpu.memory_space<vmem>>) target_semaphore(%arg7 : memref<!tpu.dma_semaphore, #tpu.memory_space<semaphore_mem>>)
    %c0 = arith.constant 0 : index
    %c0_0 = arith.constant 0 : index
    %0 = vector.load %arg0[%c0, %c0_0] : memref<400x49xf32, #tpu.memory_space<vmem>>, vector<400x49xf32>
    %c0_1 = arith.constant 0 : index
    %c0_2 = arith.constant 0 : index
    %1 = vector.load %arg1[%c0_1, %c0_2] : memref<400x49xf32, #tpu.memory_space<vmem>>, vector<400x49xf32>
    %c0_3 = arith.constant 0 : index
    %c0_4 = arith.constant 0 : index
    %2 = vector.load %arg3[%c0_3, %c0_4] : memref<400x4xf32, #tpu.memory_space<vmem>>, vector<400x4xf32>
    %3 = vector.extract_strided_slice %2 {offsets = [0, 0], sizes = [400, 1], strides = [1, 1]} : vector<400x4xf32> to vector<400x1xf32>
    %4 = vector.extract_strided_slice %2 {offsets = [0, 1], sizes = [400, 1], strides = [1, 1]} : vector<400x4xf32> to vector<400x1xf32>
    %5 = vector.extract_strided_slice %2 {offsets = [0, 2], sizes = [400, 1], strides = [1, 1]} : vector<400x4xf32> to vector<400x1xf32>
    %6 = vector.extract_strided_slice %2 {offsets = [0, 3], sizes = [400, 1], strides = [1, 1]} : vector<400x4xf32> to vector<400x1xf32>
    %c0_5 = arith.constant 0 : index
    %c0_6 = arith.constant 0 : index
    %7 = vector.load %arg2[%c0_5, %c0_6] : memref<400x400xbf16, #tpu.memory_space<vmem>>, vector<400x400xbf16>
    %8 = arith.truncf %0 : vector<400x49xf32> to vector<400x49xbf16>
    %cst = arith.constant dense<0.000000e+00> : vector<400x49xf32>
    %9 = tpu.matmul %7, %8, %cst {dimension_numbers = #tpu.dot_dimension_numbers<[1], [0], [0], [1], [0, 0, 1, 1], [], []>} : vector<400x400xbf16>, vector<400x49xbf16>, vector<400x49xf32> -> vector<400x49xf32>
    %cst_7 = arith.constant dense<0.000000e+00> : vector<400xf32>
    %10 = vector.multi_reduction <add>, %9, %cst_7 [1] : vector<400x49xf32> to vector<400xf32>
    %11 = vector.shape_cast %10 : vector<400xf32> to vector<400x1xf32>
    %cst_8 = arith.constant 0.0204081628 : f32
    %12 = vector.broadcast %cst_8 : f32 to vector<400x1xf32>
    %13 = arith.mulf %11, %12 : vector<400x1xf32>
    %14 = vector.broadcast %13 : vector<400x1xf32> to vector<400x49xf32>
    %15 = arith.subf %9, %14 : vector<400x49xf32>
    %16 = arith.mulf %15, %15 : vector<400x49xf32>
    %cst_9 = arith.constant dense<0.000000e+00> : vector<400xf32>
    %17 = vector.multi_reduction <add>, %16, %cst_9 [1] : vector<400x49xf32> to vector<400xf32>
    %18 = vector.shape_cast %17 : vector<400xf32> to vector<400x1xf32>
    %cst_10 = arith.constant 0.0204081628 : f32
    %19 = vector.broadcast %cst_10 : f32 to vector<400x1xf32>
    %20 = arith.mulf %18, %19 : vector<400x1xf32>
    %cst_11 = arith.constant 9.99999974E-6 : f32
    %21 = vector.broadcast %cst_11 : f32 to vector<400x1xf32>
    %22 = arith.addf %20, %21 : vector<400x1xf32>
    %23 = math.rsqrt %22 : vector<400x1xf32>
    %24 = arith.mulf %3, %23 : vector<400x1xf32>
    %25 = vector.broadcast %24 : vector<400x1xf32> to vector<400x49xf32>
    %26 = arith.mulf %15, %25 : vector<400x49xf32>
    %27 = vector.broadcast %4 : vector<400x1xf32> to vector<400x49xf32>
    %28 = arith.addf %26, %27 : vector<400x49xf32>
    %29 = arith.addf %28, %1 : vector<400x49xf32>
    %cst_12 = arith.constant 0.000000e+00 : f32
    %30 = vector.broadcast %cst_12 : f32 to vector<400x49xf32>
    %31 = arith.maximumf %29, %30 : vector<400x49xf32>
    tpu.wait_dma2 semaphore(%arg7 : memref<!tpu.dma_semaphore, #tpu.memory_space<semaphore_mem>>) src(%arg4 : memref<400x400xbf16, #tpu.memory_space<any>>) dst(%arg6 : memref<400x400xbf16, #tpu.memory_space<vmem>>)
    %c0_13 = arith.constant 0 : index
    %c0_14 = arith.constant 0 : index
    %32 = vector.load %arg6[%c0_13, %c0_14] : memref<400x400xbf16, #tpu.memory_space<vmem>>, vector<400x400xbf16>
    %33 = arith.truncf %31 : vector<400x49xf32> to vector<400x49xbf16>
    %cst_15 = arith.constant dense<0.000000e+00> : vector<400x49xf32>
    %34 = tpu.matmul %32, %33, %cst_15 {dimension_numbers = #tpu.dot_dimension_numbers<[1], [0], [0], [1], [0, 0, 1, 1], [], []>} : vector<400x400xbf16>, vector<400x49xbf16>, vector<400x49xf32> -> vector<400x49xf32>
    %cst_16 = arith.constant dense<0.000000e+00> : vector<400xf32>
    %35 = vector.multi_reduction <add>, %34, %cst_16 [1] : vector<400x49xf32> to vector<400xf32>
    %36 = vector.shape_cast %35 : vector<400xf32> to vector<400x1xf32>
    %cst_17 = arith.constant 0.0204081628 : f32
    %37 = vector.broadcast %cst_17 : f32 to vector<400x1xf32>
    %38 = arith.mulf %36, %37 : vector<400x1xf32>
    %39 = vector.broadcast %38 : vector<400x1xf32> to vector<400x49xf32>
    %40 = arith.subf %34, %39 : vector<400x49xf32>
    %41 = arith.mulf %40, %40 : vector<400x49xf32>
    %cst_18 = arith.constant dense<0.000000e+00> : vector<400xf32>
    %42 = vector.multi_reduction <add>, %41, %cst_18 [1] : vector<400x49xf32> to vector<400xf32>
    %43 = vector.shape_cast %42 : vector<400xf32> to vector<400x1xf32>
    %cst_19 = arith.constant 0.0204081628 : f32
    %44 = vector.broadcast %cst_19 : f32 to vector<400x1xf32>
    %45 = arith.mulf %43, %44 : vector<400x1xf32>
    %cst_20 = arith.constant 9.99999974E-6 : f32
    %46 = vector.broadcast %cst_20 : f32 to vector<400x1xf32>
    %47 = arith.addf %45, %46 : vector<400x1xf32>
    %48 = math.rsqrt %47 : vector<400x1xf32>
    %49 = arith.mulf %5, %48 : vector<400x1xf32>
    %50 = vector.broadcast %49 : vector<400x1xf32> to vector<400x49xf32>
    %51 = arith.mulf %40, %50 : vector<400x49xf32>
    %52 = vector.broadcast %6 : vector<400x1xf32> to vector<400x49xf32>
    %53 = arith.addf %51, %52 : vector<400x49xf32>
    %c0_21 = arith.constant 0 : index
    %c0_22 = arith.constant 0 : index
    %54 = vector.load %arg5[%c0_21, %c0_22] : memref<400x49xf32, #tpu.memory_space<vmem>>, vector<400x49xf32>
    tpu.vector_store %arg5[%c0_21, %c0_22], %53 {strides = array<i32>} : memref<400x49xf32, #tpu.memory_space<vmem>>, vector<400x49xf32>,
    return
  }
}

</mosaic_0001>

<llo_original>
// kernel: model_forward.1
$region0: #{model_forward.1}
  #allocation0 [shape = 'u32[]', space=smem, size = 0x4, offset = 0x4, fixed_abs, tag = 'smem constant byte address 0x4 - core index']
  #allocation1 [shape = 'u32[144,128]{1,0:T(1,128)}', space=vmem, size = 0x12000, scoped, tag = 'internal scratch']
  #allocation2 [shape = 'bf16[400,400]{1,0:T(16,128)(2,1)}', space=vmem, size = 0x64000, scoped, tag = 'scratch operand']
  #allocation3 [shape = 's32[1]{0}', space=sflag, size = 0x4, scoped, tag = 'scratch operand']
  #allocation4 [shape = 's32[]', space=sflag, size = 0x4, offset = 0, fixed_abs, tag = 'sflag constant byte address 0x0 - dummy sync flag']
  %s0 = inlined_call_operand.vmem [shape: f32[400,49], index: 0, kind: input, shape index: {}]
  %s1 = inlined_call_operand.vmem [shape: f32[400,49], index: 1, kind: input, shape index: {}]
  %s2 = inlined_call_operand.vmem [shape: bf16[400,400], index: 2, kind: input, shape index: {}]
  %s3 = inlined_call_operand.vmem [shape: f32[400,4], index: 3, kind: input, shape index: {}]
  %s4 = inlined_call_operand.vmem [shape: bf16[400,400], index: 4, kind: input, shape index: {}]
  %s5 = inlined_call_operand.vmem [shape: f32[400,49], index: 5, kind: output, shape index: {}]
  %s6 = sld [smem:[#allocation0]]
  $region63: #{model_forward.1} parent=0
    _
  %s8 = ssub.s32 1, %s6
  %s9 = scalar_select 0, %s8, %s6
  // Predicated region
  $region2: #{model_forward.1} parent=0 // pred_check
    _
  $region3: #{model_forward.1} parent=0 // pred_check_branch
    %11 = sbr.rel (0) target = $region5
  $region4: #{model_forward.1} parent=0 // pred_region
    _
  $region5: #{model_forward.1} parent=0 // pred_fallthru
    _
  // Predicated region
  $region6: #{model_forward.1} parent=0 // pred_check
    _
  $region7: #{model_forward.1} parent=0 // pred_check_branch
    %13 = sbr.rel (0) target = $region9
  $region8: #{model_forward.1} parent=0 // pred_region
    _
  $region9: #{model_forward.1} parent=0 // pred_fallthru
    _
  // Predicated region
  $region10: #{model_forward.1} parent=0 // pred_check
    _
  $region11: #{model_forward.1} parent=0 // pred_check_branch
    %15 = sbr.rel (0) target = $region13
  $region12: #{model_forward.1} parent=0 // pred_region
    _
  $region13: #{model_forward.1} parent=0 // pred_fallthru
    _
  // Predicated region
  $region14: #{model_forward.1} parent=0 // pred_check
    _
  $region15: #{model_forward.1} parent=0 // pred_check_branch
    %17 = sbr.rel (0) target = $region17
  $region16: #{model_forward.1} parent=0 // pred_region
    _
  $region17: #{model_forward.1} parent=0 // pred_fallthru
    _
  %p20 = scmp.lt.u32.totalorder 4, 8
  %p21 = pneg %p20
  // Predicated region
  $region18: #{model_forward.1} parent=0 // pred_check
    _
  $region19: #{model_forward.1} parent=0 // pred_check_branch
    %23 = sbr.rel (%p20) target = $region21
  $region20: #{model_forward.1} parent=0 // pred_region
    %s436 = sand.u32 4, 7
    %p437 = scmp.eq.s32.totalorder %s436, 0
    %p438 = pneg %p437
    // Predicated region
    $region33: #{model_forward.1} parent=20 // pred_check
      _
    $region34: #{model_forward.1} parent=20 // pred_check_branch
      %440 = sbr.rel (%p437) target = $region36
    $region35: #{model_forward.1} parent=20 // pred_region
      %s441 = sand.u32 4, 7
      %s442 = ssub.s32 4, %s441
      %s443 = scalar_lea.vmem %s4, %s442
      %s444 = ssub.s32 4, %s441
      %s445 = scalar_lea.vmem [#allocation2], %s444
      loop: start=0, step=1, limit=1
      $region37: #{model_forward.1} parent=35 // loop_pre_header
        _
      $region38: #{model_forward.1} parent=35 // loop_header
        %s447 = sphi 0, %s451
        %p448 = scmp.ge.s32.totalorder %s447, 1
        %s452 = sphi %s4, %s4
        %s453 = sphi [#allocation2], [#allocation2]
      $region39: #{model_forward.1} parent=35 // loop_header_branch
        %450 = sbr.rel (%p448) target = $region43
      $region40: #{model_forward.1} parent=35 // loop_body
        _
      $region41: #{model_forward.1} parent=35 // loop_footer
        %s451 = sadd.s32 1, %s447
      $region42: #{model_forward.1} parent=35 // loop_footer_branch
        %446 = sbr.rel target = $region38
      $region43: #{model_forward.1} parent=35 // loop_exit
        _
      %s454 = sshllo.u32 0, %s441
      loop: start=0, step=1, limit=1
      $region44: #{model_forward.1} parent=35 // loop_pre_header
        _
      $region45: #{model_forward.1} parent=35 // loop_header
        %s456 = sphi 0, %s460
        %p457 = scmp.ge.s32.totalorder %s456, 1
        %s461 = sphi %s443, %s443
        %s462 = sphi %s445, %s445
      $region46: #{model_forward.1} parent=35 // loop_header_branch
        %459 = sbr.rel (%p457) target = $region50
      $region47: #{model_forward.1} parent=35 // loop_body
        %v463 = vld [vmem:[%s461] sm:%s454]
        %464 = vst [vmem:[%s462] sm:%s454] %v463
        %v465 = vld [vmem:[%s461 + $0x10] sm:%s454]
        %466 = vst [vmem:[%s462 + $0x4] sm:%s454] %v465
        %v467 = vld [vmem:[%s461 + $0x4] sm:%s454]
        %468 = vst [vmem:[%s462 + $0x8] sm:%s454] %v467
        %v469 = vld [vmem:[%s461 + $0x14] sm:%s454]
        %470 = vst [vmem:[%s462 + $0xc] sm:%s454] %v469
        %v471 = vld [vmem:[%s461 + $0x8] sm:%s454]
        %472 = vst [vmem:[%s462 + $0x10] sm:%s454] %v471
        %v473 = vld [vmem:[%s461 + $0x18] sm:%s454]
        %474 = vst [vmem:[%s462 + $0x14] sm:%s454] %v473
        %v475 = vld [vmem:[%s461 + $0xc] sm:%s454]
        %476 = vst [vmem:[%s462 + $0x18] sm:%s454] %v475
        %v477 = vld [vmem:[%s461 + $0x1c] sm:%s454]
        %478 = vst [vmem:[%s462 + $0x1c] sm:%s454] %v477
        %v479 = vld [vmem:[%s461 + $0x20] sm:%s454]
        %480 = vst [vmem:[%s462 + $0x20] sm:%s454] %v479
        %v481 = vld [vmem:[%s461 + $0x30] sm:%s454]
        %482 = vst [vmem:[%s462 + $0x24] sm:%s454] %v481
        %v483 = vld [vmem:[%s461 + $0x24] sm:%s454]
        %484 = vst [vmem:[%s462 + $0x28] sm:%s454] %v483
        %v485 = vld [vmem:[%s461 + $0x34] sm:%s454]
        %486 = vst [vmem:[%s462 + $0x2c] sm:%s454] %v485
        %v487 = vld [vmem:[%s461 + $0x28] sm:%s454]
        %488 = vst [vmem:[%s462 + $0x30] sm:%s454] %v487
        %v489 = vld [vmem:[%s461 + $0x38] sm:%s454]
        %490 = vst [vmem:[%s462 + $0x34] sm:%s454] %v489
        %v491 = vld [vmem:[%s461 + $0x2c] sm:%s454]
        %492 = vst [vmem:[%s462 + $0x38] sm:%s454] %v491
        %v493 = vld [vmem:[%s461 + $0x3c] sm:%s454]
        %494 = vst [vmem:[%s462 + $0x3c] sm:%s454] %v493
        %v495 = vld [vmem:[%s461 + $0x40] sm:%s454]
        %496 = vst [vmem:[%s462 + $0x40] sm:%s454] %v495
        %v497 = vld [vmem:[%s461 + $0x50] sm:%s454]
        %498 = vst [vmem:[%s462 + $0x44] sm:%s454] %v497
        %v499 = vld [vmem:[%s461 + $0x44] sm:%s454]
        %500 = vst [vmem:[%s462 + $0x48] sm:%s454] %v499
        %v501 = vld [vmem:[%s461 + $0x54] sm:%s454]
        %502 = vst [vmem:[%s462 + $0x4c] sm:%s454] %v501
        %v503 = vld [vmem:[%s461 + $0x48] sm:%s454]
        %504 = vst [vmem:[%s462 + $0x50] sm:%s454] %v503
        %v505 = vld [vmem:[%s461 + $0x58] sm:%s454]
        %506 = vst [vmem:[%s462 + $0x54] sm:%s454] %v505
        %v507 = vld [vmem:[%s461 + $0x4c] sm:%s454]
        %508 = vst [vmem:[%s462 + $0x58] sm:%s454] %v507
        %v509 = vld [vmem:[%s461 + $0x5c] sm:%s454]
        %510 = vst [vmem:[%s462 + $0x5c] sm:%s454] %v509
        %v511 = vld [vmem:[%s461 + $0x60] sm:%s454]
        %512 = vst [vmem:[%s462 + $0x60] sm:%s454] %v511
        %v513 = vld [vmem:[%s461 + $0x70] sm:%s454]
        %514 = vst [vmem:[%s462 + $0x64] sm:%s454] %v513
        %v515 = vld [vmem:[%s461 + $0x64] sm:%s454]
        %516 = vst [vmem:[%s462 + $0x68] sm:%s454] %v515
        %v517 = vld [vmem:[%s461 + $0x74] sm:%s454]
        %518 = vst [vmem:[%s462 + $0x6c] sm:%s454] %v517
        %v519 = vld [vmem:[%s461 + $0x68] sm:%s454]
        %520 = vst [vmem:[%s462 + $0x70] sm:%s454] %v519
        %v521 = vld [vmem:[%s461 + $0x78] sm:%s454]
        %522 = vst [vmem:[%s462 + $0x74] sm:%s454] %v521
        %v523 = vld [vmem:[%s461 + $0x6c] sm:%s454]
        %524 = vst [vmem:[%s462 + $0x78] sm:%s454] %v523
        %v525 = vld [vmem:[%s461 + $0x7c] sm:%s454]
        %526 = vst [vmem:[%s462 + $0x7c] sm:%s454] %v525
        %v527 = vld [vmem:[%s461 + $0x80] sm:%s454]
        %528 = vst [vmem:[%s462 + $0x80] sm:%s454] %v527
        %v529 = vld [vmem:[%s461 + $0x90] sm:%s454]
        %530 = vst [vmem:[%s462 + $0x84] sm:%s454] %v529
        %v531 = vld [vmem:[%s461 + $0x84] sm:%s454]
        %532 = vst [vmem:[%s462 + $0x88] sm:%s454] %v531
        %v533 = vld [vmem:[%s461 + $0x94] sm:%s454]
        %534 = vst [vmem:[%s462 + $0x8c] sm:%s454] %v533
        %v535 = vld [vmem:[%s461 + $0x88] sm:%s454]
        %536 = vst [vmem:[%s462 + $0x90] sm:%s454] %v535
        %v537 = vld [vmem:[%s461 + $0x98] sm:%s454]
        %538 = vst [vmem:[%s462 + $0x94] sm:%s454] %v537
        %v539 = vld [vmem:[%s461 + $0x8c] sm:%s454]
        %540 = vst [vmem:[%s462 + $0x98] sm:%s454] %v539
        %v541 = vld [vmem:[%s461 + $0x9c] sm:%s454]
        %542 = vst [vmem:[%s462 + $0x9c] sm:%s454] %v541
        %v543 = vld [vmem:[%s461 + $0xa0] sm:%s454]
        %544 = vst [vmem:[%s462 + $0xa0] sm:%s454] %v543
        %v545 = vld [vmem:[%s461 + $0xb0] sm:%s454]
        %546 = vst [vmem:[%s462 + $0xa4] sm:%s454] %v545
        %v547 = vld [vmem:[%s461 + $0xa4] sm:%s454]
        %548 = vst [vmem:[%s462 + $0xa8] sm:%s454] %v547
        %v549 = vld [vmem:[%s461 + $0xb4] sm:%s454]
        %550 = vst [vmem:[%s462 + $0xac] sm:%s454] %v549
        %v551 = vld [vmem:[%s461 + $0xa8] sm:%s454]
        %552 = vst [vmem:[%s462 + $0xb0] sm:%s454] %v551
        %v553 = vld [vmem:[%s461 + $0xb8] sm:%s454]
        %554 = vst [vmem:[%s462 + $0xb4] sm:%s454] %v553
        %v555 = vld [vmem:[%s461 + $0xac] sm:%s454]
        %556 = vst [vmem:[%s462 + $0xb8] sm:%s454] %v555
        %v557 = vld [vmem:[%s461 + $0xbc] sm:%s454]
        %558 = vst [vmem:[%s462 + $0xbc] sm:%s454] %v557
        %v559 = vld [vmem:[%s461 + $0xc0] sm:%s454]
        %560 = vst [vmem:[%s462 + $0xc0] sm:%s454] %v559
        %v561 = vld [vmem:[%s461 + $0xd0] sm:%s454]
        %562 = vst [vmem:[%s462 + $0xc4] sm:%s454] %v561
        %v563 = vld [vmem:[%s461 + $0xc4] sm:%s454]
        %564 = vst [vmem:[%s462 + $0xc8] sm:%s454] %v563
        %v565 = vld [vmem:[%s461 + $0xd4] sm:%s454]
        %566 = vst [vmem:[%s462 + $0xcc] sm:%s454] %v565
        %v567 = vld [vmem:[%s461 + $0xc8] sm:%s454]
        %568 = vst [vmem:[%s462 + $0xd0] sm:%s454] %v567
        %v569 = vld [vmem:[%s461 + $0xd8] sm:%s454]
        %570 = vst [vmem:[%s462 + $0xd4] sm:%s454] %v569
        %v571 = vld [vmem:[%s461 + $0xcc] sm:%s454]
        %572 = vst [vmem:[%s462 + $0xd8] sm:%s454] %v571
        %v573 = vld [vmem:[%s461 + $0xdc] sm:%s454]
        %574 = vst [vmem:[%s462 + $0xdc] sm:%s454] %v573
        %v575 = vld [vmem:[%s461 + $0xe0] sm:%s454]
        %576 = vst [vmem:[%s462 + $0xe0] sm:%s454] %v575
        %v577 = vld [vmem:[%s461 + $0xf0] sm:%s454]
        %578 = vst [vmem:[%s462 + $0xe4] sm:%s454] %v577
        %v579 = vld [vmem:[%s461 + $0xe4] sm:%s454]
        %580 = vst [vmem:[%s462 + $0xe8] sm:%s454] %v579
        %v581 = vld [vmem:[%s461 + $0xf4] sm:%s454]
        %582 = vst [vmem:[%s462 + $0xec] sm:%s454] %v581
        %v583 = vld [vmem:[%s461 + $0xe8] sm:%s454]
        %584 = vst [vmem:[%s462 + $0xf0] sm:%s454] %v583
        %v585 = vld [vmem:[%s461 + $0xf8] sm:%s454]
        %586 = vst [vmem:[%s462 + $0xf4] sm:%s454] %v585
        %v587 = vld [vmem:[%s461 + $0xec] sm:%s454]
        %588 = vst [vmem:[%s462 + $0xf8] sm:%s454] %v587
        %v589 = vld [vmem:[%s461 + $0xfc] sm:%s454]
        %590 = vst [vmem:[%s462 + $0xfc] sm:%s454] %v589
        %v591 = vld [vmem:[%s461 + $0x100] sm:%s454]
        %592 = vst [vmem:[%s462 + $0x100] sm:%s454] %v591
        %v593 = vld [vmem:[%s461 + $0x110] sm:%s454]
        %594 = vst [vmem:[%s462 + $0x104] sm:%s454] %v593
        %v595 = vld [vmem:[%s461 + $0x104] sm:%s454]
        %596 = vst [vmem:[%s462 + $0x108] sm:%s454] %v595
        %v597 = vld [vmem:[%s461 + $0x114] sm:%s454]
        %598 = vst [vmem:[%s462 + $0x10c] sm:%s454] %v597
        %v599 = vld [vmem:[%s461 + $0x108] sm:%s454]
        %600 = vst [vmem:[%s462 + $0x110] sm:%s454] %v599
        %v601 = vld [vmem:[%s461 + $0x118] sm:%s454]
        %602 = vst [vmem:[%s462 + $0x114] sm:%s454] %v601
        %v603 = vld [vmem:[%s461 + $0x10c] sm:%s454]
        %604 = vst [vmem:[%s462 + $0x118] sm:%s454] %v603
        %v605 = vld [vmem:[%s461 + $0x11c] sm:%s454]
        %606 = vst [vmem:[%s462 + $0x11c] sm:%s454] %v605
        %v607 = vld [vmem:[%s461 + $0x120] sm:%s454]
        %608 = vst [vmem:[%s462 + $0x120] sm:%s454] %v607
        %v609 = vld [vmem:[%s461 + $0x130] sm:%s454]
        %610 = vst [vmem:[%s462 + $0x124] sm:%s454] %v609
        %v611 = vld [vmem:[%s461 + $0x124] sm:%s454]
        %612 = vst [vmem:[%s462 + $0x128] sm:%s454] %v611
        %v613 = vld [vmem:[%s461 + $0x134] sm:%s454]
        %614 = vst [vmem:[%s462 + $0x12c] sm:%s454] %v613
        %v615 = vld [vmem:[%s461 + $0x128] sm:%s454]
        %616 = vst [vmem:[%s462 + $0x130] sm:%s454] %v615
        %v617 = vld [vmem:[%s461 + $0x138] sm:%s454]
        %618 = vst [vmem:[%s462 + $0x134] sm:%s454] %v617
        %v619 = vld [vmem:[%s461 + $0x12c] sm:%s454]
        %620 = vst [vmem:[%s462 + $0x138] sm:%s454] %v619
        %v621 = vld [vmem:[%s461 + $0x13c] sm:%s454]
        %622 = vst [vmem:[%s462 + $0x13c] sm:%s454] %v621
        %v623 = vld [vmem:[%s461 + $0x140] sm:%s454]
        %624 = vst [vmem:[%s462 + $0x140] sm:%s454] %v623
        %v625 = vld [vmem:[%s461 + $0x150] sm:%s454]
        %626 = vst [vmem:[%s462 + $0x144] sm:%s454] %v625
        %v627 = vld [vmem:[%s461 + $0x144] sm:%s454]
        %628 = vst [vmem:[%s462 + $0x148] sm:%s454] %v627
        %v629 = vld [vmem:[%s461 + $0x154] sm:%s454]
        %630 = vst [vmem:[%s462 + $0x14c] sm:%s454] %v629
        %v631 = vld [vmem:[%s461 + $0x148] sm:%s454]
        %632 = vst [vmem:[%s462 + $0x150] sm:%s454] %v631
        %v633 = vld [vmem:[%s461 + $0x158] sm:%s454]
        %634 = vst [vmem:[%s462 + $0x154] sm:%s454] %v633
        %v635 = vld [vmem:[%s461 + $0x14c] sm:%s454]
        %636 = vst [vmem:[%s462 + $0x158] sm:%s454] %v635
        %v637 = vld [vmem:[%s461 + $0x15c] sm:%s454]
        %638 = vst [vmem:[%s462 + $0x15c] sm:%s454] %v637
        %v639 = vld [vmem:[%s461 + $0x160] sm:%s454]
        %640 = vst [vmem:[%s462 + $0x160] sm:%s454] %v639
        %v641 = vld [vmem:[%s461 + $0x170] sm:%s454]
        %642 = vst [vmem:[%s462 + $0x164] sm:%s454] %v641
        %v643 = vld [vmem:[%s461 + $0x164] sm:%s454]
        %644 = vst [vmem:[%s462 + $0x168] sm:%s454] %v643
        %v645 = vld [vmem:[%s461 + $0x174] sm:%s454]
        %646 = vst [vmem:[%s462 + $0x16c] sm:%s454] %v645
        %v647 = vld [vmem:[%s461 + $0x168] sm:%s454]
        %648 = vst [vmem:[%s462 + $0x170] sm:%s454] %v647
        %v649 = vld [vmem:[%s461 + $0x178] sm:%s454]
        %650 = vst [vmem:[%s462 + $0x174] sm:%s454] %v649
        %v651 = vld [vmem:[%s461 + $0x16c] sm:%s454]
        %652 = vst [vmem:[%s462 + $0x178] sm:%s454] %v651
        %v653 = vld [vmem:[%s461 + $0x17c] sm:%s454]
        %654 = vst [vmem:[%s462 + $0x17c] sm:%s454] %v653
        %v655 = vld [vmem:[%s461 + $0x180] sm:%s454]
        %656 = vst [vmem:[%s462 + $0x180] sm:%s454] %v655
        %v657 = vld [vmem:[%s461 + $0x190] sm:%s454]
        %658 = vst [vmem:[%s462 + $0x184] sm:%s454] %v657
        %v659 = vld [vmem:[%s461 + $0x184] sm:%s454]
        %660 = vst [vmem:[%s462 + $0x188] sm:%s454] %v659
        %v661 = vld [vmem:[%s461 + $0x194] sm:%s454]
        %662 = vst [vmem:[%s462 + $0x18c] sm:%s454] %v661
        %v663 = vld [vmem:[%s461 + $0x188] sm:%s454]
        %664 = vst [vmem:[%s462 + $0x190] sm:%s454] %v663
        %v665 = vld [vmem:[%s461 + $0x198] sm:%s454]
        %666 = vst [vmem:[%s462 + $0x194] sm:%s454] %v665
        %v667 = vld [vmem:[%s461 + $0x18c] sm:%s454]
        %668 = vst [vmem:[%s462 + $0x198] sm:%s454] %v667
        %v669 = vld [vmem:[%s461 + $0x19c] sm:%s454]
        %670 = vst [vmem:[%s462 + $0x19c] sm:%s454] %v669
        %v671 = vld [vmem:[%s461 + $0x1a0] sm:%s454]
        %672 = vst [vmem:[%s462 + $0x1a0] sm:%s454] %v671
        %v673 = vld [vmem:[%s461 + $0x1b0] sm:%s454]
        %674 = vst [vmem:[%s462 + $0x1a4] sm:%s454] %v673
        %v675 = vld [vmem:[%s461 + $0x1a4] sm:%s454]
        %676 = vst [vmem:[%s462 + $0x1a8] sm:%s454] %v675
        %v677 = vld [vmem:[%s461 + $0x1b4] sm:%s454]
        %678 = vst [vmem:[%s462 + $0x1ac] sm:%s454] %v677
        %v679 = vld [vmem:[%s461 + $0x1a8] sm:%s454]
        %680 = vst [vmem:[%s462 + $0x1b0] sm:%s454] %v679
        %v681 = vld [vmem:[%s461 + $0x1b8] sm:%s454]
        %682 = vst [vmem:[%s462 + $0x1b4] sm:%s454] %v681
        %v683 = vld [vmem:[%s461 + $0x1ac] sm:%s454]
        %684 = vst [vmem:[%s462 + $0x1b8] sm:%s454] %v683
        %v685 = vld [vmem:[%s461 + $0x1bc] sm:%s454]
        %686 = vst [vmem:[%s462 + $0x1bc] sm:%s454] %v685
        %v687 = vld [vmem:[%s461 + $0x1c0] sm:%s454]
        %688 = vst [vmem:[%s462 + $0x1c0] sm:%s454] %v687
        %v689 = vld [vmem:[%s461 + $0x1d0] sm:%s454]
        %690 = vst [vmem:[%s462 + $0x1c4] sm:%s454] %v689
        %v691 = vld [vmem:[%s461 + $0x1c4] sm:%s454]
        %692 = vst [vmem:[%s462 + $0x1c8] sm:%s454] %v691
        %v693 = vld [vmem:[%s461 + $0x1d4] sm:%s454]
        %694 = vst [vmem:[%s462 + $0x1cc] sm:%s454] %v693
        %v695 = vld [vmem:[%s461 + $0x1c8] sm:%s454]
        %696 = vst [vmem:[%s462 + $0x1d0] sm:%s454] %v695
        %v697 = vld [vmem:[%s461 + $0x1d8] sm:%s454]
        %698 = vst [vmem:[%s462 + $0x1d4] sm:%s454] %v697
        %v699 = vld [vmem:[%s461 + $0x1cc] sm:%s454]
        %700 = vst [vmem:[%s462 + $0x1d8] sm:%s454] %v699
        %v701 = vld [vmem:[%s461 + $0x1dc] sm:%s454]
        %702 = vst [vmem:[%s462 + $0x1dc] sm:%s454] %v701
        %v703 = vld [vmem:[%s461 + $0x1e0] sm:%s454]
        %704 = vst [vmem:[%s462 + $0x1e0] sm:%s454] %v703
        %v705 = vld [vmem:[%s461 + $0x1f0] sm:%s454]
        %706 = vst [vmem:[%s462 + $0x1e4] sm:%s454] %v705
        %v707 = vld [vmem:[%s461 + $0x1e4] sm:%s454]
        %708 = vst [vmem:[%s462 + $0x1e8] sm:%s454] %v707
        %v709 = vld [vmem:[%s461 + $0x1f4] sm:%s454]
        %710 = vst [vmem:[%s462 + $0x1ec] sm:%s454] %v709
        %v711 = vld [vmem:[%s461 + $0x1e8] sm:%s454]
        %712 = vst [vmem:[%s462 + $0x1f0] sm:%s454] %v711
        %v713 = vld [vmem:[%s461 + $0x1f8] sm:%s454]
        %714 = vst [vmem:[%s462 + $0x1f4] sm:%s454] %v713
        %v715 = vld [vmem:[%s461 + $0x1ec] sm:%s454]
        %716 = vst [vmem:[%s462 + $0x1f8] sm:%s454] %v715
        %v717 = vld [vmem:[%s461 + $0x1fc] sm:%s454]
        %718 = vst [vmem:[%s462 + $0x1fc] sm:%s454] %v717
        %v719 = vld [vmem:[%s461 + $0x200] sm:%s454]
        %720 = vst [vmem:[%s462 + $0x200] sm:%s454] %v719
        %v721 = vld [vmem:[%s461 + $0x210] sm:%s454]
        %722 = vst [vmem:[%s462 + $0x204] sm:%s454] %v721
        %v723 = vld [vmem:[%s461 + $0x204] sm:%s454]
        %724 = vst [vmem:[%s462 + $0x208] sm:%s454] %v723
        %v725 = vld [vmem:[%s461 + $0x214] sm:%s454]
        %726 = vst [vmem:[%s462 + $0x20c] sm:%s454] %v725
        %v727 = vld [vmem:[%s461 + $0x208] sm:%s454]
        %728 = vst [vmem:[%s462 + $0x210] sm:%s454] %v727
        %v729 = vld [vmem:[%s461 + $0x218] sm:%s454]
        %730 = vst [vmem:[%s462 + $0x214] sm:%s454] %v729
        %v731 = vld [vmem:[%s461 + $0x20c] sm:%s454]
        %732 = vst [vmem:[%s462 + $0x218] sm:%s454] %v731
        %v733 = vld [vmem:[%s461 + $0x21c] sm:%s454]
        %734 = vst [vmem:[%s462 + $0x21c] sm:%s454] %v733
        %v735 = vld [vmem:[%s461 + $0x220] sm:%s454]
        %736 = vst [vmem:[%s462 + $0x220] sm:%s454] %v735
        %v737 = vld [vmem:[%s461 + $0x230] sm:%s454]
        %738 = vst [vmem:[%s462 + $0x224] sm:%s454] %v737
        %v739 = vld [vmem:[%s461 + $0x224] sm:%s454]
        %740 = vst [vmem:[%s462 + $0x228] sm:%s454] %v739
        %v741 = vld [vmem:[%s461 + $0x234] sm:%s454]
        %742 = vst [vmem:[%s462 + $0x22c] sm:%s454] %v741
        %v743 = vld [vmem:[%s461 + $0x228] sm:%s454]
        %744 = vst [vmem:[%s462 + $0x230] sm:%s454] %v743
        %v745 = vld [vmem:[%s461 + $0x238] sm:%s454]
        %746 = vst [vmem:[%s462 + $0x234] sm:%s454] %v745
        %v747 = vld [vmem:[%s461 + $0x22c] sm:%s454]
        %748 = vst [vmem:[%s462 + $0x238] sm:%s454] %v747
        %v749 = vld [vmem:[%s461 + $0x23c] sm:%s454]
        %750 = vst [vmem:[%s462 + $0x23c] sm:%s454] %v749
        %v751 = vld [vmem:[%s461 + $0x240] sm:%s454]
        %752 = vst [vmem:[%s462 + $0x240] sm:%s454] %v751
        %v753 = vld [vmem:[%s461 + $0x250] sm:%s454]
        %754 = vst [vmem:[%s462 + $0x244] sm:%s454] %v753
        %v755 = vld [vmem:[%s461 + $0x244] sm:%s454]
        %756 = vst [vmem:[%s462 + $0x248] sm:%s454] %v755
        %v757 = vld [vmem:[%s461 + $0x254] sm:%s454]
        %758 = vst [vmem:[%s462 + $0x24c] sm:%s454] %v757
        %v759 = vld [vmem:[%s461 + $0x248] sm:%s454]
        %760 = vst [vmem:[%s462 + $0x250] sm:%s454] %v759
        %v761 = vld [vmem:[%s461 + $0x258] sm:%s454]
        %762 = vst [vmem:[%s462 + $0x254] sm:%s454] %v761
        %v763 = vld [vmem:[%s461 + $0x24c] sm:%s454]
        %764 = vst [vmem:[%s462 + $0x258] sm:%s454] %v763
        %v765 = vld [vmem:[%s461 + $0x25c] sm:%s454]
        %766 = vst [vmem:[%s462 + $0x25c] sm:%s454] %v765
        %v767 = vld [vmem:[%s461 + $0x260] sm:%s454]
        %768 = vst [vmem:[%s462 + $0x260] sm:%s454] %v767
        %v769 = vld [vmem:[%s461 + $0x270] sm:%s454]
        %770 = vst [vmem:[%s462 + $0x264] sm:%s454] %v769
        %v771 = vld [vmem:[%s461 + $0x264] sm:%s454]
        %772 = vst [vmem:[%s462 + $0x268] sm:%s454] %v771
        %v773 = vld [vmem:[%s461 + $0x274] sm:%s454]
        %774 = vst [vmem:[%s462 + $0x26c] sm:%s454] %v773
        %v775 = vld [vmem:[%s461 + $0x268] sm:%s454]
        %776 = vst [vmem:[%s462 + $0x270] sm:%s454] %v775
        %v777 = vld [vmem:[%s461 + $0x278] sm:%s454]
        %778 = vst [vmem:[%s462 + $0x274] sm:%s454] %v777
        %v779 = vld [vmem:[%s461 + $0x26c] sm:%s454]
        %780 = vst [vmem:[%s462 + $0x278] sm:%s454] %v779
        %v781 = vld [vmem:[%s461 + $0x27c] sm:%s454]
        %782 = vst [vmem:[%s462 + $0x27c] sm:%s454] %v781
        %v783 = vld [vmem:[%s461 + $0x280] sm:%s454]
        %784 = vst [vmem:[%s462 + $0x280] sm:%s454] %v783
        %v785 = vld [vmem:[%s461 + $0x290] sm:%s454]
        %786 = vst [vmem:[%s462 + $0x284] sm:%s454] %v785
        %v787 = vld [vmem:[%s461 + $0x284] sm:%s454]
        %788 = vst [vmem:[%s462 + $0x288] sm:%s454] %v787
        %v789 = vld [vmem:[%s461 + $0x294] sm:%s454]
        %790 = vst [vmem:[%s462 + $0x28c] sm:%s454] %v789
        %v791 = vld [vmem:[%s461 + $0x288] sm:%s454]
        %792 = vst [vmem:[%s462 + $0x290] sm:%s454] %v791
        %v793 = vld [vmem:[%s461 + $0x298] sm:%s454]
        %794 = vst [vmem:[%s462 + $0x294] sm:%s454] %v793
        %v795 = vld [vmem:[%s461 + $0x28c] sm:%s454]
        %796 = vst [vmem:[%s462 + $0x298] sm:%s454] %v795
        %v797 = vld [vmem:[%s461 + $0x29c] sm:%s454]
        %798 = vst [vmem:[%s462 + $0x29c] sm:%s454] %v797
        %v799 = vld [vmem:[%s461 + $0x2a0] sm:%s454]
        %800 = vst [vmem:[%s462 + $0x2a0] sm:%s454] %v799
        %v801 = vld [vmem:[%s461 + $0x2b0] sm:%s454]
        %802 = vst [vmem:[%s462 + $0x2a4] sm:%s454] %v801
        %v803 = vld [vmem:[%s461 + $0x2a4] sm:%s454]
        %804 = vst [vmem:[%s462 + $0x2a8] sm:%s454] %v803
        %v805 = vld [vmem:[%s461 + $0x2b4] sm:%s454]
        %806 = vst [vmem:[%s462 + $0x2ac] sm:%s454] %v805
        %v807 = vld [vmem:[%s461 + $0x2a8] sm:%s454]
        %808 = vst [vmem:[%s462 + $0x2b0] sm:%s454] %v807
        %v809 = vld [vmem:[%s461 + $0x2b8] sm:%s454]
        %810 = vst [vmem:[%s462 + $0x2b4] sm:%s454] %v809
        %v811 = vld [vmem:[%s461 + $0x2ac] sm:%s454]
        %812 = vst [vmem:[%s462 + $0x2b8] sm:%s454] %v811
        %v813 = vld [vmem:[%s461 + $0x2bc] sm:%s454]
        %814 = vst [vmem:[%s462 + $0x2bc] sm:%s454] %v813
        %v815 = vld [vmem:[%s461 + $0x2c0] sm:%s454]
        %816 = vst [vmem:[%s462 + $0x2c0] sm:%s454] %v815
        %v817 = vld [vmem:[%s461 + $0x2d0] sm:%s454]
        %818 = vst [vmem:[%s462 + $0x2c4] sm:%s454] %v817
        %v819 = vld [vmem:[%s461 + $0x2c4] sm:%s454]
        %820 = vst [vmem:[%s462 + $0x2c8] sm:%s454] %v819
        %v821 = vld [vmem:[%s461 + $0x2d4] sm:%s454]
        %822 = vst [vmem:[%s462 + $0x2cc] sm:%s454] %v821
        %v823 = vld [vmem:[%s461 + $0x2c8] sm:%s454]
        %824 = vst [vmem:[%s462 + $0x2d0] sm:%s454] %v823
        %v825 = vld [vmem:[%s461 + $0x2d8] sm:%s454]
        %826 = vst [vmem:[%s462 + $0x2d4] sm:%s454] %v825
        %v827 = vld [vmem:[%s461 + $0x2cc] sm:%s454]
        %828 = vst [vmem:[%s462 + $0x2d8] sm:%s454] %v827
        %v829 = vld [vmem:[%s461 + $0x2dc] sm:%s454]
        %830 = vst [vmem:[%s462 + $0x2dc] sm:%s454] %v829
        %v831 = vld [vmem:[%s461 + $0x2e0] sm:%s454]
        %832 = vst [vmem:[%s462 + $0x2e0] sm:%s454] %v831
        %v833 = vld [vmem:[%s461 + $0x2f0] sm:%s454]
        %834 = vst [vmem:[%s462 + $0x2e4] sm:%s454] %v833
        %v835 = vld [vmem:[%s461 + $0x2e4] sm:%s454]
        %836 = vst [vmem:[%s462 + $0x2e8] sm:%s454] %v835
        %v837 = vld [vmem:[%s461 + $0x2f4] sm:%s454]
        %838 = vst [vmem:[%s462 + $0x2ec] sm:%s454] %v837
        %v839 = vld [vmem:[%s461 + $0x2e8] sm:%s454]
        %840 = vst [vmem:[%s462 + $0x2f0] sm:%s454] %v839
        %v841 = vld [vmem:[%s461 + $0x2f8] sm:%s454]
        %842 = vst [vmem:[%s462 + $0x2f4] sm:%s454] %v841
        %v843 = vld [vmem:[%s461 + $0x2ec] sm:%s454]
        %844 = vst [vmem:[%s462 + $0x2f8] sm:%s454] %v843
        %v845 = vld [vmem:[%s461 + $0x2fc] sm:%s454]
        %846 = vst [vmem:[%s462 + $0x2fc] sm:%s454] %v845
        %v847 = vld [vmem:[%s461 + $0x300] sm:%s454]
        %848 = vst [vmem:[%s462 + $0x300] sm:%s454] %v847
        %v849 = vld [vmem:[%s461 + $0x310] sm:%s454]
        %850 = vst [vmem:[%s462 + $0x304] sm:%s454] %v849
        %v851 = vld [vmem:[%s461 + $0x304] sm:%s454]
        %852 = vst [vmem:[%s462 + $0x308] sm:%s454] %v851
        %v853 = vld [vmem:[%s461 + $0x314] sm:%s454]
        %854 = vst [vmem:[%s462 + $0x30c] sm:%s454] %v853
        %v855 = vld [vmem:[%s461 + $0x308] sm:%s454]
        %856 = vst [vmem:[%s462 + $0x310] sm:%s454] %v855
        %v857 = vld [vmem:[%s461 + $0x318] sm:%s454]
        %858 = vst [vmem:[%s462 + $0x314] sm:%s454] %v857
        %v859 = vld [vmem:[%s461 + $0x30c] sm:%s454]
        %860 = vst [vmem:[%s462 + $0x318] sm:%s454] %v859
        %v861 = vld [vmem:[%s461 + $0x31c] sm:%s454]
        %862 = vst [vmem:[%s462 + $0x31c] sm:%s454] %v861
      $region48: #{model_forward.1} parent=35 // loop_footer
        %s460 = sadd.s32 1, %s456
      $region49: #{model_forward.1} parent=35 // loop_footer_branch
        %455 = sbr.rel target = $region45
      $region50: #{model_forward.1} parent=35 // loop_exit
        _
    $region36: #{model_forward.1} parent=20 // pred_fallthru
      _
  $region21: #{model_forward.1} parent=0 // pred_fallthru
    _
  // Predicated region
  $region22: #{model_forward.1} parent=0 // pred_check
    %p24 = pneg %p20
  $region23: #{model_forward.1} parent=0 // pred_check_branch
    %26 = sbr.rel (%p24) target = $region25
  $region24: #{model_forward.1} parent=0 // pred_region
    %s27 = sshllo.u32 0, 4
    loop: start=0, step=1, limit=1
    $region26: #{model_forward.1} parent=24 // loop_pre_header
      _
    $region27: #{model_forward.1} parent=24 // loop_header
      %s29 = sphi 0, %s33
      %p30 = scmp.ge.s32.totalorder %s29, 1
      %s34 = sphi %s4, %s4
      %s35 = sphi [#allocation2], [#allocation2]
    $region28: #{model_forward.1} parent=24 // loop_header_branch
      %32 = sbr.rel (%p30) target = $region32
    $region29: #{model_forward.1} parent=24 // loop_body
      %v36 = vld [vmem:[%s34] sm:%s27]
      %37 = vst [vmem:[%s35] sm:%s27] %v36
      %v38 = vld [vmem:[%s34 + $0x10] sm:%s27]
      %39 = vst [vmem:[%s35 + $0x4] sm:%s27] %v38
      %v40 = vld [vmem:[%s34 + $0x4] sm:%s27]
      %41 = vst [vmem:[%s35 + $0x8] sm:%s27] %v40
      %v42 = vld [vmem:[%s34 + $0x14] sm:%s27]
      %43 = vst [vmem:[%s35 + $0xc] sm:%s27] %v42
      %v44 = vld [vmem:[%s34 + $0x8] sm:%s27]
      %45 = vst [vmem:[%s35 + $0x10] sm:%s27] %v44
      %v46 = vld [vmem:[%s34 + $0x18] sm:%s27]
      %47 = vst [vmem:[%s35 + $0x14] sm:%s27] %v46
      %v48 = vld [vmem:[%s34 + $0xc] sm:%s27]
      %49 = vst [vmem:[%s35 + $0x18] sm:%s27] %v48
      %v50 = vld [vmem:[%s34 + $0x1c] sm:%s27]
      %51 = vst [vmem:[%s35 + $0x1c] sm:%s27] %v50
      %v52 = vld [vmem:[%s34 + $0x20] sm:%s27]
      %53 = vst [vmem:[%s35 + $0x20] sm:%s27] %v52
      %v54 = vld [vmem:[%s34 + $0x30] sm:%s27]
      %55 = vst [vmem:[%s35 + $0x24] sm:%s27] %v54
      %v56 = vld [vmem:[%s34 + $0x24] sm:%s27]
      %57 = vst [vmem:[%s35 + $0x28] sm:%s27] %v56
      %v58 = vld [vmem:[%s34 + $0x34] sm:%s27]
      %59 = vst [vmem:[%s35 + $0x2c] sm:%s27] %v58
      %v60 = vld [vmem:[%s34 + $0x28] sm:%s27]
      %61 = vst [vmem:[%s35 + $0x30] sm:%s27] %v60
      %v62 = vld [vmem:[%s34 + $0x38] sm:%s27]
      %63 = vst [vmem:[%s35 + $0x34] sm:%s27] %v62
      %v64 = vld [vmem:[%s34 + $0x2c] sm:%s27]
      %65 = vst [vmem:[%s35 + $0x38] sm:%s27] %v64
      %v66 = vld [vmem:[%s34 + $0x3c] sm:%s27]
      %67 = vst [vmem:[%s35 + $0x3c] sm:%s27] %v66
      %v68 = vld [vmem:[%s34 + $0x40] sm:%s27]
      %69 = vst [vmem:[%s35 + $0x40] sm:%s27] %v68
      %v70 = vld [vmem:[%s34 + $0x50] sm:%s27]
      %71 = vst [vmem:[%s35 + $0x44] sm:%s27] %v70
      %v72 = vld [vmem:[%s34 + $0x44] sm:%s27]
      %73 = vst [vmem:[%s35 + $0x48] sm:%s27] %v72
      %v74 = vld [vmem:[%s34 + $0x54] sm:%s27]
      %75 = vst [vmem:[%s35 + $0x4c] sm:%s27] %v74
      %v76 = vld [vmem:[%s34 + $0x48] sm:%s27]
      %77 = vst [vmem:[%s35 + $0x50] sm:%s27] %v76
      %v78 = vld [vmem:[%s34 + $0x58] sm:%s27]
      %79 = vst [vmem:[%s35 + $0x54] sm:%s27] %v78
      %v80 = vld [vmem:[%s34 + $0x4c] sm:%s27]
      %81 = vst [vmem:[%s35 + $0x58] sm:%s27] %v80
      %v82 = vld [vmem:[%s34 + $0x5c] sm:%s27]
      %83 = vst [vmem:[%s35 + $0x5c] sm:%s27] %v82
      %v84 = vld [vmem:[%s34 + $0x60] sm:%s27]
      %85 = vst [vmem:[%s35 + $0x60] sm:%s27] %v84
      %v86 = vld [vmem:[%s34 + $0x70] sm:%s27]
      %87 = vst [vmem:[%s35 + $0x64] sm:%s27] %v86
      %v88 = vld [vmem:[%s34 + $0x64] sm:%s27]
      %89 = vst [vmem:[%s35 + $0x68] sm:%s27] %v88
      %v90 = vld [vmem:[%s34 + $0x74] sm:%s27]
      %91 = vst [vmem:[%s35 + $0x6c] sm:%s27] %v90
      %v92 = vld [vmem:[%s34 + $0x68] sm:%s27]
      %93 = vst [vmem:[%s35 + $0x70] sm:%s27] %v92
      %v94 = vld [vmem:[%s34 + $0x78] sm:%s27]
      %95 = vst [vmem:[%s35 + $0x74] sm:%s27] %v94
      %v96 = vld [vmem:[%s34 + $0x6c] sm:%s27]
      %97 = vst [vmem:[%s35 + $0x78] sm:%s27] %v96
      %v98 = vld [vmem:[%s34 + $0x7c] sm:%s27]
      %99 = vst [vmem:[%s35 + $0x7c] sm:%s27] %v98
      %v100 = vld [vmem:[%s34 + $0x80] sm:%s27]
      %101 = vst [vmem:[%s35 + $0x80] sm:%s27] %v100
      %v102 = vld [vmem:[%s34 + $0x90] sm:%s27]
      %103 = vst [vmem:[%s35 + $0x84] sm:%s27] %v102
      %v104 = vld [vmem:[%s34 + $0x84] sm:%s27]
      %105 = vst [vmem:[%s35 + $0x88] sm:%s27] %v104
      %v106 = vld [vmem:[%s34 + $0x94] sm:%s27]
      %107 = vst [vmem:[%s35 + $0x8c] sm:%s27] %v106
      %v108 = vld [vmem:[%s34 + $0x88] sm:%s27]
      %109 = vst [vmem:[%s35 + $0x90] sm:%s27] %v108
      %v110 = vld [vmem:[%s34 + $0x98] sm:%s27]
      %111 = vst [vmem:[%s35 + $0x94] sm:%s27] %v110
      %v112 = vld [vmem:[%s34 + $0x8c] sm:%s27]
      %113 = vst [vmem:[%s35 + $0x98] sm:%s27] %v112
      %v114 = vld [vmem:[%s34 + $0x9c] sm:%s27]
      %115 = vst [vmem:[%s35 + $0x9c] sm:%s27] %v114
      %v116 = vld [vmem:[%s34 + $0xa0] sm:%s27]
      %117 = vst [vmem:[%s35 + $0xa0] sm:%s27] %v116
      %v118 = vld [vmem:[%s34 + $0xb0] sm:%s27]
      %119 = vst [vmem:[%s35 + $0xa4] sm:%s27] %v118
      %v120 = vld [vmem:[%s34 + $0xa4] sm:%s27]
      %121 = vst [vmem:[%s35 + $0xa8] sm:%s27] %v120
      %v122 = vld [vmem:[%s34 + $0xb4] sm:%s27]
      %123 = vst [vmem:[%s35 + $0xac] sm:%s27] %v122
      %v124 = vld [vmem:[%s34 + $0xa8] sm:%s27]
      %125 = vst [vmem:[%s35 + $0xb0] sm:%s27] %v124
      %v126 = vld [vmem:[%s34 + $0xb8] sm:%s27]
      %127 = vst [vmem:[%s35 + $0xb4] sm:%s27] %v126
      %v128 = vld [vmem:[%s34 + $0xac] sm:%s27]
      %129 = vst [vmem:[%s35 + $0xb8] sm:%s27] %v128
      %v130 = vld [vmem:[%s34 + $0xbc] sm:%s27]
      %131 = vst [vmem:[%s35 + $0xbc] sm:%s27] %v130
      %v132 = vld [vmem:[%s34 + $0xc0] sm:%s27]
      %133 = vst [vmem:[%s35 + $0xc0] sm:%s27] %v132
      %v134 = vld [vmem:[%s34 + $0xd0] sm:%s27]
      %135 = vst [vmem:[%s35 + $0xc4] sm:%s27] %v134
      %v136 = vld [vmem:[%s34 + $0xc4] sm:%s27]
      %137 = vst [vmem:[%s35 + $0xc8] sm:%s27] %v136
      %v138 = vld [vmem:[%s34 + $0xd4] sm:%s27]
      %139 = vst [vmem:[%s35 + $0xcc] sm:%s27] %v138
      %v140 = vld [vmem:[%s34 + $0xc8] sm:%s27]
      %141 = vst [vmem:[%s35 + $0xd0] sm:%s27] %v140
      %v142 = vld [vmem:[%s34 + $0xd8] sm:%s27]
      %143 = vst [vmem:[%s35 + $0xd4] sm:%s27] %v142
      %v144 = vld [vmem:[%s34 + $0xcc] sm:%s27]
      %145 = vst [vmem:[%s35 + $0xd8] sm:%s27] %v144
      %v146 = vld [vmem:[%s34 + $0xdc] sm:%s27]
      %147 = vst [vmem:[%s35 + $0xdc] sm:%s27] %v146
      %v148 = vld [vmem:[%s34 + $0xe0] sm:%s27]
      %149 = vst [vmem:[%s35 + $0xe0] sm:%s27] %v148
      %v150 = vld [vmem:[%s34 + $0xf0] sm:%s27]
      %151 = vst [vmem:[%s35 + $0xe4] sm:%s27] %v150
      %v152 = vld [vmem:[%s34 + $0xe4] sm:%s27]
      %153 = vst [vmem:[%s35 + $0xe8] sm:%s27] %v152
      %v154 = vld [vmem:[%s34 + $0xf4] sm:%s27]
      %155 = vst [vmem:[%s35 + $0xec] sm:%s27] %v154
      %v156 = vld [vmem:[%s34 + $0xe8] sm:%s27]
      %157 = vst [vmem:[%s35 + $0xf0] sm:%s27] %v156
      %v158 = vld [vmem:[%s34 + $0xf8] sm:%s27]
      %159 = vst [vmem:[%s35 + $0xf4] sm:%s27] %v158
      %v160 = vld [vmem:[%s34 + $0xec] sm:%s27]
      %161 = vst [vmem:[%s35 + $0xf8] sm:%s27] %v160
      %v162 = vld [vmem:[%s34 + $0xfc] sm:%s27]
      %163 = vst [vmem:[%s35 + $0xfc] sm:%s27] %v162
      %v164 = vld [vmem:[%s34 + $0x100] sm:%s27]
      %165 = vst [vmem:[%s35 + $0x100] sm:%s27] %v164
      %v166 = vld [vmem:[%s34 + $0x110] sm:%s27]
      %167 = vst [vmem:[%s35 + $0x104] sm:%s27] %v166
      %v168 = vld [vmem:[%s34 + $0x104] sm:%s27]
      %169 = vst [vmem:[%s35 + $0x108] sm:%s27] %v168
      %v170 = vld [vmem:[%s34 + $0x114] sm:%s27]
      %171 = vst [vmem:[%s35 + $0x10c] sm:%s27] %v170
      %v172 = vld [vmem:[%s34 + $0x108] sm:%s27]
      %173 = vst [vmem:[%s35 + $0x110] sm:%s27] %v172
      %v174 = vld [vmem:[%s34 + $0x118] sm:%s27]
      %175 = vst [vmem:[%s35 + $0x114] sm:%s27] %v174
      %v176 = vld [vmem:[%s34 + $0x10c] sm:%s27]
      %177 = vst [vmem:[%s35 + $0x118] sm:%s27] %v176
      %v178 = vld [vmem:[%s34 + $0x11c] sm:%s27]
      %179 = vst [vmem:[%s35 + $0x11c] sm:%s27] %v178
      %v180 = vld [vmem:[%s34 + $0x120] sm:%s27]
      %181 = vst [vmem:[%s35 + $0x120] sm:%s27] %v180
      %v182 = vld [vmem:[%s34 + $0x130] sm:%s27]
      %183 = vst [vmem:[%s35 + $0x124] sm:%s27] %v182
      %v184 = vld [vmem:[%s34 + $0x124] sm:%s27]
      %185 = vst [vmem:[%s35 + $0x128] sm:%s27] %v184
      %v186 = vld [vmem:[%s34 + $0x134] sm:%s27]
      %187 = vst [vmem:[%s35 + $0x12c] sm:%s27] %v186
      %v188 = vld [vmem:[%s34 + $0x128] sm:%s27]
      %189 = vst [vmem:[%s35 + $0x130] sm:%s27] %v188
      %v190 = vld [vmem:[%s34 + $0x138] sm:%s27]
      %191 = vst [vmem:[%s35 + $0x134] sm:%s27] %v190
      %v192 = vld [vmem:[%s34 + $0x12c] sm:%s27]
      %193 = vst [vmem:[%s35 + $0x138] sm:%s27] %v192
      %v194 = vld [vmem:[%s34 + $0x13c] sm:%s27]
      %195 = vst [vmem:[%s35 + $0x13c] sm:%s27] %v194
      %v196 = vld [vmem:[%s34 + $0x140] sm:%s27]
      %197 = vst [vmem:[%s35 + $0x140] sm:%s27] %v196
      %v198 = vld [vmem:[%s34 + $0x150] sm:%s27]
      %199 = vst [vmem:[%s35 + $0x144] sm:%s27] %v198
      %v200 = vld [vmem:[%s34 + $0x144] sm:%s27]
      %201 = vst [vmem:[%s35 + $0x148] sm:%s27] %v200
      %v202 = vld [vmem:[%s34 + $0x154] sm:%s27]
      %203 = vst [vmem:[%s35 + $0x14c] sm:%s27] %v202
      %v204 = vld [vmem:[%s34 + $0x148] sm:%s27]
      %205 = vst [vmem:[%s35 + $0x150] sm:%s27] %v204
      %v206 = vld [vmem:[%s34 + $0x158] sm:%s27]
      %207 = vst [vmem:[%s35 + $0x154] sm:%s27] %v206
      %v208 = vld [vmem:[%s34 + $0x14c] sm:%s27]
      %209 = vst [vmem:[%s35 + $0x158] sm:%s27] %v208
      %v210 = vld [vmem:[%s34 + $0x15c] sm:%s27]
      %211 = vst [vmem:[%s35 + $0x15c] sm:%s27] %v210
      %v212 = vld [vmem:[%s34 + $0x160] sm:%s27]
      %213 = vst [vmem:[%s35 + $0x160] sm:%s27] %v212
      %v214 = vld [vmem:[%s34 + $0x170] sm:%s27]
      %215 = vst [vmem:[%s35 + $0x164] sm:%s27] %v214
      %v216 = vld [vmem:[%s34 + $0x164] sm:%s27]
      %217 = vst [vmem:[%s35 + $0x168] sm:%s27] %v216
      %v218 = vld [vmem:[%s34 + $0x174] sm:%s27]
      %219 = vst [vmem:[%s35 + $0x16c] sm:%s27] %v218
      %v220 = vld [vmem:[%s34 + $0x168] sm:%s27]
      %221 = vst [vmem:[%s35 + $0x170] sm:%s27] %v220
      %v222 = vld [vmem:[%s34 + $0x178] sm:%s27]
      %223 = vst [vmem:[%s35 + $0x174] sm:%s27] %v222
      %v224 = vld [vmem:[%s34 + $0x16c] sm:%s27]
      %225 = vst [vmem:[%s35 + $0x178] sm:%s27] %v224
      %v226 = vld [vmem:[%s34 + $0x17c] sm:%s27]
      %227 = vst [vmem:[%s35 + $0x17c] sm:%s27] %v226
      %v228 = vld [vmem:[%s34 + $0x180] sm:%s27]
      %229 = vst [vmem:[%s35 + $0x180] sm:%s27] %v228
      %v230 = vld [vmem:[%s34 + $0x190] sm:%s27]
      %231 = vst [vmem:[%s35 + $0x184] sm:%s27] %v230
      %v232 = vld [vmem:[%s34 + $0x184] sm:%s27]
      %233 = vst [vmem:[%s35 + $0x188] sm:%s27] %v232
      %v234 = vld [vmem:[%s34 + $0x194] sm:%s27]
      %235 = vst [vmem:[%s35 + $0x18c] sm:%s27] %v234
      %v236 = vld [vmem:[%s34 + $0x188] sm:%s27]
      %237 = vst [vmem:[%s35 + $0x190] sm:%s27] %v236
      %v238 = vld [vmem:[%s34 + $0x198] sm:%s27]
      %239 = vst [vmem:[%s35 + $0x194] sm:%s27] %v238
      %v240 = vld [vmem:[%s34 + $0x18c] sm:%s27]
      %241 = vst [vmem:[%s35 + $0x198] sm:%s27] %v240
      %v242 = vld [vmem:[%s34 + $0x19c] sm:%s27]
      %243 = vst [vmem:[%s35 + $0x19c] sm:%s27] %v242
      %v244 = vld [vmem:[%s34 + $0x1a0] sm:%s27]
      %245 = vst [vmem:[%s35 + $0x1a0] sm:%s27] %v244
      %v246 = vld [vmem:[%s34 + $0x1b0] sm:%s27]
      %247 = vst [vmem:[%s35 + $0x1a4] sm:%s27] %v246
      %v248 = vld [vmem:[%s34 + $0x1a4] sm:%s27]
      %249 = vst [vmem:[%s35 + $0x1a8] sm:%s27] %v248
      %v250 = vld [vmem:[%s34 + $0x1b4] sm:%s27]
      %251 = vst [vmem:[%s35 + $0x1ac] sm:%s27] %v250
      %v252 = vld [vmem:[%s34 + $0x1a8] sm:%s27]
      %253 = vst [vmem:[%s35 + $0x1b0] sm:%s27] %v252
      %v254 = vld [vmem:[%s34 + $0x1b8] sm:%s27]
      %255 = vst [vmem:[%s35 + $0x1b4] sm:%s27] %v254
      %v256 = vld [vmem:[%s34 + $0x1ac] sm:%s27]
      %257 = vst [vmem:[%s35 + $0x1b8] sm:%s27] %v256
      %v258 = vld [vmem:[%s34 + $0x1bc] sm:%s27]
      %259 = vst [vmem:[%s35 + $0x1bc] sm:%s27] %v258
      %v260 = vld [vmem:[%s34 + $0x1c0] sm:%s27]
      %261 = vst [vmem:[%s35 + $0x1c0] sm:%s27] %v260
      %v262 = vld [vmem:[%s34 + $0x1d0] sm:%s27]
      %263 = vst [vmem:[%s35 + $0x1c4] sm:%s27] %v262
      %v264 = vld [vmem:[%s34 + $0x1c4] sm:%s27]
      %265 = vst [vmem:[%s35 + $0x1c8] sm:%s27] %v264
      %v266 = vld [vmem:[%s34 + $0x1d4] sm:%s27]
      %267 = vst [vmem:[%s35 + $0x1cc] sm:%s27] %v266
      %v268 = vld [vmem:[%s34 + $0x1c8] sm:%s27]
      %269 = vst [vmem:[%s35 + $0x1d0] sm:%s27] %v268
      %v270 = vld [vmem:[%s34 + $0x1d8] sm:%s27]
      %271 = vst [vmem:[%s35 + $0x1d4] sm:%s27] %v270
      %v272 = vld [vmem:[%s34 + $0x1cc] sm:%s27]
      %273 = vst [vmem:[%s35 + $0x1d8] sm:%s27] %v272
      %v274 = vld [vmem:[%s34 + $0x1dc] sm:%s27]
      %275 = vst [vmem:[%s35 + $0x1dc] sm:%s27] %v274
      %v276 = vld [vmem:[%s34 + $0x1e0] sm:%s27]
      %277 = vst [vmem:[%s35 + $0x1e0] sm:%s27] %v276
      %v278 = vld [vmem:[%s34 + $0x1f0] sm:%s27]
      %279 = vst [vmem:[%s35 + $0x1e4] sm:%s27] %v278
      %v280 = vld [vmem:[%s34 + $0x1e4] sm:%s27]
      %281 = vst [vmem:[%s35 + $0x1e8] sm:%s27] %v280
      %v282 = vld [vmem:[%s34 + $0x1f4] sm:%s27]
      %283 = vst [vmem:[%s35 + $0x1ec] sm:%s27] %v282
      %v284 = vld [vmem:[%s34 + $0x1e8] sm:%s27]
      %285 = vst [vmem:[%s35 + $0x1f0] sm:%s27] %v284
      %v286 = vld [vmem:[%s34 + $0x1f8] sm:%s27]
      %287 = vst [vmem:[%s35 + $0x1f4] sm:%s27] %v286
      %v288 = vld [vmem:[%s34 + $0x1ec] sm:%s27]
      %289 = vst [vmem:[%s35 + $0x1f8] sm:%s27] %v288
      %v290 = vld [vmem:[%s34 + $0x1fc] sm:%s27]
      %291 = vst [vmem:[%s35 + $0x1fc] sm:%s27] %v290
      %v292 = vld [vmem:[%s34 + $0x200] sm:%s27]
      %293 = vst [vmem:[%s35 + $0x200] sm:%s27] %v292
      %v294 = vld [vmem:[%s34 + $0x210] sm:%s27]
      %295 = vst [vmem:[%s35 + $0x204] sm:%s27] %v294
      %v296 = vld [vmem:[%s34 + $0x204] sm:%s27]
      %297 = vst [vmem:[%s35 + $0x208] sm:%s27] %v296
      %v298 = vld [vmem:[%s34 + $0x214] sm:%s27]
      %299 = vst [vmem:[%s35 + $0x20c] sm:%s27] %v298
      %v300 = vld [vmem:[%s34 + $0x208] sm:%s27]
      %301 = vst [vmem:[%s35 + $0x210] sm:%s27] %v300
      %v302 = vld [vmem:[%s34 + $0x218] sm:%s27]
      %303 = vst [vmem:[%s35 + $0x214] sm:%s27] %v302
      %v304 = vld [vmem:[%s34 + $0x20c] sm:%s27]
      %305 = vst [vmem:[%s35 + $0x218] sm:%s27] %v304
      %v306 = vld [vmem:[%s34 + $0x21c] sm:%s27]
      %307 = vst [vmem:[%s35 + $0x21c] sm:%s27] %v306
      %v308 = vld [vmem:[%s34 + $0x220] sm:%s27]
      %309 = vst [vmem:[%s35 + $0x220] sm:%s27] %v308
      %v310 = vld [vmem:[%s34 + $0x230] sm:%s27]
      %311 = vst [vmem:[%s35 + $0x224] sm:%s27] %v310
      %v312 = vld [vmem:[%s34 + $0x224] sm:%s27]
      %313 = vst [vmem:[%s35 + $0x228] sm:%s27] %v312
      %v314 = vld [vmem:[%s34 + $0x234] sm:%s27]
      %315 = vst [vmem:[%s35 + $0x22c] sm:%s27] %v314
      %v316 = vld [vmem:[%s34 + $0x228] sm:%s27]
      %317 = vst [vmem:[%s35 + $0x230] sm:%s27] %v316
      %v318 = vld [vmem:[%s34 + $0x238] sm:%s27]
      %319 = vst [vmem:[%s35 + $0x234] sm:%s27] %v318
      %v320 = vld [vmem:[%s34 + $0x22c] sm:%s27]
      %321 = vst [vmem:[%s35 + $0x238] sm:%s27] %v320
      %v322 = vld [vmem:[%s34 + $0x23c] sm:%s27]
      %323 = vst [vmem:[%s35 + $0x23c] sm:%s27] %v322
      %v324 = vld [vmem:[%s34 + $0x240] sm:%s27]
      %325 = vst [vmem:[%s35 + $0x240] sm:%s27] %v324
      %v326 = vld [vmem:[%s34 + $0x250] sm:%s27]
      %327 = vst [vmem:[%s35 + $0x244] sm:%s27] %v326
      %v328 = vld [vmem:[%s34 + $0x244] sm:%s27]
      %329 = vst [vmem:[%s35 + $0x248] sm:%s27] %v328
      %v330 = vld [vmem:[%s34 + $0x254] sm:%s27]
      %331 = vst [vmem:[%s35 + $0x24c] sm:%s27] %v330
      %v332 = vld [vmem:[%s34 + $0x248] sm:%s27]
      %333 = vst [vmem:[%s35 + $0x250] sm:%s27] %v332
      %v334 = vld [vmem:[%s34 + $0x258] sm:%s27]
      %335 = vst [vmem:[%s35 + $0x254] sm:%s27] %v334
      %v336 = vld [vmem:[%s34 + $0x24c] sm:%s27]
      %337 = vst [vmem:[%s35 + $0x258] sm:%s27] %v336
      %v338 = vld [vmem:[%s34 + $0x25c] sm:%s27]
      %339 = vst [vmem:[%s35 + $0x25c] sm:%s27] %v338
      %v340 = vld [vmem:[%s34 + $0x260] sm:%s27]
      %341 = vst [vmem:[%s35 + $0x260] sm:%s27] %v340
      %v342 = vld [vmem:[%s34 + $0x270] sm:%s27]
      %343 = vst [vmem:[%s35 + $0x264] sm:%s27] %v342
      %v344 = vld [vmem:[%s34 + $0x264] sm:%s27]
      %345 = vst [vmem:[%s35 + $0x268] sm:%s27] %v344
      %v346 = vld [vmem:[%s34 + $0x274] sm:%s27]
      %347 = vst [vmem:[%s35 + $0x26c] sm:%s27] %v346
      %v348 = vld [vmem:[%s34 + $0x268] sm:%s27]
      %349 = vst [vmem:[%s35 + $0x270] sm:%s27] %v348
      %v350 = vld [vmem:[%s34 + $0x278] sm:%s27]
      %351 = vst [vmem:[%s35 + $0x274] sm:%s27] %v350
      %v352 = vld [vmem:[%s34 + $0x26c] sm:%s27]
      %353 = vst [vmem:[%s35 + $0x278] sm:%s27] %v352
      %v354 = vld [vmem:[%s34 + $0x27c] sm:%s27]
      %355 = vst [vmem:[%s35 + $0x27c] sm:%s27] %v354
      %v356 = vld [vmem:[%s34 + $0x280] sm:%s27]
      %357 = vst [vmem:[%s35 + $0x280] sm:%s27] %v356
      %v358 = vld [vmem:[%s34 + $0x290] sm:%s27]
      %359 = vst [vmem:[%s35 + $0x284] sm:%s27] %v358
      %v360 = vld [vmem:[%s34 + $0x284] sm:%s27]
      %361 = vst [vmem:[%s35 + $0x288] sm:%s27] %v360
      %v362 = vld [vmem:[%s34 + $0x294] sm:%s27]
      %363 = vst [vmem:[%s35 + $0x28c] sm:%s27] %v362
      %v364 = vld [vmem:[%s34 + $0x288] sm:%s27]
      %365 = vst [vmem:[%s35 + $0x290] sm:%s27] %v364
      %v366 = vld [vmem:[%s34 + $0x298] sm:%s27]
      %367 = vst [vmem:[%s35 + $0x294] sm:%s27] %v366
      %v368 = vld [vmem:[%s34 + $0x28c] sm:%s27]
      %369 = vst [vmem:[%s35 + $0x298] sm:%s27] %v368
      %v370 = vld [vmem:[%s34 + $0x29c] sm:%s27]
      %371 = vst [vmem:[%s35 + $0x29c] sm:%s27] %v370
      %v372 = vld [vmem:[%s34 + $0x2a0] sm:%s27]
      %373 = vst [vmem:[%s35 + $0x2a0] sm:%s27] %v372
      %v374 = vld [vmem:[%s34 + $0x2b0] sm:%s27]
      %375 = vst [vmem:[%s35 + $0x2a4] sm:%s27] %v374
      %v376 = vld [vmem:[%s34 + $0x2a4] sm:%s27]
      %377 = vst [vmem:[%s35 + $0x2a8] sm:%s27] %v376
      %v378 = vld [vmem:[%s34 + $0x2b4] sm:%s27]
      %379 = vst [vmem:[%s35 + $0x2ac] sm:%s27] %v378
      %v380 = vld [vmem:[%s34 + $0x2a8] sm:%s27]
      %381 = vst [vmem:[%s35 + $0x2b0] sm:%s27] %v380
      %v382 = vld [vmem:[%s34 + $0x2b8] sm:%s27]
      %383 = vst [vmem:[%s35 + $0x2b4] sm:%s27] %v382
      %v384 = vld [vmem:[%s34 + $0x2ac] sm:%s27]
      %385 = vst [vmem:[%s35 + $0x2b8] sm:%s27] %v384
      %v386 = vld [vmem:[%s34 + $0x2bc] sm:%s27]
      %387 = vst [vmem:[%s35 + $0x2bc] sm:%s27] %v386
      %v388 = vld [vmem:[%s34 + $0x2c0] sm:%s27]
      %389 = vst [vmem:[%s35 + $0x2c0] sm:%s27] %v388
      %v390 = vld [vmem:[%s34 + $0x2d0] sm:%s27]
      %391 = vst [vmem:[%s35 + $0x2c4] sm:%s27] %v390
      %v392 = vld [vmem:[%s34 + $0x2c4] sm:%s27]
      %393 = vst [vmem:[%s35 + $0x2c8] sm:%s27] %v392
      %v394 = vld [vmem:[%s34 + $0x2d4] sm:%s27]
      %395 = vst [vmem:[%s35 + $0x2cc] sm:%s27] %v394
      %v396 = vld [vmem:[%s34 + $0x2c8] sm:%s27]
      %397 = vst [vmem:[%s35 + $0x2d0] sm:%s27] %v396
      %v398 = vld [vmem:[%s34 + $0x2d8] sm:%s27]
      %399 = vst [vmem:[%s35 + $0x2d4] sm:%s27] %v398
      %v400 = vld [vmem:[%s34 + $0x2cc] sm:%s27]
      %401 = vst [vmem:[%s35 + $0x2d8] sm:%s27] %v400
      %v402 = vld [vmem:[%s34 + $0x2dc] sm:%s27]
      %403 = vst [vmem:[%s35 + $0x2dc] sm:%s27] %v402
      %v404 = vld [vmem:[%s34 + $0x2e0] sm:%s27]
      %405 = vst [vmem:[%s35 + $0x2e0] sm:%s27] %v404
      %v406 = vld [vmem:[%s34 + $0x2f0] sm:%s27]
      %407 = vst [vmem:[%s35 + $0x2e4] sm:%s27] %v406
      %v408 = vld [vmem:[%s34 + $0x2e4] sm:%s27]
      %409 = vst [vmem:[%s35 + $0x2e8] sm:%s27] %v408
      %v410 = vld [vmem:[%s34 + $0x2f4] sm:%s27]
      %411 = vst [vmem:[%s35 + $0x2ec] sm:%s27] %v410
      %v412 = vld [vmem:[%s34 + $0x2e8] sm:%s27]
      %413 = vst [vmem:[%s35 + $0x2f0] sm:%s27] %v412
      %v414 = vld [vmem:[%s34 + $0x2f8] sm:%s27]
      %415 = vst [vmem:[%s35 + $0x2f4] sm:%s27] %v414
      %v416 = vld [vmem:[%s34 + $0x2ec] sm:%s27]
      %417 = vst [vmem:[%s35 + $0x2f8] sm:%s27] %v416
      %v418 = vld [vmem:[%s34 + $0x2fc] sm:%s27]
      %419 = vst [vmem:[%s35 + $0x2fc] sm:%s27] %v418
      %v420 = vld [vmem:[%s34 + $0x300] sm:%s27]
      %421 = vst [vmem:[%s35 + $0x300] sm:%s27] %v420
      %v422 = vld [vmem:[%s34 + $0x310] sm:%s27]
      %423 = vst [vmem:[%s35 + $0x304] sm:%s27] %v422
      %v424 = vld [vmem:[%s34 + $0x304] sm:%s27]
      %425 = vst [vmem:[%s35 + $0x308] sm:%s27] %v424
      %v426 = vld [vmem:[%s34 + $0x314] sm:%s27]
      %427 = vst [vmem:[%s35 + $0x30c] sm:%s27] %v426
      %v428 = vld [vmem:[%s34 + $0x308] sm:%s27]
      %429 = vst [vmem:[%s35 + $0x310] sm:%s27] %v428
      %v430 = vld [vmem:[%s34 + $0x318] sm:%s27]
      %431 = vst [vmem:[%s35 + $0x314] sm:%s27] %v430
      %v432 = vld [vmem:[%s34 + $0x30c] sm:%s27]
      %433 = vst [vmem:[%s35 + $0x318] sm:%s27] %v432
      %v434 = vld [vmem:[%s34 + $0x31c] sm:%s27]
      %435 = vst [vmem:[%s35 + $0x31c] sm:%s27] %v434
    $region30: #{model_forward.1} parent=24 // loop_footer
      %s33 = sadd.s32 1, %s29
    $region31: #{model_forward.1} parent=24 // loop_footer_branch
      %28 = sbr.rel target = $region27
    $region32: #{model_forward.1} parent=24 // loop_exit
      _
  $region25: #{model_forward.1} parent=0 // pred_fallthru
    _
  // Predicated region
  $region51: #{model_forward.1} parent=0 // pred_check
    _
  $region52: #{model_forward.1} parent=0 // pred_check_branch
    %865 = sbr.rel (0) target = $region54
  $region53: #{model_forward.1} parent=0 // pred_region
    %866 = vsyncadd [#allocation3], 12800
  $region54: #{model_forward.1} parent=0 // pred_fallthru
    _
  %v867 = vld [vmem:[%s0] sm:$0xff]
  %v868 = vld [vmem:[%s0 + $0x8] sm:$0xff]
  %v869 = vld [vmem:[%s0 + $0x10] sm:$0xff]
  %v870 = vld [vmem:[%s0 + $0x18] sm:$0xff]
  %v871 = vld [vmem:[%s0 + $0x20] sm:$0xff]
  %v872 = vld [vmem:[%s0 + $0x28] sm:$0xff]
  %v873 = vld [vmem:[%s0 + $0x30] sm:$0xff]
  %v874 = vld [vmem:[%s0 + $0x38] sm:$0xff]
  %v875 = vld [vmem:[%s0 + $0x40] sm:$0xff]
  %v876 = vld [vmem:[%s0 + $0x48] sm:$0xff]
  %v877 = vld [vmem:[%s0 + $0x50] sm:$0xff]
  %v878 = vld [vmem:[%s0 + $0x58] sm:$0xff]
  %v879 = vld [vmem:[%s0 + $0x60] sm:$0xff]
  %v880 = vld [vmem:[%s0 + $0x68] sm:$0xff]
  %v881 = vld [vmem:[%s0 + $0x70] sm:$0xff]
  %v882 = vld [vmem:[%s0 + $0x78] sm:$0xff]
  %v883 = vld [vmem:[%s0 + $0x80] sm:$0xff]
  %v884 = vld [vmem:[%s0 + $0x88] sm:$0xff]
  %v885 = vld [vmem:[%s0 + $0x90] sm:$0xff]
  %v886 = vld [vmem:[%s0 + $0x98] sm:$0xff]
  %v887 = vld [vmem:[%s0 + $0xa0] sm:$0xff]
  %v888 = vld [vmem:[%s0 + $0xa8] sm:$0xff]
  %v889 = vld [vmem:[%s0 + $0xb0] sm:$0xff]
  %v890 = vld [vmem:[%s0 + $0xb8] sm:$0xff]
  %v891 = vld [vmem:[%s0 + $0xc0] sm:$0xff]
  %v892 = vld [vmem:[%s0 + $0xc8] sm:$0xff]
  %v893 = vld [vmem:[%s0 + $0xd0] sm:$0xff]
  %v894 = vld [vmem:[%s0 + $0xd8] sm:$0xff]
  %v895 = vld [vmem:[%s0 + $0xe0] sm:$0xff]
  %v896 = vld [vmem:[%s0 + $0xe8] sm:$0xff]
  %v897 = vld [vmem:[%s0 + $0xf0] sm:$0xff]
  %v898 = vld [vmem:[%s0 + $0xf8] sm:$0xff]
  %v899 = vld [vmem:[%s0 + $0x100] sm:$0xff]
  %v900 = vld [vmem:[%s0 + $0x108] sm:$0xff]
  %v901 = vld [vmem:[%s0 + $0x110] sm:$0xff]
  %v902 = vld [vmem:[%s0 + $0x118] sm:$0xff]
  %v903 = vld [vmem:[%s0 + $0x120] sm:$0xff]
  %v904 = vld [vmem:[%s0 + $0x128] sm:$0xff]
  %v905 = vld [vmem:[%s0 + $0x130] sm:$0xff]
  %v906 = vld [vmem:[%s0 + $0x138] sm:$0xff]
  %v907 = vld [vmem:[%s0 + $0x140] sm:$0xff]
  %v908 = vld [vmem:[%s0 + $0x148] sm:$0xff]
  %v909 = vld [vmem:[%s0 + $0x150] sm:$0xff]
  %v910 = vld [vmem:[%s0 + $0x158] sm:$0xff]
  %v911 = vld [vmem:[%s0 + $0x160] sm:$0xff]
  %v912 = vld [vmem:[%s0 + $0x168] sm:$0xff]
  %v913 = vld [vmem:[%s0 + $0x170] sm:$0xff]
  %v914 = vld [vmem:[%s0 + $0x178] sm:$0xff]
  %v915 = vld [vmem:[%s0 + $0x180] sm:$0xff]
  %v916 = vld [vmem:[%s0 + $0x188] sm:$0xff]
  %v917 = vld [vmem:[%s1] sm:$0xff]
  %v918 = vld [vmem:[%s1 + $0x8] sm:$0xff]
  %v919 = vld [vmem:[%s1 + $0x10] sm:$0xff]
  %v920 = vld [vmem:[%s1 + $0x18] sm:$0xff]
  %v921 = vld [vmem:[%s1 + $0x20] sm:$0xff]
  %v922 = vld [vmem:[%s1 + $0x28] sm:$0xff]
  %v923 = vld [vmem:[%s1 + $0x30] sm:$0xff]
  %v924 = vld [vmem:[%s1 + $0x38] sm:$0xff]
  %v925 = vld [vmem:[%s1 + $0x40] sm:$0xff]
  %v926 = vld [vmem:[%s1 + $0x48] sm:$0xff]
  %v927 = vld [vmem:[%s1 + $0x50] sm:$0xff]
  %v928 = vld [vmem:[%s1 + $0x58] sm:$0xff]
  %v929 = vld [vmem:[%s1 + $0x60] sm:$0xff]
  %v930 = vld [vmem:[%s1 + $0x68] sm:$0xff]
  %v931 = vld [vmem:[%s1 + $0x70] sm:$0xff]
  %v932 = vld [vmem:[%s1 + $0x78] sm:$0xff]
  %v933 = vld [vmem:[%s1 + $0x80] sm:$0xff]
  %v934 = vld [vmem:[%s1 + $0x88] sm:$0xff]
  %v935 = vld [vmem:[%s1 + $0x90] sm:$0xff]
  %v936 = vld [vmem:[%s1 + $0x98] sm:$0xff]
  %v937 = vld [vmem:[%s1 + $0xa0] sm:$0xff]
  %v938 = vld [vmem:[%s1 + $0xa8] sm:$0xff]
  %v939 = vld [vmem:[%s1 + $0xb0] sm:$0xff]
  %v940 = vld [vmem:[%s1 + $0xb8] sm:$0xff]
  %v941 = vld [vmem:[%s1 + $0xc0] sm:$0xff]
  %v942 = vld [vmem:[%s1 + $0xc8] sm:$0xff]
  %v943 = vld [vmem:[%s1 + $0xd0] sm:$0xff]
  %v944 = vld [vmem:[%s1 + $0xd8] sm:$0xff]
  %v945 = vld [vmem:[%s1 + $0xe0] sm:$0xff]
  %v946 = vld [vmem:[%s1 + $0xe8] sm:$0xff]
  %v947 = vld [vmem:[%s1 + $0xf0] sm:$0xff]
  %v948 = vld [vmem:[%s1 + $0xf8] sm:$0xff]
  %v949 = vld [vmem:[%s1 + $0x100] sm:$0xff]
  %v950 = vld [vmem:[%s1 + $0x108] sm:$0xff]
  %v951 = vld [vmem:[%s1 + $0x110] sm:$0xff]
  %v952 = vld [vmem:[%s1 + $0x118] sm:$0xff]
  %v953 = vld [vmem:[%s1 + $0x120] sm:$0xff]
  %v954 = vld [vmem:[%s1 + $0x128] sm:$0xff]
  %v955 = vld [vmem:[%s1 + $0x130] sm:$0xff]
  %v956 = vld [vmem:[%s1 + $0x138] sm:$0xff]
  %v957 = vld [vmem:[%s1 + $0x140] sm:$0xff]
  %v958 = vld [vmem:[%s1 + $0x148] sm:$0xff]
  %v959 = vld [vmem:[%s1 + $0x150] sm:$0xff]
  %v960 = vld [vmem:[%s1 + $0x158] sm:$0xff]
  %v961 = vld [vmem:[%s1 + $0x160] sm:$0xff]
  %v962 = vld [vmem:[%s1 + $0x168] sm:$0xff]
  %v963 = vld [vmem:[%s1 + $0x170] sm:$0xff]
  %v964 = vld [vmem:[%s1 + $0x178] sm:$0xff]
  %v965 = vld [vmem:[%s1 + $0x180] sm:$0xff]
  %v966 = vld [vmem:[%s1 + $0x188] sm:$0xff]
  %v967 = vld [vmem:[%s3] sm:$0xff]
  %v968 = vld [vmem:[%s3 + $0x8] sm:$0xff]
  %v969 = vld [vmem:[%s3 + $0x10] sm:$0xff]
  %v970 = vld [vmem:[%s3 + $0x18] sm:$0xff]
  %v971 = vld [vmem:[%s3 + $0x20] sm:$0xff]
  %v972 = vld [vmem:[%s3 + $0x28] sm:$0xff]
  %v973 = vld [vmem:[%s3 + $0x30] sm:$0xff]
  %v974 = vld [vmem:[%s3 + $0x38] sm:$0xff]
  %v975 = vld [vmem:[%s3 + $0x40] sm:$0xff]
  %v976 = vld [vmem:[%s3 + $0x48] sm:$0xff]
  %v977 = vld [vmem:[%s3 + $0x50] sm:$0xff]
  %v978 = vld [vmem:[%s3 + $0x58] sm:$0xff]
  %v979 = vld [vmem:[%s3 + $0x60] sm:$0xff]
  %v980 = vld [vmem:[%s3 + $0x68] sm:$0xff]
  %v981 = vld [vmem:[%s3 + $0x70] sm:$0xff]
  %v982 = vld [vmem:[%s3 + $0x78] sm:$0xff]
  %v983 = vld [vmem:[%s3 + $0x80] sm:$0xff]
  %v984 = vld [vmem:[%s3 + $0x88] sm:$0xff]
  %v985 = vld [vmem:[%s3 + $0x90] sm:$0xff]
  %v986 = vld [vmem:[%s3 + $0x98] sm:$0xff]
  %v987 = vld [vmem:[%s3 + $0xa0] sm:$0xff]
  %v988 = vld [vmem:[%s3 + $0xa8] sm:$0xff]
  %v989 = vld [vmem:[%s3 + $0xb0] sm:$0xff]
  %v990 = vld [vmem:[%s3 + $0xb8] sm:$0xff]
  %v991 = vld [vmem:[%s3 + $0xc0] sm:$0xff]
  %v992 = vld [vmem:[%s3 + $0xc8] sm:$0xff]
  %v993 = vld [vmem:[%s3 + $0xd0] sm:$0xff]
  %v994 = vld [vmem:[%s3 + $0xd8] sm:$0xff]
  %v995 = vld [vmem:[%s3 + $0xe0] sm:$0xff]
  %v996 = vld [vmem:[%s3 + $0xe8] sm:$0xff]
  %v997 = vld [vmem:[%s3 + $0xf0] sm:$0xff]
  %v998 = vld [vmem:[%s3 + $0xf8] sm:$0xff]
  %v999 = vld [vmem:[%s3 + $0x100] sm:$0xff]
  %v1000 = vld [vmem:[%s3 + $0x108] sm:$0xff]
  %v1001 = vld [vmem:[%s3 + $0x110] sm:$0xff]
  %v1002 = vld [vmem:[%s3 + $0x118] sm:$0xff]
  %v1003 = vld [vmem:[%s3 + $0x120] sm:$0xff]
  %v1004 = vld [vmem:[%s3 + $0x128] sm:$0xff]
  %v1005 = vld [vmem:[%s3 + $0x130] sm:$0xff]
  %v1006 = vld [vmem:[%s3 + $0x138] sm:$0xff]
  %v1007 = vld [vmem:[%s3 + $0x140] sm:$0xff]
  %v1008 = vld [vmem:[%s3 + $0x148] sm:$0xff]
  %v1009 = vld [vmem:[%s3 + $0x150] sm:$0xff]
  %v1010 = vld [vmem:[%s3 + $0x158] sm:$0xff]
  %v1011 = vld [vmem:[%s3 + $0x160] sm:$0xff]
  %v1012 = vld [vmem:[%s3 + $0x168] sm:$0xff]
  %v1013 = vld [vmem:[%s3 + $0x170] sm:$0xff]
  %v1014 = vld [vmem:[%s3 + $0x178] sm:$0xff]
  %v1015 = vld [vmem:[%s3 + $0x180] sm:$0xff]
  %v1016 = vld [vmem:[%s3 + $0x188] sm:$0xff]
  %v1017 = vld [vmem:[%s2] sm:$0xff]
  %v1018 = vld [vmem:[%s2 + $0x8] sm:$0xff]
  %v1019 = vld [vmem:[%s2 + $0x10] sm:$0xff]
  %v1020 = vld [vmem:[%s2 + $0x18] sm:$0xff]
  %v1021 = vld [vmem:[%s2 + $0x20] sm:$0xff]
  %v1022 = vld [vmem:[%s2 + $0x28] sm:$0xff]
  %v1023 = vld [vmem:[%s2 + $0x30] sm:$0xff]
  %v1024 = vld [vmem:[%s2 + $0x38] sm:$0xff]
  %v1025 = vld [vmem:[%s2 + $0x40] sm:$0xff]
  %v1026 = vld [vmem:[%s2 + $0x48] sm:$0xff]
  %v1027 = vld [vmem:[%s2 + $0x50] sm:$0xff]
  %v1028 = vld [vmem:[%s2 + $0x58] sm:$0xff]
  %v1029 = vld [vmem:[%s2 + $0x60] sm:$0xff]
  %v1030 = vld [vmem:[%s2 + $0x68] sm:$0xff]
  %v1031 = vld [vmem:[%s2 + $0x70] sm:$0xff]
  %v1032 = vld [vmem:[%s2 + $0x78] sm:$0xff]
  %v1033 = vld [vmem:[%s2 + $0x80] sm:$0xff]
  %v1034 = vld [vmem:[%s2 + $0x88] sm:$0xff]
  %v1035 = vld [vmem:[%s2 + $0x90] sm:$0xff]
  %v1036 = vld [vmem:[%s2 + $0x98] sm:$0xff]
  %v1037 = vld [vmem:[%s2 + $0xa0] sm:$0xff]
  %v1038 = vld [vmem:[%s2 + $0xa8] sm:$0xff]
  %v1039 = vld [vmem:[%s2 + $0xb0] sm:$0xff]
  %v1040 = vld [vmem:[%s2 + $0xb8] sm:$0xff]
  %v1041 = vld [vmem:[%s2 + $0xc0] sm:$0xff]
  %v1042 = vld [vmem:[%s2 + $0xc8] sm:$0xff]
  %v1043 = vld [vmem:[%s2 + $0xd0] sm:$0xff]
  %v1044 = vld [vmem:[%s2 + $0xd8] sm:$0xff]
  %v1045 = vld [vmem:[%s2 + $0xe0] sm:$0xff]
  %v1046 = vld [vmem:[%s2 + $0xe8] sm:$0xff]
  %v1047 = vld [vmem:[%s2 + $0xf0] sm:$0xff]
  %v1048 = vld [vmem:[%s2 + $0xf8] sm:$0xff]
  %v1049 = vld [vmem:[%s2 + $0x100] sm:$0xff]
  %v1050 = vld [vmem:[%s2 + $0x108] sm:$0xff]
  %v1051 = vld [vmem:[%s2 + $0x110] sm:$0xff]
  %v1052 = vld [vmem:[%s2 + $0x118] sm:$0xff]
  %v1053 = vld [vmem:[%s2 + $0x120] sm:$0xff]
  %v1054 = vld [vmem:[%s2 + $0x128] sm:$0xff]
  %v1055 = vld [vmem:[%s2 + $0x130] sm:$0xff]
  %v1056 = vld [vmem:[%s2 + $0x138] sm:$0xff]
  %v1057 = vld [vmem:[%s2 + $0x140] sm:$0xff]
  %v1058 = vld [vmem:[%s2 + $0x148] sm:$0xff]
  %v1059 = vld [vmem:[%s2 + $0x150] sm:$0xff]
  %v1060 = vld [vmem:[%s2 + $0x158] sm:$0xff]
  %v1061 = vld [vmem:[%s2 + $0x160] sm:$0xff]
  %v1062 = vld [vmem:[%s2 + $0x168] sm:$0xff]
  %v1063 = vld [vmem:[%s2 + $0x170] sm:$0xff]
  %v1064 = vld [vmem:[%s2 + $0x178] sm:$0xff]
  %v1065 = vld [vmem:[%s2 + $0x180] sm:$0xff]
  %v1066 = vld [vmem:[%s2 + $0x188] sm:$0xff]
  %v1067 = vld [vmem:[%s2 + $0x190] sm:$0xff]
  %v1068 = vld [vmem:[%s2 + $0x198] sm:$0xff]
  %v1069 = vld [vmem:[%s2 + $0x1a0] sm:$0xff]
  %v1070 = vld [vmem:[%s2 + $0x1a8] sm:$0xff]
  %v1071 = vld [vmem:[%s2 + $0x1b0] sm:$0xff]
  %v1072 = vld [vmem:[%s2 + $0x1b8] sm:$0xff]
  %v1073 = vld [vmem:[%s2 + $0x1c0] sm:$0xff]
  %v1074 = vld [vmem:[%s2 + $0x1c8] sm:$0xff]
  %v1075 = vld [vmem:[%s2 + $0x1d0] sm:$0xff]
  %v1076 = vld [vmem:[%s2 + $0x1d8] sm:$0xff]
  %v1077 = vld [vmem:[%s2 + $0x1e0] sm:$0xff]
  %v1078 = vld [vmem:[%s2 + $0x1e8] sm:$0xff]
  %v1079 = vld [vmem:[%s2 + $0x1f0] sm:$0xff]
  %v1080 = vld [vmem:[%s2 + $0x1f8] sm:$0xff]
  %v1081 = vld [vmem:[%s2 + $0x200] sm:$0xff]
  %v1082 = vld [vmem:[%s2 + $0x208] sm:$0xff]
  %v1083 = vld [vmem:[%s2 + $0x210] sm:$0xff]
  %v1084 = vld [vmem:[%s2 + $0x218] sm:$0xff]
  %v1085 = vld [vmem:[%s2 + $0x220] sm:$0xff]
  %v1086 = vld [vmem:[%s2 + $0x228] sm:$0xff]
  %v1087 = vld [vmem:[%s2 + $0x230] sm:$0xff]
  %v1088 = vld [vmem:[%s2 + $0x238] sm:$0xff]
  %v1089 = vld [vmem:[%s2 + $0x240] sm:$0xff]
  %v1090 = vld [vmem:[%s2 + $0x248] sm:$0xff]
  %v1091 = vld [vmem:[%s2 + $0x250] sm:$0xff]
  %v1092 = vld [vmem:[%s2 + $0x258] sm:$0xff]
  %v1093 = vld [vmem:[%s2 + $0x260] sm:$0xff]
  %v1094 = vld [vmem:[%s2 + $0x268] sm:$0xff]
  %v1095 = vld [vmem:[%s2 + $0x270] sm:$0xff]
  %v1096 = vld [vmem:[%s2 + $0x278] sm:$0xff]
  %v1097 = vld [vmem:[%s2 + $0x280] sm:$0xff]
  %v1098 = vld [vmem:[%s2 + $0x288] sm:$0xff]
  %v1099 = vld [vmem:[%s2 + $0x290] sm:$0xff]
  %v1100 = vld [vmem:[%s2 + $0x298] sm:$0xff]
  %v1101 = vld [vmem:[%s2 + $0x2a0] sm:$0xff]
  %v1102 = vld [vmem:[%s2 + $0x2a8] sm:$0xff]
  %v1103 = vld [vmem:[%s2 + $0x2b0] sm:$0xff]
  %v1104 = vld [vmem:[%s2 + $0x2b8] sm:$0xff]
  %v1105 = vld [vmem:[%s2 + $0x2c0] sm:$0xff]
  %v1106 = vld [vmem:[%s2 + $0x2c8] sm:$0xff]
  %v1107 = vld [vmem:[%s2 + $0x2d0] sm:$0xff]
  %v1108 = vld [vmem:[%s2 + $0x2d8] sm:$0xff]
  %v1109 = vld [vmem:[%s2 + $0x2e0] sm:$0xff]
  %v1110 = vld [vmem:[%s2 + $0x2e8] sm:$0xff]
  %v1111 = vld [vmem:[%s2 + $0x2f0] sm:$0xff]
  %v1112 = vld [vmem:[%s2 + $0x2f8] sm:$0xff]
  %v1113 = vld [vmem:[%s2 + $0x300] sm:$0xff]
  %v1114 = vld [vmem:[%s2 + $0x308] sm:$0xff]
  %v1115 = vld [vmem:[%s2 + $0x310] sm:$0xff]
  %v1116 = vld [vmem:[%s2 + $0x318] sm:$0xff]
  %v1117 = vpack.c.bf16 %v868, %v867
  %v1118 = vpack.c.bf16 %v870, %v869
  %v1119 = vpack.c.bf16 %v872, %v871
  %v1120 = vpack.c.bf16 %v874, %v873
  %v1121 = vpack.c.bf16 %v876, %v875
  %v1122 = vpack.c.bf16 %v878, %v877
  %v1123 = vpack.c.bf16 %v880, %v879
  %v1124 = vpack.c.bf16 %v882, %v881
  %v1125 = vpack.c.bf16 %v884, %v883
  %v1126 = vpack.c.bf16 %v886, %v885
  %v1127 = vpack.c.bf16 %v888, %v887
  %v1128 = vpack.c.bf16 %v890, %v889
  %v1129 = vpack.c.bf16 %v892, %v891
  %v1130 = vpack.c.bf16 %v894, %v893
  %v1131 = vpack.c.bf16 %v896, %v895
  %v1132 = vpack.c.bf16 %v898, %v897
  %v1133 = vpack.c.bf16 %v900, %v899
  %v1134 = vpack.c.bf16 %v902, %v901
  %v1135 = vpack.c.bf16 %v904, %v903
  %v1136 = vpack.c.bf16 %v906, %v905
  %v1137 = vpack.c.bf16 %v908, %v907
  %v1138 = vpack.c.bf16 %v910, %v909
  %v1139 = vpack.c.bf16 %v912, %v911
  %v1140 = vpack.c.bf16 %v914, %v913
  %v1141 = vpack.c.bf16 %v916, %v915
  %v1242 = vunpack.c.l.b16 %v1017
  %v1243 = vunpack.c.h.b16 %v1017
  %v1244 = vunpack.c.l.b16 %v1018
  %v1245 = vunpack.c.h.b16 %v1018
  %v1246 = vunpack.c.l.b16 %v1019
  %v1247 = vunpack.c.h.b16 %v1019
  %v1248 = vunpack.c.l.b16 %v1020
  %v1249 = vunpack.c.h.b16 %v1020
  %v1250 = vunpack.c.l.b16 %v1021
  %v1251 = vunpack.c.h.b16 %v1021
  %v1252 = vunpack.c.l.b16 %v1022
  %v1253 = vunpack.c.h.b16 %v1022
  %v1254 = vunpack.c.l.b16 %v1023
  %v1255 = vunpack.c.h.b16 %v1023
  %v1256 = vunpack.c.l.b16 %v1024
  %v1257 = vunpack.c.h.b16 %v1024
  %v1258 = vunpack.c.l.b16 %v1025
  %v1259 = vunpack.c.h.b16 %v1025
  %v1260 = vunpack.c.l.b16 %v1026
  %v1261 = vunpack.c.h.b16 %v1026
  %v1262 = vunpack.c.l.b16 %v1027
  %v1263 = vunpack.c.h.b16 %v1027
  %v1264 = vunpack.c.l.b16 %v1028
  %v1265 = vunpack.c.h.b16 %v1028
  %v1266 = vunpack.c.l.b16 %v1029
  %v1267 = vunpack.c.h.b16 %v1029
  %v1268 = vunpack.c.l.b16 %v1030
  %v1269 = vunpack.c.h.b16 %v1030
  %v1270 = vunpack.c.l.b16 %v1031
  %v1271 = vunpack.c.h.b16 %v1031
  %v1272 = vunpack.c.l.b16 %v1032
  %v1273 = vunpack.c.h.b16 %v1032
  %v1274 = vunpack.c.l.b16 %v1033
  %v1275 = vunpack.c.h.b16 %v1033
  %v1276 = vunpack.c.l.b16 %v1034
  %v1277 = vunpack.c.h.b16 %v1034
  %v1278 = vunpack.c.l.b16 %v1035
  %v1279 = vunpack.c.h.b16 %v1035
  %v1280 = vunpack.c.l.b16 %v1036
  %v1281 = vunpack.c.h.b16 %v1036
  %v1282 = vunpack.c.l.b16 %v1037
  %v1283 = vunpack.c.h.b16 %v1037
  %v1284 = vunpack.c.l.b16 %v1038
  %v1285 = vunpack.c.h.b16 %v1038
  %v1286 = vunpack.c.l.b16 %v1039
  %v1287 = vunpack.c.h.b16 %v1039
  %v1288 = vunpack.c.l.b16 %v1040
  %v1289 = vunpack.c.h.b16 %v1040
  %v1290 = vunpack.c.l.b16 %v1041
  %v1291 = vunpack.c.h.b16 %v1041
  %v1292 = vunpack.c.l.b16 %v1042
  %v1293 = vunpack.c.h.b16 %v1042
  %v1294 = vunpack.c.l.b16 %v1043
  %v1295 = vunpack.c.h.b16 %v1043
  %v1296 = vunpack.c.l.b16 %v1044
  %v1297 = vunpack.c.h.b16 %v1044
  %v1298 = vunpack.c.l.b16 %v1045
  %v1299 = vunpack.c.h.b16 %v1045
  %v1300 = vunpack.c.l.b16 %v1046
  %v1301 = vunpack.c.h.b16 %v1046
  %v1302 = vunpack.c.l.b16 %v1047
  %v1303 = vunpack.c.h.b16 %v1047
  %v1304 = vunpack.c.l.b16 %v1048
  %v1305 = vunpack.c.h.b16 %v1048
  %v1306 = vunpack.c.l.b16 %v1049
  %v1307 = vunpack.c.h.b16 %v1049
  %v1308 = vunpack.c.l.b16 %v1050
  %v1309 = vunpack.c.h.b16 %v1050
  %v1310 = vunpack.c.l.b16 %v1051
  %v1311 = vunpack.c.h.b16 %v1051
  %v1312 = vunpack.c.l.b16 %v1052
  %v1313 = vunpack.c.h.b16 %v1052
  %v1314 = vunpack.c.l.b16 %v1053
  %v1315 = vunpack.c.h.b16 %v1053
  %v1316 = vunpack.c.l.b16 %v1054
  %v1317 = vunpack.c.h.b16 %v1054
  %v1318 = vunpack.c.l.b16 %v1055
  %v1319 = vunpack.c.h.b16 %v1055
  %v1320 = vunpack.c.l.b16 %v1056
  %v1321 = vunpack.c.h.b16 %v1056
  %v1322 = vunpack.c.l.b16 %v1057
  %v1323 = vunpack.c.h.b16 %v1057
  %v1324 = vunpack.c.l.b16 %v1058
  %v1325 = vunpack.c.h.b16 %v1058
  %v1326 = vunpack.c.l.b16 %v1059
  %v1327 = vunpack.c.h.b16 %v1059
  %v1328 = vunpack.c.l.b16 %v1060
  %v1329 = vunpack.c.h.b16 %v1060
  %v1330 = vunpack.c.l.b16 %v1061
  %v1331 = vunpack.c.h.b16 %v1061
  %v1332 = vunpack.c.l.b16 %v1062
  %v1333 = vunpack.c.h.b16 %v1062
  %v1334 = vunpack.c.l.b16 %v1063
  %v1335 = vunpack.c.h.b16 %v1063
  %v1336 = vunpack.c.l.b16 %v1064
  %v1337 = vunpack.c.h.b16 %v1064
  %v1338 = vunpack.c.l.b16 %v1065
  %v1339 = vunpack.c.h.b16 %v1065
  %v1340 = vunpack.c.l.b16 %v1066
  %v1341 = vunpack.c.h.b16 %v1066
  %v1342 = vunpack.c.l.b16 %v1067
  %v1343 = vunpack.c.h.b16 %v1067
  %v1344 = vunpack.c.l.b16 %v1068
  %v1345 = vunpack.c.h.b16 %v1068
  %v1346 = vunpack.c.l.b16 %v1069
  %v1347 = vunpack.c.h.b16 %v1069
  %v1348 = vunpack.c.l.b16 %v1070
  %v1349 = vunpack.c.h.b16 %v1070
  %v1350 = vunpack.c.l.b16 %v1071
  %v1351 = vunpack.c.h.b16 %v1071
  %v1352 = vunpack.c.l.b16 %v1072
  %v1353 = vunpack.c.h.b16 %v1072
  %v1354 = vunpack.c.l.b16 %v1073
  %v1355 = vunpack.c.h.b16 %v1073
  %v1356 = vunpack.c.l.b16 %v1074
  %v1357 = vunpack.c.h.b16 %v1074
  %v1358 = vunpack.c.l.b16 %v1075
  %v1359 = vunpack.c.h.b16 %v1075
  %v1360 = vunpack.c.l.b16 %v1076
  %v1361 = vunpack.c.h.b16 %v1076
  %v1362 = vunpack.c.l.b16 %v1077
  %v1363 = vunpack.c.h.b16 %v1077
  %v1364 = vunpack.c.l.b16 %v1078
  %v1365 = vunpack.c.h.b16 %v1078
  %v1366 = vunpack.c.l.b16 %v1079
  %v1367 = vunpack.c.h.b16 %v1079
  %v1368 = vunpack.c.l.b16 %v1080
  %v1369 = vunpack.c.h.b16 %v1080
  %v1370 = vunpack.c.l.b16 %v1081
  %v1371 = vunpack.c.h.b16 %v1081
  %v1372 = vunpack.c.l.b16 %v1082
  %v1373 = vunpack.c.h.b16 %v1082
  %v1374 = vunpack.c.l.b16 %v1083
  %v1375 = vunpack.c.h.b16 %v1083
  %v1376 = vunpack.c.l.b16 %v1084
  %v1377 = vunpack.c.h.b16 %v1084
  %v1378 = vunpack.c.l.b16 %v1085
  %v1379 = vunpack.c.h.b16 %v1085
  %v1380 = vunpack.c.l.b16 %v1086
  %v1381 = vunpack.c.h.b16 %v1086
  %v1382 = vunpack.c.l.b16 %v1087
  %v1383 = vunpack.c.h.b16 %v1087
  %v1384 = vunpack.c.l.b16 %v1088
  %v1385 = vunpack.c.h.b16 %v1088
  %v1386 = vunpack.c.l.b16 %v1089
  %v1387 = vunpack.c.h.b16 %v1089
  %v1388 = vunpack.c.l.b16 %v1090
  %v1389 = vunpack.c.h.b16 %v1090
  %v1390 = vunpack.c.l.b16 %v1091
  %v1391 = vunpack.c.h.b16 %v1091
  %v1392 = vunpack.c.l.b16 %v1092
  %v1393 = vunpack.c.h.b16 %v1092
  %v1394 = vunpack.c.l.b16 %v1093
  %v1395 = vunpack.c.h.b16 %v1093
  %v1396 = vunpack.c.l.b16 %v1094
  %v1397 = vunpack.c.h.b16 %v1094
  %v1398 = vunpack.c.l.b16 %v1095
  %v1399 = vunpack.c.h.b16 %v1095
  %v1400 = vunpack.c.l.b16 %v1096
  %v1401 = vunpack.c.h.b16 %v1096
  %v1402 = vunpack.c.l.b16 %v1097
  %v1403 = vunpack.c.h.b16 %v1097
  %v1404 = vunpack.c.l.b16 %v1098
  %v1405 = vunpack.c.h.b16 %v1098
  %v1406 = vunpack.c.l.b16 %v1099
  %v1407 = vunpack.c.h.b16 %v1099
  %v1408 = vunpack.c.l.b16 %v1100
  %v1409 = vunpack.c.h.b16 %v1100
  %v1410 = vunpack.c.l.b16 %v1101
  %v1411 = vunpack.c.h.b16 %v1101
  %v1412 = vunpack.c.l.b16 %v1102
  %v1413 = vunpack.c.h.b16 %v1102
  %v1414 = vunpack.c.l.b16 %v1103
  %v1415 = vunpack.c.h.b16 %v1103
  %v1416 = vunpack.c.l.b16 %v1104
  %v1417 = vunpack.c.h.b16 %v1104
  %v1418 = vunpack.c.l.b16 %v1105
  %v1419 = vunpack.c.h.b16 %v1105
  %v1420 = vunpack.c.l.b16 %v1106
  %v1421 = vunpack.c.h.b16 %v1106
  %v1422 = vunpack.c.l.b16 %v1107
  %v1423 = vunpack.c.h.b16 %v1107
  %v1424 = vunpack.c.l.b16 %v1108
  %v1425 = vunpack.c.h.b16 %v1108
  %v1426 = vunpack.c.l.b16 %v1109
  %v1427 = vunpack.c.h.b16 %v1109
  %v1428 = vunpack.c.l.b16 %v1110
  %v1429 = vunpack.c.h.b16 %v1110
  %v1430 = vunpack.c.l.b16 %v1111
  %v1431 = vunpack.c.h.b16 %v1111
  %v1432 = vunpack.c.l.b16 %v1112
  %v1433 = vunpack.c.h.b16 %v1112
  %v1434 = vunpack.c.l.b16 %v1113
  %v1435 = vunpack.c.h.b16 %v1113
  %v1436 = vunpack.c.l.b16 %v1114
  %v1437 = vunpack.c.h.b16 %v1114
  %v1438 = vunpack.c.l.b16 %v1115
  %v1439 = vunpack.c.h.b16 %v1115
  %v1440 = vunpack.c.l.b16 %v1116
  %v1441 = vunpack.c.h.b16 %v1116
  %v1442 = vpack.c.b16 %v1246, %v1242
  %v1443 = vpack.c.b16 %v1247, %v1243
  %v1444 = vpack.c.b16 %v1248, %v1244
  %v1445 = vpack.c.b16 %v1249, %v1245
  %v1446 = vpack.c.b16 %v1254, %v1250
  %v1447 = vpack.c.b16 %v1255, %v1251
  %v1448 = vpack.c.b16 %v1256, %v1252
  %v1449 = vpack.c.b16 %v1257, %v1253
  %v1450 = vpack.c.b16 %v1262, %v1258
  %v1451 = vpack.c.b16 %v1263, %v1259
  %v1452 = vpack.c.b16 %v1264, %v1260
  %v1453 = vpack.c.b16 %v1265, %v1261
  %v1454 = vpack.c.b16 %v1270, %v1266
  %v1455 = vpack.c.b16 %v1271, %v1267
  %v1456 = vpack.c.b16 %v1272, %v1268
  %v1457 = vpack.c.b16 %v1273, %v1269
  %v1458 = vpack.c.b16 %v1278, %v1274
  %v1459 = vpack.c.b16 %v1279, %v1275
  %v1460 = vpack.c.b16 %v1280, %v1276
  %v1461 = vpack.c.b16 %v1281, %v1277
  %v1462 = vpack.c.b16 %v1286, %v1282
  %v1463 = vpack.c.b16 %v1287, %v1283
  %v1464 = vpack.c.b16 %v1288, %v1284
  %v1465 = vpack.c.b16 %v1289, %v1285
  %v1466 = vpack.c.b16 %v1294, %v1290
  %v1467 = vpack.c.b16 %v1295, %v1291
  %v1468 = vpack.c.b16 %v1296, %v1292
  %v1469 = vpack.c.b16 %v1297, %v1293
  %v1470 = vpack.c.b16 %v1302, %v1298
  %v1471 = vpack.c.b16 %v1303, %v1299
  %v1472 = vpack.c.b16 %v1304, %v1300
  %v1473 = vpack.c.b16 %v1305, %v1301
  %v1474 = vpack.c.b16 %v1310, %v1306
  %v1475 = vpack.c.b16 %v1311, %v1307
  %v1476 = vpack.c.b16 %v1312, %v1308
  %v1477 = vpack.c.b16 %v1313, %v1309
  %v1478 = vpack.c.b16 %v1318, %v1314
  %v1479 = vpack.c.b16 %v1319, %v1315
  %v1480 = vpack.c.b16 %v1320, %v1316
  %v1481 = vpack.c.b16 %v1321, %v1317
  %v1482 = vpack.c.b16 %v1326, %v1322
  %v1483 = vpack.c.b16 %v1327, %v1323
  %v1484 = vpack.c.b16 %v1328, %v1324
  %v1485 = vpack.c.b16 %v1329, %v1325
  %v1486 = vpack.c.b16 %v1334, %v1330
  %v1487 = vpack.c.b16 %v1335, %v1331
  %v1488 = vpack.c.b16 %v1336, %v1332
  %v1489 = vpack.c.b16 %v1337, %v1333
  %v1490 = vpack.c.b16 %v1342, %v1338
  %v1491 = vpack.c.b16 %v1343, %v1339
  %v1492 = vpack.c.b16 %v1344, %v1340
  %v1493 = vpack.c.b16 %v1345, %v1341
  %v1494 = vpack.c.b16 %v1350, %v1346
  %v1495 = vpack.c.b16 %v1351, %v1347
  %v1496 = vpack.c.b16 %v1352, %v1348
  %v1497 = vpack.c.b16 %v1353, %v1349
  %v1498 = vpack.c.b16 %v1358, %v1354
  %v1499 = vpack.c.b16 %v1359, %v1355
  %v1500 = vpack.c.b16 %v1360, %v1356
  %v1501 = vpack.c.b16 %v1361, %v1357
  %v1502 = vpack.c.b16 %v1366, %v1362
  %v1503 = vpack.c.b16 %v1367, %v1363
  %v1504 = vpack.c.b16 %v1368, %v1364
  %v1505 = vpack.c.b16 %v1369, %v1365
  %v1506 = vpack.c.b16 %v1374, %v1370
  %v1507 = vpack.c.b16 %v1375, %v1371
  %v1508 = vpack.c.b16 %v1376, %v1372
  %v1509 = vpack.c.b16 %v1377, %v1373
  %v1510 = vpack.c.b16 %v1382, %v1378
  %v1511 = vpack.c.b16 %v1383, %v1379
  %v1512 = vpack.c.b16 %v1384, %v1380
  %v1513 = vpack.c.b16 %v1385, %v1381
  %v1514 = vpack.c.b16 %v1390, %v1386
  %v1515 = vpack.c.b16 %v1391, %v1387
  %v1516 = vpack.c.b16 %v1392, %v1388
  %v1517 = vpack.c.b16 %v1393, %v1389
  %v1518 = vpack.c.b16 %v1398, %v1394
  %v1519 = vpack.c.b16 %v1399, %v1395
  %v1520 = vpack.c.b16 %v1400, %v1396
  %v1521 = vpack.c.b16 %v1401, %v1397
  %v1522 = vpack.c.b16 %v1406, %v1402
  %v1523 = vpack.c.b16 %v1407, %v1403
  %v1524 = vpack.c.b16 %v1408, %v1404
  %v1525 = vpack.c.b16 %v1409, %v1405
  %v1526 = vpack.c.b16 %v1414, %v1410
  %v1527 = vpack.c.b16 %v1415, %v1411
  %v1528 = vpack.c.b16 %v1416, %v1412
  %v1529 = vpack.c.b16 %v1417, %v1413
  %v1530 = vpack.c.b16 %v1422, %v1418
  %v1531 = vpack.c.b16 %v1423, %v1419
  %v1532 = vpack.c.b16 %v1424, %v1420
  %v1533 = vpack.c.b16 %v1425, %v1421
  %v1534 = vpack.c.b16 %v1430, %v1426
  %v1535 = vpack.c.b16 %v1431, %v1427
  %v1536 = vpack.c.b16 %v1432, %v1428
  %v1537 = vpack.c.b16 %v1433, %v1429
  %v1538 = vpack.c.b16 %v1438, %v1434
  %v1539 = vpack.c.b16 %v1439, %v1435
  %v1540 = vpack.c.b16 %v1440, %v1436
  %v1541 = vpack.c.b16 %v1441, %v1437
  %vm1617 = vcmask 130048
  %v1619 = vsel %vm1617, %v1445, 0
  %v1622 = vsel %vm1617, %v1449, 0
  %v1625 = vsel %vm1617, %v1453, 0
  %v1628 = vsel %vm1617, %v1457, 0
  %v1631 = vsel %vm1617, %v1461, 0
  %v1634 = vsel %vm1617, %v1465, 0
  %v1637 = vsel %vm1617, %v1469, 0
  %v1640 = vsel %vm1617, %v1473, 0
  %v1643 = vsel %vm1617, %v1477, 0
  %v1646 = vsel %vm1617, %v1481, 0
  %v1649 = vsel %vm1617, %v1485, 0
  %v1652 = vsel %vm1617, %v1489, 0
  %v1655 = vsel %vm1617, %v1493, 0
  %v1658 = vsel %vm1617, %v1497, 0
  %v1661 = vsel %vm1617, %v1501, 0
  %v1664 = vsel %vm1617, %v1505, 0
  %v1667 = vsel %vm1617, %v1509, 0
  %v1670 = vsel %vm1617, %v1513, 0
  %v1673 = vsel %vm1617, %v1517, 0
  %v1676 = vsel %vm1617, %v1521, 0
  %v1679 = vsel %vm1617, %v1525, 0
  %v1682 = vsel %vm1617, %v1529, 0
  %v1685 = vsel %vm1617, %v1533, 0
  %v1688 = vsel %vm1617, %v1537, 0
  %v1691 = vsel %vm1617, %v1541, 0
  %1693 = vmatprep.subr.bf16.mxu0 0
  %1694 = vmatpush1.bf16.msra.mxu0 %v1117
  %1695 = vmatprep.subr.bf16.mxu0 0
  %1696 = vmatpush1.bf16.msra.mxu0 %v1118
  %1697 = vmatprep.subr.bf16.mxu0 0
  %1698 = vmatpush1.bf16.msra.mxu0 %v1119
  %1699 = vmatprep.subr.bf16.mxu0 0
  %1700 = vmatpush1.bf16.msra.mxu0 %v1120
  %1701 = vmatprep.subr.bf16.mxu0 0
  %1702 = vmatpush1.bf16.msra.mxu0 %v1121
  %1703 = vmatprep.subr.bf16.mxu0 0
  %1704 = vmatpush1.bf16.msra.mxu0 %v1122
  %1705 = vmatprep.subr.bf16.mxu0 0
  %1706 = vmatpush1.bf16.msra.mxu0 %v1123
  %1707 = vmatprep.subr.bf16.mxu0 0
  %1708 = vmatpush1.bf16.msra.mxu0 %v1124
  %1709 = vmatprep.subr.bf16.mxu0 0
  %1710 = vmatpush1.bf16.msra.mxu0 %v1125
  %1711 = vmatprep.subr.bf16.mxu0 0
  %1712 = vmatpush1.bf16.msra.mxu0 %v1126
  %1713 = vmatprep.subr.bf16.mxu0 0
  %1714 = vmatpush1.bf16.msra.mxu0 %v1127
  %1715 = vmatprep.subr.bf16.mxu0 0
  %1716 = vmatpush1.bf16.msra.mxu0 %v1128
  %1717 = vmatprep.subr.bf16.mxu0 0
  %1718 = vmatpush1.bf16.msra.mxu0 %v1129
  %1719 = vmatprep.subr.bf16.mxu0 0
  %1720 = vmatpush1.bf16.msra.mxu0 %v1130
  %1721 = vmatprep.subr.bf16.mxu0 0
  %1722 = vmatpush1.bf16.msra.mxu0 %v1131
  %1723 = vmatprep.subr.bf16.mxu0 0
  %1724 = vmatpush1.bf16.msra.mxu0 %v1132
  %1725 = vmatprep.mubr.bf16.mxu0 %v1443
  %1726 = vmatmul.mubr.bf16.gmra.mrb[0].mxu0 %v1442
  %v1727 = vpop.f32.mrb[0].mxu0
  %v1728 = vadd.f32 0.0, %v1727
  %v1729 = vpop.f32.mrb[0].mxu0
  %v1730 = vpop.f32.mrb[0].mxu0
  %v1731 = vadd.f32 0.0, %v1730
  %v1732 = vpop.f32.mrb[0].mxu0
  %1733 = vmatprep.mubr.bf16.mxu0 %v1447
  %1734 = vmatmul.mubr.bf16.gmra.mrb[0].mxu0 %v1446
  %v1735 = vpop.f32.mrb[0].mxu0
  %v1736 = vadd.f32 0.0, %v1735
  %v1737 = vpop.f32.mrb[0].mxu0
  %v1738 = vpop.f32.mrb[0].mxu0
  %v1739 = vadd.f32 0.0, %v1738
  %v1740 = vpop.f32.mrb[0].mxu0
  %1741 = vmatprep.mubr.bf16.mxu0 %v1451
  %1742 = vmatmul.mubr.bf16.gmra.mrb[0].mxu0 %v1450
  %v1743 = vpop.f32.mrb[0].mxu0
  %v1744 = vadd.f32 0.0, %v1743
  %v1745 = vpop.f32.mrb[0].mxu0
  %v1746 = vpop.f32.mrb[0].mxu0
  %v1747 = vadd.f32 0.0, %v1746
  %v1748 = vpop.f32.mrb[0].mxu0
  %1749 = vmatprep.mubr.bf16.mxu0 %v1455
  %1750 = vmatmul.mubr.bf16.gmra.mrb[0].mxu0 %v1454
  %v1751 = vpop.f32.mrb[0].mxu0
  %v1752 = vadd.f32 0.0, %v1751
  %v1753 = vpop.f32.mrb[0].mxu0
  %v1754 = vpop.f32.mrb[0].mxu0
  %v1755 = vadd.f32 0.0, %v1754
  %v1756 = vpop.f32.mrb[0].mxu0
  %1757 = vmatprep.mubr.bf16.mxu0 %v1459
  %1758 = vmatmul.mubr.bf16.gmra.mrb[0].mxu0 %v1458
  %v1759 = vpop.f32.mrb[0].mxu0
  %v1760 = vadd.f32 0.0, %v1759
  %v1761 = vpop.f32.mrb[0].mxu0
  %v1762 = vpop.f32.mrb[0].mxu0
  %v1763 = vadd.f32 0.0, %v1762
  %v1764 = vpop.f32.mrb[0].mxu0
  %1765 = vmatprep.mubr.bf16.mxu0 %v1463
  %1766 = vmatmul.mubr.bf16.gmra.mrb[0].mxu0 %v1462
  %v1767 = vpop.f32.mrb[0].mxu0
  %v1768 = vadd.f32 0.0, %v1767
  %v1769 = vpop.f32.mrb[0].mxu0
  %v1770 = vpop.f32.mrb[0].mxu0
  %v1771 = vadd.f32 0.0, %v1770
  %v1772 = vpop.f32.mrb[0].mxu0
  %1773 = vmatprep.mubr.bf16.mxu0 %v1467
  %1774 = vmatmul.mubr.bf16.gmra.mrb[0].mxu0 %v1466
  %v1775 = vpop.f32.mrb[0].mxu0
  %v1776 = vadd.f32 0.0, %v1775
  %v1777 = vpop.f32.mrb[0].mxu0
  %v1778 = vpop.f32.mrb[0].mxu0
  %v1779 = vadd.f32 0.0, %v1778
  %v1780 = vpop.f32.mrb[0].mxu0
  %1781 = vmatprep.mubr.bf16.mxu0 %v1471
  %1782 = vmatmul.mubr.bf16.gmra.mrb[0].mxu0 %v1470
  %v1783 = vpop.f32.mrb[0].mxu0
  %v1784 = vadd.f32 0.0, %v1783
  %v1785 = vpop.f32.mrb[0].mxu0
  %v1786 = vpop.f32.mrb[0].mxu0
  %v1787 = vadd.f32 0.0, %v1786
  %v1788 = vpop.f32.mrb[0].mxu0
  %1789 = vmatprep.mubr.bf16.mxu0 %v1475
  %1790 = vmatmul.mubr.bf16.gmra.mrb[0].mxu0 %v1474
  %v1791 = vpop.f32.mrb[0].mxu0
  %v1792 = vadd.f32 0.0, %v1791
  %v1793 = vpop.f32.mrb[0].mxu0
  %v1794 = vpop.f32.mrb[0].mxu0
  %v1795 = vadd.f32 0.0, %v1794
  %v1796 = vpop.f32.mrb[0].mxu0
  %1797 = vmatprep.mubr.bf16.mxu0 %v1479
  %1798 = vmatmul.mubr.bf16.gmra.mrb[0].mxu0 %v1478
  %v1799 = vpop.f32.mrb[0].mxu0
  %v1800 = vadd.f32 0.0, %v1799
  %v1801 = vpop.f32.mrb[0].mxu0
  %v1802 = vpop.f32.mrb[0].mxu0
  %v1803 = vadd.f32 0.0, %v1802
  %v1804 = vpop.f32.mrb[0].mxu0
  %1805 = vmatprep.mubr.bf16.mxu0 %v1483
  %1806 = vmatmul.mubr.bf16.gmra.mrb[0].mxu0 %v1482
  %v1807 = vpop.f32.mrb[0].mxu0
  %v1808 = vadd.f32 0.0, %v1807
  %v1809 = vpop.f32.mrb[0].mxu0
  %v1810 = vpop.f32.mrb[0].mxu0
  %v1811 = vadd.f32 0.0, %v1810
  %v1812 = vpop.f32.mrb[0].mxu0
  %1813 = vmatprep.mubr.bf16.mxu0 %v1487
  %1814 = vmatmul.mubr.bf16.gmra.mrb[0].mxu0 %v1486
  %v1815 = vpop.f32.mrb[0].mxu0
  %v1816 = vadd.f32 0.0, %v1815
  %v1817 = vpop.f32.mrb[0].mxu0
  %v1818 = vpop.f32.mrb[0].mxu0
  %v1819 = vadd.f32 0.0, %v1818
  %v1820 = vpop.f32.mrb[0].mxu0
  %1821 = vmatprep.mubr.bf16.mxu0 %v1491
  %1822 = vmatmul.mubr.bf16.gmra.mrb[0].mxu0 %v1490
  %v1823 = vpop.f32.mrb[0].mxu0
  %v1824 = vadd.f32 0.0, %v1823
  %v1825 = vpop.f32.mrb[0].mxu0
  %v1826 = vpop.f32.mrb[0].mxu0
  %v1827 = vadd.f32 0.0, %v1826
  %v1828 = vpop.f32.mrb[0].mxu0
  %1829 = vmatprep.mubr.bf16.mxu0 %v1495
  %1830 = vmatmul.mubr.bf16.gmra.mrb[0].mxu0 %v1494
  %v1831 = vpop.f32.mrb[0].mxu0
  %v1832 = vadd.f32 0.0, %v1831
  %v1833 = vpop.f32.mrb[0].mxu0
  %v1834 = vpop.f32.mrb[0].mxu0
  %v1835 = vadd.f32 0.0, %v1834
  %v1836 = vpop.f32.mrb[0].mxu0
  %1837 = vmatprep.mubr.bf16.mxu0 %v1499
  %1838 = vmatmul.mubr.bf16.gmra.mrb[0].mxu0 %v1498
  %v1839 = vpop.f32.mrb[0].mxu0
  %v1840 = vadd.f32 0.0, %v1839
  %v1841 = vpop.f32.mrb[0].mxu0
  %v1842 = vpop.f32.mrb[0].mxu0
  %v1843 = vadd.f32 0.0, %v1842
  %v1844 = vpop.f32.mrb[0].mxu0
  %1845 = vmatprep.mubr.bf16.mxu0 %v1503
  %1846 = vmatmul.mubr.bf16.gmra.mrb[0].mxu0 %v1502
  %v1847 = vpop.f32.mrb[0].mxu0
  %v1848 = vadd.f32 0.0, %v1847
  %v1849 = vpop.f32.mrb[0].mxu0
  %v1850 = vpop.f32.mrb[0].mxu0
  %v1851 = vadd.f32 0.0, %v1850
  %v1852 = vpop.f32.mrb[0].mxu0
  %1853 = vmatprep.mubr.bf16.mxu0 %v1507
  %1854 = vmatmul.mubr.bf16.gmra.mrb[0].mxu0 %v1506
  %v1855 = vpop.f32.mrb[0].mxu0
  %v1856 = vadd.f32 0.0, %v1855
  %v1857 = vpop.f32.mrb[0].mxu0
  %v1858 = vpop.f32.mrb[0].mxu0
  %v1859 = vadd.f32 0.0, %v1858
  %v1860 = vpop.f32.mrb[0].mxu0
  %1861 = vmatprep.mubr.bf16.mxu0 %v1511
  %1862 = vmatmul.mubr.bf16.gmra.mrb[0].mxu0 %v1510
  %v1863 = vpop.f32.mrb[0].mxu0
  %v1864 = vadd.f32 0.0, %v1863
  %v1865 = vpop.f32.mrb[0].mxu0
  %v1866 = vpop.f32.mrb[0].mxu0
  %v1867 = vadd.f32 0.0, %v1866
  %v1868 = vpop.f32.mrb[0].mxu0
  %1869 = vmatprep.mubr.bf16.mxu0 %v1515
  %1870 = vmatmul.mubr.bf16.gmra.mrb[0].mxu0 %v1514
  %v1871 = vpop.f32.mrb[0].mxu0
  %v1872 = vadd.f32 0.0, %v1871
  %v1873 = vpop.f32.mrb[0].mxu0
  %v1874 = vpop.f32.mrb[0].mxu0
  %v1875 = vadd.f32 0.0, %v1874
  %v1876 = vpop.f32.mrb[0].mxu0
  %1877 = vmatprep.mubr.bf16.mxu0 %v1519
  %1878 = vmatmul.mubr.bf16.gmra.mrb[0].mxu0 %v1518
  %v1879 = vpop.f32.mrb[0].mxu0
  %v1880 = vadd.f32 0.0, %v1879
  %v1881 = vpop.f32.mrb[0].mxu0
  %v1882 = vpop.f32.mrb[0].mxu0
  %v1883 = vadd.f32 0.0, %v1882
  %v1884 = vpop.f32.mrb[0].mxu0
  %1885 = vmatprep.mubr.bf16.mxu0 %v1523
  %1886 = vmatmul.mubr.bf16.gmra.mrb[0].mxu0 %v1522
  %v1887 = vpop.f32.mrb[0].mxu0
  %v1888 = vadd.f32 0.0, %v1887
  %v1889 = vpop.f32.mrb[0].mxu0
  %v1890 = vpop.f32.mrb[0].mxu0
  %v1891 = vadd.f32 0.0, %v1890
  %v1892 = vpop.f32.mrb[0].mxu0
  %1893 = vmatprep.mubr.bf16.mxu0 %v1527
  %1894 = vmatmul.mubr.bf16.gmra.mrb[0].mxu0 %v1526
  %v1895 = vpop.f32.mrb[0].mxu0
  %v1896 = vadd.f32 0.0, %v1895
  %v1897 = vpop.f32.mrb[0].mxu0
  %v1898 = vpop.f32.mrb[0].mxu0
  %v1899 = vadd.f32 0.0, %v1898
  %v1900 = vpop.f32.mrb[0].mxu0
  %1901 = vmatprep.mubr.bf16.mxu0 %v1531
  %1902 = vmatmul.mubr.bf16.gmra.mrb[0].mxu0 %v1530
  %v1903 = vpop.f32.mrb[0].mxu0
  %v1904 = vadd.f32 0.0, %v1903
  %v1905 = vpop.f32.mrb[0].mxu0
  %v1906 = vpop.f32.mrb[0].mxu0
  %v1907 = vadd.f32 0.0, %v1906
  %v1908 = vpop.f32.mrb[0].mxu0
  %1909 = vmatprep.mubr.bf16.mxu0 %v1535
  %1910 = vmatmul.mubr.bf16.gmra.mrb[0].mxu0 %v1534
  %v1911 = vpop.f32.mrb[0].mxu0
  %v1912 = vadd.f32 0.0, %v1911
  %v1913 = vpop.f32.mrb[0].mxu0
  %v1914 = vpop.f32.mrb[0].mxu0
  %v1915 = vadd.f32 0.0, %v1914
  %v1916 = vpop.f32.mrb[0].mxu0
  %1917 = vmatprep.mubr.bf16.mxu0 %v1539
  %1918 = vmatmul.mubr.bf16.gmra.mrb[0].mxu0 %v1538
  %v1919 = vpop.f32.mrb[0].mxu0
  %v1920 = vadd.f32 0.0, %v1919
  %v1921 = vpop.f32.mrb[0].mxu0
  %v1922 = vpop.f32.mrb[0].mxu0
  %v1923 = vadd.f32 0.0, %v1922
  %v1924 = vpop.f32.mrb[0].mxu0
  %1925 = vdwg.mxu0
  %1926 = vmatprep.subr.bf16.mxu0 0
  %1927 = vmatpush1.bf16.msra.mxu0 %v1133
  %1928 = vmatprep.subr.bf16.mxu0 0
  %1929 = vmatpush1.bf16.msra.mxu0 %v1134
  %1930 = vmatprep.subr.bf16.mxu0 0
  %1931 = vmatpush1.bf16.msra.mxu0 %v1135
  %1932 = vmatprep.subr.bf16.mxu0 0
  %1933 = vmatpush1.bf16.msra.mxu0 %v1136
  %1934 = vmatprep.subr.bf16.mxu0 0
  %1935 = vmatpush1.bf16.msra.mxu0 %v1137
  %1936 = vmatprep.subr.bf16.mxu0 0
  %1937 = vmatpush1.bf16.msra.mxu0 %v1138
  %1938 = vmatprep.subr.bf16.mxu0 0
  %1939 = vmatpush1.bf16.msra.mxu0 %v1139
  %1940 = vmatprep.subr.bf16.mxu0 0
  %1941 = vmatpush1.bf16.msra.mxu0 %v1140
  %1942 = vmatprep.subr.bf16.mxu0 0
  %1943 = vmatpush1.bf16.msra.mxu0 %v1141
  %1944 = vmatprep.subr.bf16.mxu0 0
  %1945 = vmatpush1.bf16.msra.mxu0 0
  %1946 = vmatprep.subr.bf16.mxu0 0
  %1947 = vmatpush1.bf16.msra.mxu0 0
  %1948 = vmatprep.subr.bf16.mxu0 0
  %1949 = vmatpush1.bf16.msra.mxu0 0
  %1950 = vmatprep.subr.bf16.mxu0 0
  %1951 = vmatpush1.bf16.msra.mxu0 0
  %1952 = vmatprep.subr.bf16.mxu0 0
  %1953 = vmatpush1.bf16.msra.mxu0 0
  %1954 = vmatprep.subr.bf16.mxu0 0
  %1955 = vmatpush1.bf16.msra.mxu0 0
  %1956 = vmatprep.subr.bf16.mxu0 0
  %1957 = vmatpush1.bf16.msra.mxu0 0
  %1958 = vmatprep.mubr.bf16.mxu0 %v1619
  %1959 = vmatmul.mubr.bf16.gmra.mrb[0].mxu0 %v1444
  %v1960 = vpop.f32.mrb[0].mxu0
  %v1961 = vadd.f32 %v1728, %v1960
  %v1962 = vpop.f32.mrb[0].mxu0
  %v1963 = vpop.f32.mrb[0].mxu0
  %v1964 = vadd.f32 %v1731, %v1963
  %v1965 = vpop.f32.mrb[0].mxu0
  %1966 = vmatprep.mubr.bf16.mxu0 %v1622
  %1967 = vmatmul.mubr.bf16.gmra.mrb[0].mxu0 %v1448
  %v1968 = vpop.f32.mrb[0].mxu0
  %v1969 = vadd.f32 %v1736, %v1968
  %v1970 = vpop.f32.mrb[0].mxu0
  %v1971 = vpop.f32.mrb[0].mxu0
  %v1972 = vadd.f32 %v1739, %v1971
  %v1973 = vpop.f32.mrb[0].mxu0
  %1974 = vmatprep.mubr.bf16.mxu0 %v1625
  %1975 = vmatmul.mubr.bf16.gmra.mrb[0].mxu0 %v1452
  %v1976 = vpop.f32.mrb[0].mxu0
  %v1977 = vadd.f32 %v1744, %v1976
  %v1978 = vpop.f32.mrb[0].mxu0
  %v1979 = vpop.f32.mrb[0].mxu0
  %v1980 = vadd.f32 %v1747, %v1979
  %v1981 = vpop.f32.mrb[0].mxu0
  %1982 = vmatprep.mubr.bf16.mxu0 %v1628
  %1983 = vmatmul.mubr.bf16.gmra.mrb[0].mxu0 %v1456
  %v1984 = vpop.f32.mrb[0].mxu0
  %v1985 = vadd.f32 %v1752, %v1984
  %v1986 = vpop.f32.mrb[0].mxu0
  %v1987 = vpop.f32.mrb[0].mxu0
  %v1988 = vadd.f32 %v1755, %v1987
  %v1989 = vpop.f32.mrb[0].mxu0
  %1990 = vmatprep.mubr.bf16.mxu0 %v1631
  %1991 = vmatmul.mubr.bf16.gmra.mrb[0].mxu0 %v1460
  %v1992 = vpop.f32.mrb[0].mxu0
  %v1993 = vadd.f32 %v1760, %v1992
  %v1994 = vpop.f32.mrb[0].mxu0
  %v1995 = vpop.f32.mrb[0].mxu0
  %v1996 = vadd.f32 %v1763, %v1995
  %v1997 = vpop.f32.mrb[0].mxu0
  %1998 = vmatprep.mubr.bf16.mxu0 %v1634
  %1999 = vmatmul.mubr.bf16.gmra.mrb[0].mxu0 %v1464
  %v2000 = vpop.f32.mrb[0].mxu0
  %v2001 = vadd.f32 %v1768, %v2000
  %v2002 = vpop.f32.mrb[0].mxu0
  %v2003 = vpop.f32.mrb[0].mxu0
  %v2004 = vadd.f32 %v1771, %v2003
  %v2005 = vpop.f32.mrb[0].mxu0
  %2006 = vmatprep.mubr.bf16.mxu0 %v1637
  %2007 = vmatmul.mubr.bf16.gmra.mrb[0].mxu0 %v1468
  %v2008 = vpop.f32.mrb[0].mxu0
  %v2009 = vadd.f32 %v1776, %v2008
  %v2010 = vpop.f32.mrb[0].mxu0
  %v2011 = vpop.f32.mrb[0].mxu0
  %v2012 = vadd.f32 %v1779, %v2011
  %v2013 = vpop.f32.mrb[0].mxu0
  %2014 = vmatprep.mubr.bf16.mxu0 %v1640
  %2015 = vmatmul.mubr.bf16.gmra.mrb[0].mxu0 %v1472
  %v2016 = vpop.f32.mrb[0].mxu0
  %v2017 = vadd.f32 %v1784, %v2016
  %v2018 = vpop.f32.mrb[0].mxu0
  %v2019 = vpop.f32.mrb[0].mxu0
  %v2020 = vadd.f32 %v1787, %v2019
  %v2021 = vpop.f32.mrb[0].mxu0
  %2022 = vmatprep.mubr.bf16.mxu0 %v1643
  %2023 = vmatmul.mubr.bf16.gmra.mrb[0].mxu0 %v1476
  %v2024 = vpop.f32.mrb[0].mxu0
  %v2025 = vadd.f32 %v1792, %v2024
  %v2026 = vpop.f32.mrb[0].mxu0
  %v2027 = vpop.f32.mrb[0].mxu0
  %v2028 = vadd.f32 %v1795, %v2027
  %v2029 = vpop.f32.mrb[0].mxu0
  %2030 = vmatprep.mubr.bf16.mxu0 %v1646
  %2031 = vmatmul.mubr.bf16.gmra.mrb[0].mxu0 %v1480
  %v2032 = vpop.f32.mrb[0].mxu0
  %v2033 = vadd.f32 %v1800, %v2032
  %v2034 = vpop.f32.mrb[0].mxu0
  %v2035 = vpop.f32.mrb[0].mxu0
  %v2036 = vadd.f32 %v1803, %v2035
  %v2037 = vpop.f32.mrb[0].mxu0
  %2038 = vmatprep.mubr.bf16.mxu0 %v1649
  %2039 = vmatmul.mubr.bf16.gmra.mrb[0].mxu0 %v1484
  %v2040 = vpop.f32.mrb[0].mxu0
  %v2041 = vadd.f32 %v1808, %v2040
  %v2042 = vpop.f32.mrb[0].mxu0
  %v2043 = vpop.f32.mrb[0].mxu0
  %v2044 = vadd.f32 %v1811, %v2043
  %v2045 = vpop.f32.mrb[0].mxu0
  %2046 = vmatprep.mubr.bf16.mxu0 %v1652
  %2047 = vmatmul.mubr.bf16.gmra.mrb[0].mxu0 %v1488
  %v2048 = vpop.f32.mrb[0].mxu0
  %v2049 = vadd.f32 %v1816, %v2048
  %v2050 = vpop.f32.mrb[0].mxu0
  %v2051 = vpop.f32.mrb[0].mxu0
  %v2052 = vadd.f32 %v1819, %v2051
  %v2053 = vpop.f32.mrb[0].mxu0
  %2054 = vmatprep.mubr.bf16.mxu0 %v1655
  %2055 = vmatmul.mubr.bf16.gmra.mrb[0].mxu0 %v1492
  %v2056 = vpop.f32.mrb[0].mxu0
  %v2057 = vadd.f32 %v1824, %v2056
  %v2058 = vpop.f32.mrb[0].mxu0
  %v2059 = vpop.f32.mrb[0].mxu0
  %v2060 = vadd.f32 %v1827, %v2059
  %v2061 = vpop.f32.mrb[0].mxu0
  %2062 = vmatprep.mubr.bf16.mxu0 %v1658
  %2063 = vmatmul.mubr.bf16.gmra.mrb[0].mxu0 %v1496
  %v2064 = vpop.f32.mrb[0].mxu0
  %v2065 = vadd.f32 %v1832, %v2064
  %v2066 = vpop.f32.mrb[0].mxu0
  %v2067 = vpop.f32.mrb[0].mxu0
  %v2068 = vadd.f32 %v1835, %v2067
  %v2069 = vpop.f32.mrb[0].mxu0
  %2070 = vmatprep.mubr.bf16.mxu0 %v1661
  %2071 = vmatmul.mubr.bf16.gmra.mrb[0].mxu0 %v1500
  %v2072 = vpop.f32.mrb[0].mxu0
  %v2073 = vadd.f32 %v1840, %v2072
  %v2074 = vpop.f32.mrb[0].mxu0
  %v2075 = vpop.f32.mrb[0].mxu0
  %v2076 = vadd.f32 %v1843, %v2075
  %v2077 = vpop.f32.mrb[0].mxu0
  %2078 = vmatprep.mubr.bf16.mxu0 %v1664
  %2079 = vmatmul.mubr.bf16.gmra.mrb[0].mxu0 %v1504
  %v2080 = vpop.f32.mrb[0].mxu0
  %v2081 = vadd.f32 %v1848, %v2080
  %v2082 = vpop.f32.mrb[0].mxu0
  %v2083 = vpop.f32.mrb[0].mxu0
  %v2084 = vadd.f32 %v1851, %v2083
  %v2085 = vpop.f32.mrb[0].mxu0
  %2086 = vmatprep.mubr.bf16.mxu0 %v1667
  %2087 = vmatmul.mubr.bf16.gmra.mrb[0].mxu0 %v1508
  %v2088 = vpop.f32.mrb[0].mxu0
  %v2089 = vadd.f32 %v1856, %v2088
  %v2090 = vpop.f32.mrb[0].mxu0
  %v2091 = vpop.f32.mrb[0].mxu0
  %v2092 = vadd.f32 %v1859, %v2091
  %v2093 = vpop.f32.mrb[0].mxu0
  %2094 = vmatprep.mubr.bf16.mxu0 %v1670
  %2095 = vmatmul.mubr.bf16.gmra.mrb[0].mxu0 %v1512
  %v2096 = vpop.f32.mrb[0].mxu0
  %v2097 = vadd.f32 %v1864, %v2096
  %v2098 = vpop.f32.mrb[0].mxu0
  %v2099 = vpop.f32.mrb[0].mxu0
  %v2100 = vadd.f32 %v1867, %v2099
  %v2101 = vpop.f32.mrb[0].mxu0
  %2102 = vmatprep.mubr.bf16.mxu0 %v1673
  %2103 = vmatmul.mubr.bf16.gmra.mrb[0].mxu0 %v1516
  %v2104 = vpop.f32.mrb[0].mxu0
  %v2105 = vadd.f32 %v1872, %v2104
  %v2106 = vpop.f32.mrb[0].mxu0
  %v2107 = vpop.f32.mrb[0].mxu0
  %v2108 = vadd.f32 %v1875, %v2107
  %v2109 = vpop.f32.mrb[0].mxu0
  %2110 = vmatprep.mubr.bf16.mxu0 %v1676
  %2111 = vmatmul.mubr.bf16.gmra.mrb[0].mxu0 %v1520
  %v2112 = vpop.f32.mrb[0].mxu0
  %v2113 = vadd.f32 %v1880, %v2112
  %v2114 = vpop.f32.mrb[0].mxu0
  %v2115 = vpop.f32.mrb[0].mxu0
  %v2116 = vadd.f32 %v1883, %v2115
  %v2117 = vpop.f32.mrb[0].mxu0
  %2118 = vmatprep.mubr.bf16.mxu0 %v1679
  %2119 = vmatmul.mubr.bf16.gmra.mrb[0].mxu0 %v1524
  %v2120 = vpop.f32.mrb[0].mxu0
  %v2121 = vadd.f32 %v1888, %v2120
  %v2122 = vpop.f32.mrb[0].mxu0
  %v2123 = vpop.f32.mrb[0].mxu0
  %v2124 = vadd.f32 %v1891, %v2123
  %v2125 = vpop.f32.mrb[0].mxu0
  %2126 = vmatprep.mubr.bf16.mxu0 %v1682
  %2127 = vmatmul.mubr.bf16.gmra.mrb[0].mxu0 %v1528
  %v2128 = vpop.f32.mrb[0].mxu0
  %v2129 = vadd.f32 %v1896, %v2128
  %v2130 = vpop.f32.mrb[0].mxu0
  %v2131 = vpop.f32.mrb[0].mxu0
  %v2132 = vadd.f32 %v1899, %v2131
  %v2133 = vpop.f32.mrb[0].mxu0
  %2134 = vmatprep.mubr.bf16.mxu0 %v1685
  %2135 = vmatmul.mubr.bf16.gmra.mrb[0].mxu0 %v1532
  %v2136 = vpop.f32.mrb[0].mxu0
  %v2137 = vadd.f32 %v1904, %v2136
  %v2138 = vpop.f32.mrb[0].mxu0
  %v2139 = vpop.f32.mrb[0].mxu0
  %v2140 = vadd.f32 %v1907, %v2139
  %v2141 = vpop.f32.mrb[0].mxu0
  %2142 = vmatprep.mubr.bf16.mxu0 %v1688
  %2143 = vmatmul.mubr.bf16.gmra.mrb[0].mxu0 %v1536
  %v2144 = vpop.f32.mrb[0].mxu0
  %v2145 = vadd.f32 %v1912, %v2144
  %v2146 = vpop.f32.mrb[0].mxu0
  %v2147 = vpop.f32.mrb[0].mxu0
  %v2148 = vadd.f32 %v1915, %v2147
  %v2149 = vpop.f32.mrb[0].mxu0
  %2150 = vmatprep.mubr.bf16.mxu0 %v1691
  %2151 = vmatmul.mubr.bf16.gmra.mrb[0].mxu0 %v1540
  %v2152 = vpop.f32.mrb[0].mxu0
  %v2153 = vadd.f32 %v1920, %v2152
  %v2154 = vpop.f32.mrb[0].mxu0
  %v2155 = vpop.f32.mrb[0].mxu0
  %v2156 = vadd.f32 %v1923, %v2155
  %v2157 = vpop.f32.mrb[0].mxu0
  %2158 = vdwg.mxu0
  %vm2159 = vcmask 400384
  %v2160 = vsel %vm2159, %v1961, 0.0
  %2161 = vadd.xlane.f32.xlu0 %v2160
  %v2162 = vpop.xlane.xlu0 %2161
  %v2163 = vsel %vm2159, %v1964, 0.0
  %2164 = vadd.xlane.f32.xlu0 %v2163
  %v2165 = vpop.xlane.xlu0 %2164
  %v2166 = vsel %vm2159, %v1969, 0.0
  %2167 = vadd.xlane.f32.xlu0 %v2166
  %v2168 = vpop.xlane.xlu0 %2167
  %v2169 = vsel %vm2159, %v1972, 0.0
  %2170 = vadd.xlane.f32.xlu0 %v2169
  %v2171 = vpop.xlane.xlu0 %2170
  %v2172 = vsel %vm2159, %v1977, 0.0
  %2173 = vadd.xlane.f32.xlu0 %v2172
  %v2174 = vpop.xlane.xlu0 %2173
  %v2175 = vsel %vm2159, %v1980, 0.0
  %2176 = vadd.xlane.f32.xlu0 %v2175
  %v2177 = vpop.xlane.xlu0 %2176
  %v2178 = vsel %vm2159, %v1985, 0.0
  %2179 = vadd.xlane.f32.xlu0 %v2178
  %v2180 = vpop.xlane.xlu0 %2179
  %v2181 = vsel %vm2159, %v1988, 0.0
  %2182 = vadd.xlane.f32.xlu0 %v2181
  %v2183 = vpop.xlane.xlu0 %2182
  %v2184 = vsel %vm2159, %v1993, 0.0
  %2185 = vadd.xlane.f32.xlu0 %v2184
  %v2186 = vpop.xlane.xlu0 %2185
  %v2187 = vsel %vm2159, %v1996, 0.0
  %2188 = vadd.xlane.f32.xlu0 %v2187
  %v2189 = vpop.xlane.xlu0 %2188
  %v2190 = vsel %vm2159, %v2001, 0.0
  %2191 = vadd.xlane.f32.xlu0 %v2190
  %v2192 = vpop.xlane.xlu0 %2191
  %v2193 = vsel %vm2159, %v2004, 0.0
  %2194 = vadd.xlane.f32.xlu0 %v2193
  %v2195 = vpop.xlane.xlu0 %2194
  %v2196 = vsel %vm2159, %v2009, 0.0
  %2197 = vadd.xlane.f32.xlu0 %v2196
  %v2198 = vpop.xlane.xlu0 %2197
  %v2199 = vsel %vm2159, %v2012, 0.0
  %2200 = vadd.xlane.f32.xlu0 %v2199
  %v2201 = vpop.xlane.xlu0 %2200
  %v2202 = vsel %vm2159, %v2017, 0.0
  %2203 = vadd.xlane.f32.xlu0 %v2202
  %v2204 = vpop.xlane.xlu0 %2203
  %v2205 = vsel %vm2159, %v2020, 0.0
  %2206 = vadd.xlane.f32.xlu0 %v2205
  %v2207 = vpop.xlane.xlu0 %2206
  %v2208 = vsel %vm2159, %v2025, 0.0
  %2209 = vadd.xlane.f32.xlu0 %v2208
  %v2210 = vpop.xlane.xlu0 %2209
  %v2211 = vsel %vm2159, %v2028, 0.0
  %2212 = vadd.xlane.f32.xlu0 %v2211
  %v2213 = vpop.xlane.xlu0 %2212
  %v2214 = vsel %vm2159, %v2033, 0.0
  %2215 = vadd.xlane.f32.xlu0 %v2214
  %v2216 = vpop.xlane.xlu0 %2215
  %v2217 = vsel %vm2159, %v2036, 0.0
  %2218 = vadd.xlane.f32.xlu0 %v2217
  %v2219 = vpop.xlane.xlu0 %2218
  %v2220 = vsel %vm2159, %v2041, 0.0
  %2221 = vadd.xlane.f32.xlu0 %v2220
  %v2222 = vpop.xlane.xlu0 %2221
  %v2223 = vsel %vm2159, %v2044, 0.0
  %2224 = vadd.xlane.f32.xlu0 %v2223
  %v2225 = vpop.xlane.xlu0 %2224
  %v2226 = vsel %vm2159, %v2049, 0.0
  %2227 = vadd.xlane.f32.xlu0 %v2226
  %v2228 = vpop.xlane.xlu0 %2227
  %v2229 = vsel %vm2159, %v2052, 0.0
  %2230 = vadd.xlane.f32.xlu0 %v2229
  %v2231 = vpop.xlane.xlu0 %2230
  %v2232 = vsel %vm2159, %v2057, 0.0
  %2233 = vadd.xlane.f32.xlu0 %v2232
  %v2234 = vpop.xlane.xlu0 %2233
  %v2235 = vsel %vm2159, %v2060, 0.0
  %2236 = vadd.xlane.f32.xlu0 %v2235
  %v2237 = vpop.xlane.xlu0 %2236
  %v2238 = vsel %vm2159, %v2065, 0.0
  %2239 = vadd.xlane.f32.xlu0 %v2238
  %v2240 = vpop.xlane.xlu0 %2239
  %v2241 = vsel %vm2159, %v2068, 0.0
  %2242 = vadd.xlane.f32.xlu0 %v2241
  %v2243 = vpop.xlane.xlu0 %2242
  %v2244 = vsel %vm2159, %v2073, 0.0
  %2245 = vadd.xlane.f32.xlu0 %v2244
  %v2246 = vpop.xlane.xlu0 %2245
  %v2247 = vsel %vm2159, %v2076, 0.0
  %2248 = vadd.xlane.f32.xlu0 %v2247
  %v2249 = vpop.xlane.xlu0 %2248
  %v2250 = vsel %vm2159, %v2081, 0.0
  %2251 = vadd.xlane.f32.xlu0 %v2250
  %v2252 = vpop.xlane.xlu0 %2251
  %v2253 = vsel %vm2159, %v2084, 0.0
  %2254 = vadd.xlane.f32.xlu0 %v2253
  %v2255 = vpop.xlane.xlu0 %2254
  %v2256 = vsel %vm2159, %v2089, 0.0
  %2257 = vadd.xlane.f32.xlu0 %v2256
  %v2258 = vpop.xlane.xlu0 %2257
  %v2259 = vsel %vm2159, %v2092, 0.0
  %2260 = vadd.xlane.f32.xlu0 %v2259
  %v2261 = vpop.xlane.xlu0 %2260
  %v2262 = vsel %vm2159, %v2097, 0.0
  %2263 = vadd.xlane.f32.xlu0 %v2262
  %v2264 = vpop.xlane.xlu0 %2263
  %v2265 = vsel %vm2159, %v2100, 0.0
  %2266 = vadd.xlane.f32.xlu0 %v2265
  %v2267 = vpop.xlane.xlu0 %2266
  %v2268 = vsel %vm2159, %v2105, 0.0
  %2269 = vadd.xlane.f32.xlu0 %v2268
  %v2270 = vpop.xlane.xlu0 %2269
  %v2271 = vsel %vm2159, %v2108, 0.0
  %2272 = vadd.xlane.f32.xlu0 %v2271
  %v2273 = vpop.xlane.xlu0 %2272
  %v2274 = vsel %vm2159, %v2113, 0.0
  %2275 = vadd.xlane.f32.xlu0 %v2274
  %v2276 = vpop.xlane.xlu0 %2275
  %v2277 = vsel %vm2159, %v2116, 0.0
  %2278 = vadd.xlane.f32.xlu0 %v2277
  %v2279 = vpop.xlane.xlu0 %2278
  %v2280 = vsel %vm2159, %v2121, 0.0
  %2281 = vadd.xlane.f32.xlu0 %v2280
  %v2282 = vpop.xlane.xlu0 %2281
  %v2283 = vsel %vm2159, %v2124, 0.0
  %2284 = vadd.xlane.f32.xlu0 %v2283
  %v2285 = vpop.xlane.xlu0 %2284
  %v2286 = vsel %vm2159, %v2129, 0.0
  %2287 = vadd.xlane.f32.xlu0 %v2286
  %v2288 = vpop.xlane.xlu0 %2287
  %v2289 = vsel %vm2159, %v2132, 0.0
  %2290 = vadd.xlane.f32.xlu0 %v2289
  %v2291 = vpop.xlane.xlu0 %2290
  %v2292 = vsel %vm2159, %v2137, 0.0
  %2293 = vadd.xlane.f32.xlu0 %v2292
  %v2294 = vpop.xlane.xlu0 %2293
  %v2295 = vsel %vm2159, %v2140, 0.0
  %2296 = vadd.xlane.f32.xlu0 %v2295
  %v2297 = vpop.xlane.xlu0 %2296
  %v2298 = vsel %vm2159, %v2145, 0.0
  %2299 = vadd.xlane.f32.xlu0 %v2298
  %v2300 = vpop.xlane.xlu0 %2299
  %v2301 = vsel %vm2159, %v2148, 0.0
  %2302 = vadd.xlane.f32.xlu0 %v2301
  %v2303 = vpop.xlane.xlu0 %2302
  %v2304 = vsel %vm2159, %v2153, 0.0
  %2305 = vadd.xlane.f32.xlu0 %v2304
  %v2306 = vpop.xlane.xlu0 %2305
  %v2307 = vsel %vm2159, %v2156, 0.0
  %2308 = vadd.xlane.f32.xlu0 %v2307
  %v2309 = vpop.xlane.xlu0 %2308
  %v2310 = vmul.f32 %v2162, 0.020408163
  %v2311 = vmul.f32 %v2165, 0.020408163
  %v2312 = vmul.f32 %v2168, 0.020408163
  %v2313 = vmul.f32 %v2171, 0.020408163
  %v2314 = vmul.f32 %v2174, 0.020408163
  %v2315 = vmul.f32 %v2177, 0.020408163
  %v2316 = vmul.f32 %v2180, 0.020408163
  %v2317 = vmul.f32 %v2183, 0.020408163
  %v2318 = vmul.f32 %v2186, 0.020408163
  %v2319 = vmul.f32 %v2189, 0.020408163
  %v2320 = vmul.f32 %v2192, 0.020408163
  %v2321 = vmul.f32 %v2195, 0.020408163
  %v2322 = vmul.f32 %v2198, 0.020408163
  %v2323 = vmul.f32 %v2201, 0.020408163
  %v2324 = vmul.f32 %v2204, 0.020408163
  %v2325 = vmul.f32 %v2207, 0.020408163
  %v2326 = vmul.f32 %v2210, 0.020408163
  %v2327 = vmul.f32 %v2213, 0.020408163
  %v2328 = vmul.f32 %v2216, 0.020408163
  %v2329 = vmul.f32 %v2219, 0.020408163
  %v2330 = vmul.f32 %v2222, 0.020408163
  %v2331 = vmul.f32 %v2225, 0.020408163
  %v2332 = vmul.f32 %v2228, 0.020408163
  %v2333 = vmul.f32 %v2231, 0.020408163
  %v2334 = vmul.f32 %v2234, 0.020408163
  %v2335 = vmul.f32 %v2237, 0.020408163
  %v2336 = vmul.f32 %v2240, 0.020408163
  %v2337 = vmul.f32 %v2243, 0.020408163
  %v2338 = vmul.f32 %v2246, 0.020408163
  %v2339 = vmul.f32 %v2249, 0.020408163
  %v2340 = vmul.f32 %v2252, 0.020408163
  %v2341 = vmul.f32 %v2255, 0.020408163
  %v2342 = vmul.f32 %v2258, 0.020408163
  %v2343 = vmul.f32 %v2261, 0.020408163
  %v2344 = vmul.f32 %v2264, 0.020408163
  %v2345 = vmul.f32 %v2267, 0.020408163
  %v2346 = vmul.f32 %v2270, 0.020408163
  %v2347 = vmul.f32 %v2273, 0.020408163
  %v2348 = vmul.f32 %v2276, 0.020408163
  %v2349 = vmul.f32 %v2279, 0.020408163
  %v2350 = vmul.f32 %v2282, 0.020408163
  %v2351 = vmul.f32 %v2285, 0.020408163
  %v2352 = vmul.f32 %v2288, 0.020408163
  %v2353 = vmul.f32 %v2291, 0.020408163
  %v2354 = vmul.f32 %v2294, 0.020408163
  %v2355 = vmul.f32 %v2297, 0.020408163
  %v2356 = vmul.f32 %v2300, 0.020408163
  %v2357 = vmul.f32 %v2303, 0.020408163
  %v2358 = vmul.f32 %v2306, 0.020408163
  %v2359 = vmul.f32 %v2309, 0.020408163
  %v2360 = vsub.f32 %v1961, %v2310
  %v2361 = vsub.f32 %v1964, %v2311
  %v2362 = vsub.f32 %v1969, %v2312
  %v2363 = vsub.f32 %v1972, %v2313
  %v2364 = vsub.f32 %v1977, %v2314
  %v2365 = vsub.f32 %v1980, %v2315
  %v2366 = vsub.f32 %v1985, %v2316
  %v2367 = vsub.f32 %v1988, %v2317
  %v2368 = vsub.f32 %v1993, %v2318
  %v2369 = vsub.f32 %v1996, %v2319
  %v2370 = vsub.f32 %v2001, %v2320
  %v2371 = vsub.f32 %v2004, %v2321
  %v2372 = vsub.f32 %v2009, %v2322
  %v2373 = vsub.f32 %v2012, %v2323
  %v2374 = vsub.f32 %v2017, %v2324
  %v2375 = vsub.f32 %v2020, %v2325
  %v2376 = vsub.f32 %v2025, %v2326
  %v2377 = vsub.f32 %v2028, %v2327
  %v2378 = vsub.f32 %v2033, %v2328
  %v2379 = vsub.f32 %v2036, %v2329
  %v2380 = vsub.f32 %v2041, %v2330
  %v2381 = vsub.f32 %v2044, %v2331
  %v2382 = vsub.f32 %v2049, %v2332
  %v2383 = vsub.f32 %v2052, %v2333
  %v2384 = vsub.f32 %v2057, %v2334
  %v2385 = vsub.f32 %v2060, %v2335
  %v2386 = vsub.f32 %v2065, %v2336
  %v2387 = vsub.f32 %v2068, %v2337
  %v2388 = vsub.f32 %v2073, %v2338
  %v2389 = vsub.f32 %v2076, %v2339
  %v2390 = vsub.f32 %v2081, %v2340
  %v2391 = vsub.f32 %v2084, %v2341
  %v2392 = vsub.f32 %v2089, %v2342
  %v2393 = vsub.f32 %v2092, %v2343
  %v2394 = vsub.f32 %v2097, %v2344
  %v2395 = vsub.f32 %v2100, %v2345
  %v2396 = vsub.f32 %v2105, %v2346
  %v2397 = vsub.f32 %v2108, %v2347
  %v2398 = vsub.f32 %v2113, %v2348
  %v2399 = vsub.f32 %v2116, %v2349
  %v2400 = vsub.f32 %v2121, %v2350
  %v2401 = vsub.f32 %v2124, %v2351
  %v2402 = vsub.f32 %v2129, %v2352
  %v2403 = vsub.f32 %v2132, %v2353
  %v2404 = vsub.f32 %v2137, %v2354
  %v2405 = vsub.f32 %v2140, %v2355
  %v2406 = vsub.f32 %v2145, %v2356
  %v2407 = vsub.f32 %v2148, %v2357
  %v2408 = vsub.f32 %v2153, %v2358
  %v2409 = vsub.f32 %v2156, %v2359
  %v2410 = vmul.f32 %v2360, %v2360
  %v2411 = vmul.f32 %v2361, %v2361
  %v2412 = vmul.f32 %v2362, %v2362
  %v2413 = vmul.f32 %v2363, %v2363
  %v2414 = vmul.f32 %v2364, %v2364
  %v2415 = vmul.f32 %v2365, %v2365
  %v2416 = vmul.f32 %v2366, %v2366
  %v2417 = vmul.f32 %v2367, %v2367
  %v2418 = vmul.f32 %v2368, %v2368
  %v2419 = vmul.f32 %v2369, %v2369
  %v2420 = vmul.f32 %v2370, %v2370
  %v2421 = vmul.f32 %v2371, %v2371
  %v2422 = vmul.f32 %v2372, %v2372
  %v2423 = vmul.f32 %v2373, %v2373
  %v2424 = vmul.f32 %v2374, %v2374
  %v2425 = vmul.f32 %v2375, %v2375
  %v2426 = vmul.f32 %v2376, %v2376
  %v2427 = vmul.f32 %v2377, %v2377
  %v2428 = vmul.f32 %v2378, %v2378
  %v2429 = vmul.f32 %v2379, %v2379
  %v2430 = vmul.f32 %v2380, %v2380
  %v2431 = vmul.f32 %v2381, %v2381
  %v2432 = vmul.f32 %v2382, %v2382
  %v2433 = vmul.f32 %v2383, %v2383
  %v2434 = vmul.f32 %v2384, %v2384
  %v2435 = vmul.f32 %v2385, %v2385
  %v2436 = vmul.f32 %v2386, %v2386
  %v2437 = vmul.f32 %v2387, %v2387
  %v2438 = vmul.f32 %v2388, %v2388
  %v2439 = vmul.f32 %v2389, %v2389
  %v2440 = vmul.f32 %v2390, %v2390
  %v2441 = vmul.f32 %v2391, %v2391
  %v2442 = vmul.f32 %v2392, %v2392
  %v2443 = vmul.f32 %v2393, %v2393
  %v2444 = vmul.f32 %v2394, %v2394
  %v2445 = vmul.f32 %v2395, %v2395
  %v2446 = vmul.f32 %v2396, %v2396
  %v2447 = vmul.f32 %v2397, %v2397
  %v2448 = vmul.f32 %v2398, %v2398
  %v2449 = vmul.f32 %v2399, %v2399
  %v2450 = vmul.f32 %v2400, %v2400
  %v2451 = vmul.f32 %v2401, %v2401
  %v2452 = vmul.f32 %v2402, %v2402
  %v2453 = vmul.f32 %v2403, %v2403
  %v2454 = vmul.f32 %v2404, %v2404
  %v2455 = vmul.f32 %v2405, %v2405
  %v2456 = vmul.f32 %v2406, %v2406
  %v2457 = vmul.f32 %v2407, %v2407
  %v2458 = vmul.f32 %v2408, %v2408
  %v2459 = vmul.f32 %v2409, %v2409
  %v2460 = vsel %vm2159, %v2410, 0.0
  %2461 = vadd.xlane.f32.xlu0 %v2460
  %v2462 = vpop.xlane.xlu0 %2461
  %v2463 = vsel %vm2159, %v2411, 0.0
  %2464 = vadd.xlane.f32.xlu0 %v2463
  %v2465 = vpop.xlane.xlu0 %2464
  %v2466 = vsel %vm2159, %v2412, 0.0
  %2467 = vadd.xlane.f32.xlu0 %v2466
  %v2468 = vpop.xlane.xlu0 %2467
  %v2469 = vsel %vm2159, %v2413, 0.0
  %2470 = vadd.xlane.f32.xlu0 %v2469
  %v2471 = vpop.xlane.xlu0 %2470
  %v2472 = vsel %vm2159, %v2414, 0.0
  %2473 = vadd.xlane.f32.xlu0 %v2472
  %v2474 = vpop.xlane.xlu0 %2473
  %v2475 = vsel %vm2159, %v2415, 0.0
  %2476 = vadd.xlane.f32.xlu0 %v2475
  %v2477 = vpop.xlane.xlu0 %2476
  %v2478 = vsel %vm2159, %v2416, 0.0
  %2479 = vadd.xlane.f32.xlu0 %v2478
  %v2480 = vpop.xlane.xlu0 %2479
  %v2481 = vsel %vm2159, %v2417, 0.0
  %2482 = vadd.xlane.f32.xlu0 %v2481
  %v2483 = vpop.xlane.xlu0 %2482
  %v2484 = vsel %vm2159, %v2418, 0.0
  %2485 = vadd.xlane.f32.xlu0 %v2484
  %v2486 = vpop.xlane.xlu0 %2485
  %v2487 = vsel %vm2159, %v2419, 0.0
  %2488 = vadd.xlane.f32.xlu0 %v2487
  %v2489 = vpop.xlane.xlu0 %2488
  %v2490 = vsel %vm2159, %v2420, 0.0
  %2491 = vadd.xlane.f32.xlu0 %v2490
  %v2492 = vpop.xlane.xlu0 %2491
  %v2493 = vsel %vm2159, %v2421, 0.0
  %2494 = vadd.xlane.f32.xlu0 %v2493
  %v2495 = vpop.xlane.xlu0 %2494
  %v2496 = vsel %vm2159, %v2422, 0.0
  %2497 = vadd.xlane.f32.xlu0 %v2496
  %v2498 = vpop.xlane.xlu0 %2497
  %v2499 = vsel %vm2159, %v2423, 0.0
  %2500 = vadd.xlane.f32.xlu0 %v2499
  %v2501 = vpop.xlane.xlu0 %2500
  %v2502 = vsel %vm2159, %v2424, 0.0
  %2503 = vadd.xlane.f32.xlu0 %v2502
  %v2504 = vpop.xlane.xlu0 %2503
  %v2505 = vsel %vm2159, %v2425, 0.0
  %2506 = vadd.xlane.f32.xlu0 %v2505
  %v2507 = vpop.xlane.xlu0 %2506
  %v2508 = vsel %vm2159, %v2426, 0.0
  %2509 = vadd.xlane.f32.xlu0 %v2508
  %v2510 = vpop.xlane.xlu0 %2509
  %v2511 = vsel %vm2159, %v2427, 0.0
  %2512 = vadd.xlane.f32.xlu0 %v2511
  %v2513 = vpop.xlane.xlu0 %2512
  %v2514 = vsel %vm2159, %v2428, 0.0
  %2515 = vadd.xlane.f32.xlu0 %v2514
  %v2516 = vpop.xlane.xlu0 %2515
  %v2517 = vsel %vm2159, %v2429, 0.0
  %2518 = vadd.xlane.f32.xlu0 %v2517
  %v2519 = vpop.xlane.xlu0 %2518
  %v2520 = vsel %vm2159, %v2430, 0.0
  %2521 = vadd.xlane.f32.xlu0 %v2520
  %v2522 = vpop.xlane.xlu0 %2521
  %v2523 = vsel %vm2159, %v2431, 0.0
  %2524 = vadd.xlane.f32.xlu0 %v2523
  %v2525 = vpop.xlane.xlu0 %2524
  %v2526 = vsel %vm2159, %v2432, 0.0
  %2527 = vadd.xlane.f32.xlu0 %v2526
  %v2528 = vpop.xlane.xlu0 %2527
  %v2529 = vsel %vm2159, %v2433, 0.0
  %2530 = vadd.xlane.f32.xlu0 %v2529
  %v2531 = vpop.xlane.xlu0 %2530
  %v2532 = vsel %vm2159, %v2434, 0.0
  %2533 = vadd.xlane.f32.xlu0 %v2532
  %v2534 = vpop.xlane.xlu0 %2533
  %v2535 = vsel %vm2159, %v2435, 0.0
  %2536 = vadd.xlane.f32.xlu0 %v2535
  %v2537 = vpop.xlane.xlu0 %2536
  %v2538 = vsel %vm2159, %v2436, 0.0
  %2539 = vadd.xlane.f32.xlu0 %v2538
  %v2540 = vpop.xlane.xlu0 %2539
  %v2541 = vsel %vm2159, %v2437, 0.0
  %2542 = vadd.xlane.f32.xlu0 %v2541
  %v2543 = vpop.xlane.xlu0 %2542
  %v2544 = vsel %vm2159, %v2438, 0.0
  %2545 = vadd.xlane.f32.xlu0 %v2544
  %v2546 = vpop.xlane.xlu0 %2545
  %v2547 = vsel %vm2159, %v2439, 0.0
  %2548 = vadd.xlane.f32.xlu0 %v2547
  %v2549 = vpop.xlane.xlu0 %2548
  %v2550 = vsel %vm2159, %v2440, 0.0
  %2551 = vadd.xlane.f32.xlu0 %v2550
  %v2552 = vpop.xlane.xlu0 %2551
  %v2553 = vsel %vm2159, %v2441, 0.0
  %2554 = vadd.xlane.f32.xlu0 %v2553
  %v2555 = vpop.xlane.xlu0 %2554
  %v2556 = vsel %vm2159, %v2442, 0.0
  %2557 = vadd.xlane.f32.xlu0 %v2556
  %v2558 = vpop.xlane.xlu0 %2557
  %v2559 = vsel %vm2159, %v2443, 0.0
  %2560 = vadd.xlane.f32.xlu0 %v2559
  %v2561 = vpop.xlane.xlu0 %2560
  %v2562 = vsel %vm2159, %v2444, 0.0
  %2563 = vadd.xlane.f32.xlu0 %v2562
  %v2564 = vpop.xlane.xlu0 %2563
  %v2565 = vsel %vm2159, %v2445, 0.0
  %2566 = vadd.xlane.f32.xlu0 %v2565
  %v2567 = vpop.xlane.xlu0 %2566
  %v2568 = vsel %vm2159, %v2446, 0.0
  %2569 = vadd.xlane.f32.xlu0 %v2568
  %v2570 = vpop.xlane.xlu0 %2569
  %v2571 = vsel %vm2159, %v2447, 0.0
  %2572 = vadd.xlane.f32.xlu0 %v2571
  %v2573 = vpop.xlane.xlu0 %2572
  %v2574 = vsel %vm2159, %v2448, 0.0
  %2575 = vadd.xlane.f32.xlu0 %v2574
  %v2576 = vpop.xlane.xlu0 %2575
  %v2577 = vsel %vm2159, %v2449, 0.0
  %2578 = vadd.xlane.f32.xlu0 %v2577
  %v2579 = vpop.xlane.xlu0 %2578
  %v2580 = vsel %vm2159, %v2450, 0.0
  %2581 = vadd.xlane.f32.xlu0 %v2580
  %v2582 = vpop.xlane.xlu0 %2581
  %v2583 = vsel %vm2159, %v2451, 0.0
  %2584 = vadd.xlane.f32.xlu0 %v2583
  %v2585 = vpop.xlane.xlu0 %2584
  %v2586 = vsel %vm2159, %v2452, 0.0
  %2587 = vadd.xlane.f32.xlu0 %v2586
  %v2588 = vpop.xlane.xlu0 %2587
  %v2589 = vsel %vm2159, %v2453, 0.0
  %2590 = vadd.xlane.f32.xlu0 %v2589
  %v2591 = vpop.xlane.xlu0 %2590
  %v2592 = vsel %vm2159, %v2454, 0.0
  %2593 = vadd.xlane.f32.xlu0 %v2592
  %v2594 = vpop.xlane.xlu0 %2593
  %v2595 = vsel %vm2159, %v2455, 0.0
  %2596 = vadd.xlane.f32.xlu0 %v2595
  %v2597 = vpop.xlane.xlu0 %2596
  %v2598 = vsel %vm2159, %v2456, 0.0
  %2599 = vadd.xlane.f32.xlu0 %v2598
  %v2600 = vpop.xlane.xlu0 %2599
  %v2601 = vsel %vm2159, %v2457, 0.0
  %2602 = vadd.xlane.f32.xlu0 %v2601
  %v2603 = vpop.xlane.xlu0 %2602
  %v2604 = vsel %vm2159, %v2458, 0.0
  %2605 = vadd.xlane.f32.xlu0 %v2604
  %v2606 = vpop.xlane.xlu0 %2605
  %v2607 = vsel %vm2159, %v2459, 0.0
  %2608 = vadd.xlane.f32.xlu0 %v2607
  %v2609 = vpop.xlane.xlu0 %2608
  %v2610 = vmul.f32 %v2462, 0.020408163
  %v2611 = vmul.f32 %v2465, 0.020408163
  %v2612 = vmul.f32 %v2468, 0.020408163
  %v2613 = vmul.f32 %v2471, 0.020408163
  %v2614 = vmul.f32 %v2474, 0.020408163
  %v2615 = vmul.f32 %v2477, 0.020408163
  %v2616 = vmul.f32 %v2480, 0.020408163
  %v2617 = vmul.f32 %v2483, 0.020408163
  %v2618 = vmul.f32 %v2486, 0.020408163
  %v2619 = vmul.f32 %v2489, 0.020408163
  %v2620 = vmul.f32 %v2492, 0.020408163
  %v2621 = vmul.f32 %v2495, 0.020408163
  %v2622 = vmul.f32 %v2498, 0.020408163
  %v2623 = vmul.f32 %v2501, 0.020408163
  %v2624 = vmul.f32 %v2504, 0.020408163
  %v2625 = vmul.f32 %v2507, 0.020408163
  %v2626 = vmul.f32 %v2510, 0.020408163
  %v2627 = vmul.f32 %v2513, 0.020408163
  %v2628 = vmul.f32 %v2516, 0.020408163
  %v2629 = vmul.f32 %v2519, 0.020408163
  %v2630 = vmul.f32 %v2522, 0.020408163
  %v2631 = vmul.f32 %v2525, 0.020408163
  %v2632 = vmul.f32 %v2528, 0.020408163
  %v2633 = vmul.f32 %v2531, 0.020408163
  %v2634 = vmul.f32 %v2534, 0.020408163
  %v2635 = vmul.f32 %v2537, 0.020408163
  %v2636 = vmul.f32 %v2540, 0.020408163
  %v2637 = vmul.f32 %v2543, 0.020408163
  %v2638 = vmul.f32 %v2546, 0.020408163
  %v2639 = vmul.f32 %v2549, 0.020408163
  %v2640 = vmul.f32 %v2552, 0.020408163
  %v2641 = vmul.f32 %v2555, 0.020408163
  %v2642 = vmul.f32 %v2558, 0.020408163
  %v2643 = vmul.f32 %v2561, 0.020408163
  %v2644 = vmul.f32 %v2564, 0.020408163
  %v2645 = vmul.f32 %v2567, 0.020408163
  %v2646 = vmul.f32 %v2570, 0.020408163
  %v2647 = vmul.f32 %v2573, 0.020408163
  %v2648 = vmul.f32 %v2576, 0.020408163
  %v2649 = vmul.f32 %v2579, 0.020408163
  %v2650 = vmul.f32 %v2582, 0.020408163
  %v2651 = vmul.f32 %v2585, 0.020408163
  %v2652 = vmul.f32 %v2588, 0.020408163
  %v2653 = vmul.f32 %v2591, 0.020408163
  %v2654 = vmul.f32 %v2594, 0.020408163
  %v2655 = vmul.f32 %v2597, 0.020408163
  %v2656 = vmul.f32 %v2600, 0.020408163
  %v2657 = vmul.f32 %v2603, 0.020408163
  %v2658 = vmul.f32 %v2606, 0.020408163
  %v2659 = vmul.f32 %v2609, 0.020408163
  %v2660 = vadd.f32 %v2610, 1e-05
  %v2661 = vadd.f32 %v2611, 1e-05
  %v2662 = vadd.f32 %v2612, 1e-05
  %v2663 = vadd.f32 %v2613, 1e-05
  %v2664 = vadd.f32 %v2614, 1e-05
  %v2665 = vadd.f32 %v2615, 1e-05
  %v2666 = vadd.f32 %v2616, 1e-05
  %v2667 = vadd.f32 %v2617, 1e-05
  %v2668 = vadd.f32 %v2618, 1e-05
  %v2669 = vadd.f32 %v2619, 1e-05
  %v2670 = vadd.f32 %v2620, 1e-05
  %v2671 = vadd.f32 %v2621, 1e-05
  %v2672 = vadd.f32 %v2622, 1e-05
  %v2673 = vadd.f32 %v2623, 1e-05
  %v2674 = vadd.f32 %v2624, 1e-05
  %v2675 = vadd.f32 %v2625, 1e-05
  %v2676 = vadd.f32 %v2626, 1e-05
  %v2677 = vadd.f32 %v2627, 1e-05
  %v2678 = vadd.f32 %v2628, 1e-05
  %v2679 = vadd.f32 %v2629, 1e-05
  %v2680 = vadd.f32 %v2630, 1e-05
  %v2681 = vadd.f32 %v2631, 1e-05
  %v2682 = vadd.f32 %v2632, 1e-05
  %v2683 = vadd.f32 %v2633, 1e-05
  %v2684 = vadd.f32 %v2634, 1e-05
  %v2685 = vadd.f32 %v2635, 1e-05
  %v2686 = vadd.f32 %v2636, 1e-05
  %v2687 = vadd.f32 %v2637, 1e-05
  %v2688 = vadd.f32 %v2638, 1e-05
  %v2689 = vadd.f32 %v2639, 1e-05
  %v2690 = vadd.f32 %v2640, 1e-05
  %v2691 = vadd.f32 %v2641, 1e-05
  %v2692 = vadd.f32 %v2642, 1e-05
  %v2693 = vadd.f32 %v2643, 1e-05
  %v2694 = vadd.f32 %v2644, 1e-05
  %v2695 = vadd.f32 %v2645, 1e-05
  %v2696 = vadd.f32 %v2646, 1e-05
  %v2697 = vadd.f32 %v2647, 1e-05
  %v2698 = vadd.f32 %v2648, 1e-05
  %v2699 = vadd.f32 %v2649, 1e-05
  %v2700 = vadd.f32 %v2650, 1e-05
  %v2701 = vadd.f32 %v2651, 1e-05
  %v2702 = vadd.f32 %v2652, 1e-05
  %v2703 = vadd.f32 %v2653, 1e-05
  %v2704 = vadd.f32 %v2654, 1e-05
  %v2705 = vadd.f32 %v2655, 1e-05
  %v2706 = vadd.f32 %v2656, 1e-05
  %v2707 = vadd.f32 %v2657, 1e-05
  %v2708 = vadd.f32 %v2658, 1e-05
  %v2709 = vadd.f32 %v2659, 1e-05
  %v2710 = vrsqrt.pop %v2660
  %v2711 = vrsqrt.pop %v2661
  %v2712 = vrsqrt.pop %v2662
  %v2713 = vrsqrt.pop %v2663
  %v2714 = vrsqrt.pop %v2664
  %v2715 = vrsqrt.pop %v2665
  %v2716 = vrsqrt.pop %v2666
  %v2717 = vrsqrt.pop %v2667
  %v2718 = vrsqrt.pop %v2668
  %v2719 = vrsqrt.pop %v2669
  %v2720 = vrsqrt.pop %v2670
  %v2721 = vrsqrt.pop %v2671
  %v2722 = vrsqrt.pop %v2672
  %v2723 = vrsqrt.pop %v2673
  %v2724 = vrsqrt.pop %v2674
  %v2725 = vrsqrt.pop %v2675
  %v2726 = vrsqrt.pop %v2676
  %v2727 = vrsqrt.pop %v2677
  %v2728 = vrsqrt.pop %v2678
  %v2729 = vrsqrt.pop %v2679
  %v2730 = vrsqrt.pop %v2680
  %v2731 = vrsqrt.pop %v2681
  %v2732 = vrsqrt.pop %v2682
  %v2733 = vrsqrt.pop %v2683
  %v2734 = vrsqrt.pop %v2684
  %v2735 = vrsqrt.pop %v2685
  %v2736 = vrsqrt.pop %v2686
  %v2737 = vrsqrt.pop %v2687
  %v2738 = vrsqrt.pop %v2688
  %v2739 = vrsqrt.pop %v2689
  %v2740 = vrsqrt.pop %v2690
  %v2741 = vrsqrt.pop %v2691
  %v2742 = vrsqrt.pop %v2692
  %v2743 = vrsqrt.pop %v2693
  %v2744 = vrsqrt.pop %v2694
  %v2745 = vrsqrt.pop %v2695
  %v2746 = vrsqrt.pop %v2696
  %v2747 = vrsqrt.pop %v2697
  %v2748 = vrsqrt.pop %v2698
  %v2749 = vrsqrt.pop %v2699
  %v2750 = vrsqrt.pop %v2700
  %v2751 = vrsqrt.pop %v2701
  %v2752 = vrsqrt.pop %v2702
  %v2753 = vrsqrt.pop %v2703
  %v2754 = vrsqrt.pop %v2704
  %v2755 = vrsqrt.pop %v2705
  %v2756 = vrsqrt.pop %v2706
  %v2757 = vrsqrt.pop %v2707
  %v2758 = vrsqrt.pop %v2708
  %v2759 = vrsqrt.pop %v2709
  %v2760 = vmul.f32 %v967, %v2710
  %v2761 = vmul.f32 %v968, %v2711
  %v2762 = vmul.f32 %v969, %v2712
  %v2763 = vmul.f32 %v970, %v2713
  %v2764 = vmul.f32 %v971, %v2714
  %v2765 = vmul.f32 %v972, %v2715
  %v2766 = vmul.f32 %v973, %v2716
  %v2767 = vmul.f32 %v974, %v2717
  %v2768 = vmul.f32 %v975, %v2718
  %v2769 = vmul.f32 %v976, %v2719
  %v2770 = vmul.f32 %v977, %v2720
  %v2771 = vmul.f32 %v978, %v2721
  %v2772 = vmul.f32 %v979, %v2722
  %v2773 = vmul.f32 %v980, %v2723
  %v2774 = vmul.f32 %v981, %v2724
  %v2775 = vmul.f32 %v982, %v2725
  %v2776 = vmul.f32 %v983, %v2726
  %v2777 = vmul.f32 %v984, %v2727
  %v2778 = vmul.f32 %v985, %v2728
  %v2779 = vmul.f32 %v986, %v2729
  %v2780 = vmul.f32 %v987, %v2730
  %v2781 = vmul.f32 %v988, %v2731
  %v2782 = vmul.f32 %v989, %v2732
  %v2783 = vmul.f32 %v990, %v2733
  %v2784 = vmul.f32 %v991, %v2734
  %v2785 = vmul.f32 %v992, %v2735
  %v2786 = vmul.f32 %v993, %v2736
  %v2787 = vmul.f32 %v994, %v2737
  %v2788 = vmul.f32 %v995, %v2738
  %v2789 = vmul.f32 %v996, %v2739
  %v2790 = vmul.f32 %v997, %v2740
  %v2791 = vmul.f32 %v998, %v2741
  %v2792 = vmul.f32 %v999, %v2742
  %v2793 = vmul.f32 %v1000, %v2743
  %v2794 = vmul.f32 %v1001, %v2744
  %v2795 = vmul.f32 %v1002, %v2745
  %v2796 = vmul.f32 %v1003, %v2746
  %v2797 = vmul.f32 %v1004, %v2747
  %v2798 = vmul.f32 %v1005, %v2748
  %v2799 = vmul.f32 %v1006, %v2749
  %v2800 = vmul.f32 %v1007, %v2750
  %v2801 = vmul.f32 %v1008, %v2751
  %v2802 = vmul.f32 %v1009, %v2752
  %v2803 = vmul.f32 %v1010, %v2753
  %v2804 = vmul.f32 %v1011, %v2754
  %v2805 = vmul.f32 %v1012, %v2755
  %v2806 = vmul.f32 %v1013, %v2756
  %v2807 = vmul.f32 %v1014, %v2757
  %v2808 = vmul.f32 %v1015, %v2758
  %v2809 = vmul.f32 %v1016, %v2759
  %2811 = vset.pattern.permute.xlu0 0
  %2812 = vperm.xlu0 %2811, %v2760
  %v2813 = vpop.permute.xlu0 %2812
  %2816 = vset.pattern.permute.xlu0 0
  %2817 = vperm.xlu0 %2816, %v2761
  %v2818 = vpop.permute.xlu0 %2817
  %2821 = vset.pattern.permute.xlu0 0
  %2822 = vperm.xlu0 %2821, %v2762
  %v2823 = vpop.permute.xlu0 %2822
  %2826 = vset.pattern.permute.xlu0 0
  %2827 = vperm.xlu0 %2826, %v2763
  %v2828 = vpop.permute.xlu0 %2827
  %2831 = vset.pattern.permute.xlu0 0
  %2832 = vperm.xlu0 %2831, %v2764
  %v2833 = vpop.permute.xlu0 %2832
  %2836 = vset.pattern.permute.xlu0 0
  %2837 = vperm.xlu0 %2836, %v2765
  %v2838 = vpop.permute.xlu0 %2837
  %2841 = vset.pattern.permute.xlu0 0
  %2842 = vperm.xlu0 %2841, %v2766
  %v2843 = vpop.permute.xlu0 %2842
  %2846 = vset.pattern.permute.xlu0 0
  %2847 = vperm.xlu0 %2846, %v2767
  %v2848 = vpop.permute.xlu0 %2847
  %2851 = vset.pattern.permute.xlu0 0
  %2852 = vperm.xlu0 %2851, %v2768
  %v2853 = vpop.permute.xlu0 %2852
  %2856 = vset.pattern.permute.xlu0 0
  %2857 = vperm.xlu0 %2856, %v2769
  %v2858 = vpop.permute.xlu0 %2857
  %2861 = vset.pattern.permute.xlu0 0
  %2862 = vperm.xlu0 %2861, %v2770
  %v2863 = vpop.permute.xlu0 %2862
  %2866 = vset.pattern.permute.xlu0 0
  %2867 = vperm.xlu0 %2866, %v2771
  %v2868 = vpop.permute.xlu0 %2867
  %2871 = vset.pattern.permute.xlu0 0
  %2872 = vperm.xlu0 %2871, %v2772
  %v2873 = vpop.permute.xlu0 %2872
  %2876 = vset.pattern.permute.xlu0 0
  %2877 = vperm.xlu0 %2876, %v2773
  %v2878 = vpop.permute.xlu0 %2877
  %2881 = vset.pattern.permute.xlu0 0
  %2882 = vperm.xlu0 %2881, %v2774
  %v2883 = vpop.permute.xlu0 %2882
  %2886 = vset.pattern.permute.xlu0 0
  %2887 = vperm.xlu0 %2886, %v2775
  %v2888 = vpop.permute.xlu0 %2887
  %2891 = vset.pattern.permute.xlu0 0
  %2892 = vperm.xlu0 %2891, %v2776
  %v2893 = vpop.permute.xlu0 %2892
  %2896 = vset.pattern.permute.xlu0 0
  %2897 = vperm.xlu0 %2896, %v2777
  %v2898 = vpop.permute.xlu0 %2897
  %2901 = vset.pattern.permute.xlu0 0
  %2902 = vperm.xlu0 %2901, %v2778
  %v2903 = vpop.permute.xlu0 %2902
  %2906 = vset.pattern.permute.xlu0 0
  %2907 = vperm.xlu0 %2906, %v2779
  %v2908 = vpop.permute.xlu0 %2907
  %2911 = vset.pattern.permute.xlu0 0
  %2912 = vperm.xlu0 %2911, %v2780
  %v2913 = vpop.permute.xlu0 %2912
  %2916 = vset.pattern.permute.xlu0 0
  %2917 = vperm.xlu0 %2916, %v2781
  %v2918 = vpop.permute.xlu0 %2917
  %2921 = vset.pattern.permute.xlu0 0
  %2922 = vperm.xlu0 %2921, %v2782
  %v2923 = vpop.permute.xlu0 %2922
  %2926 = vset.pattern.permute.xlu0 0
  %2927 = vperm.xlu0 %2926, %v2783
  %v2928 = vpop.permute.xlu0 %2927
  %2931 = vset.pattern.permute.xlu0 0
  %2932 = vperm.xlu0 %2931, %v2784
  %v2933 = vpop.permute.xlu0 %2932
  %2936 = vset.pattern.permute.xlu0 0
  %2937 = vperm.xlu0 %2936, %v2785
  %v2938 = vpop.permute.xlu0 %2937
  %2941 = vset.pattern.permute.xlu0 0
  %2942 = vperm.xlu0 %2941, %v2786
  %v2943 = vpop.permute.xlu0 %2942
  %2946 = vset.pattern.permute.xlu0 0
  %2947 = vperm.xlu0 %2946, %v2787
  %v2948 = vpop.permute.xlu0 %2947
  %2951 = vset.pattern.permute.xlu0 0
  %2952 = vperm.xlu0 %2951, %v2788
  %v2953 = vpop.permute.xlu0 %2952
  %2956 = vset.pattern.permute.xlu0 0
  %2957 = vperm.xlu0 %2956, %v2789
  %v2958 = vpop.permute.xlu0 %2957
  %2961 = vset.pattern.permute.xlu0 0
  %2962 = vperm.xlu0 %2961, %v2790
  %v2963 = vpop.permute.xlu0 %2962
  %2966 = vset.pattern.permute.xlu0 0
  %2967 = vperm.xlu0 %2966, %v2791
  %v2968 = vpop.permute.xlu0 %2967
  %2971 = vset.pattern.permute.xlu0 0
  %2972 = vperm.xlu0 %2971, %v2792
  %v2973 = vpop.permute.xlu0 %2972
  %2976 = vset.pattern.permute.xlu0 0
  %2977 = vperm.xlu0 %2976, %v2793
  %v2978 = vpop.permute.xlu0 %2977
  %2981 = vset.pattern.permute.xlu0 0
  %2982 = vperm.xlu0 %2981, %v2794
  %v2983 = vpop.permute.xlu0 %2982
  %2986 = vset.pattern.permute.xlu0 0
  %2987 = vperm.xlu0 %2986, %v2795
  %v2988 = vpop.permute.xlu0 %2987
  %2991 = vset.pattern.permute.xlu0 0
  %2992 = vperm.xlu0 %2991, %v2796
  %v2993 = vpop.permute.xlu0 %2992
  %2996 = vset.pattern.permute.xlu0 0
  %2997 = vperm.xlu0 %2996, %v2797
  %v2998 = vpop.permute.xlu0 %2997
  %3001 = vset.pattern.permute.xlu0 0
  %3002 = vperm.xlu0 %3001, %v2798
  %v3003 = vpop.permute.xlu0 %3002
  %3006 = vset.pattern.permute.xlu0 0
  %3007 = vperm.xlu0 %3006, %v2799
  %v3008 = vpop.permute.xlu0 %3007
  %3011 = vset.pattern.permute.xlu0 0
  %3012 = vperm.xlu0 %3011, %v2800
  %v3013 = vpop.permute.xlu0 %3012
  %3016 = vset.pattern.permute.xlu0 0
  %3017 = vperm.xlu0 %3016, %v2801
  %v3018 = vpop.permute.xlu0 %3017
  %3021 = vset.pattern.permute.xlu0 0
  %3022 = vperm.xlu0 %3021, %v2802
  %v3023 = vpop.permute.xlu0 %3022
  %3026 = vset.pattern.permute.xlu0 0
  %3027 = vperm.xlu0 %3026, %v2803
  %v3028 = vpop.permute.xlu0 %3027
  %3031 = vset.pattern.permute.xlu0 0
  %3032 = vperm.xlu0 %3031, %v2804
  %v3033 = vpop.permute.xlu0 %3032
  %3036 = vset.pattern.permute.xlu0 0
  %3037 = vperm.xlu0 %3036, %v2805
  %v3038 = vpop.permute.xlu0 %3037
  %3041 = vset.pattern.permute.xlu0 0
  %3042 = vperm.xlu0 %3041, %v2806
  %v3043 = vpop.permute.xlu0 %3042
  %3046 = vset.pattern.permute.xlu0 0
  %3047 = vperm.xlu0 %3046, %v2807
  %v3048 = vpop.permute.xlu0 %3047
  %3051 = vset.pattern.permute.xlu0 0
  %3052 = vperm.xlu0 %3051, %v2808
  %v3053 = vpop.permute.xlu0 %3052
  %3056 = vset.pattern.permute.xlu0 0
  %3057 = vperm.xlu0 %3056, %v2809
  %v3058 = vpop.permute.xlu0 %3057
  %v3060 = vmul.f32 %v2360, %v2813
  %v3061 = vmul.f32 %v2361, %v2818
  %v3062 = vmul.f32 %v2362, %v2823
  %v3063 = vmul.f32 %v2363, %v2828
  %v3064 = vmul.f32 %v2364, %v2833
  %v3065 = vmul.f32 %v2365, %v2838
  %v3066 = vmul.f32 %v2366, %v2843
  %v3067 = vmul.f32 %v2367, %v2848
  %v3068 = vmul.f32 %v2368, %v2853
  %v3069 = vmul.f32 %v2369, %v2858
  %v3070 = vmul.f32 %v2370, %v2863
  %v3071 = vmul.f32 %v2371, %v2868
  %v3072 = vmul.f32 %v2372, %v2873
  %v3073 = vmul.f32 %v2373, %v2878
  %v3074 = vmul.f32 %v2374, %v2883
  %v3075 = vmul.f32 %v2375, %v2888
  %v3076 = vmul.f32 %v2376, %v2893
  %v3077 = vmul.f32 %v2377, %v2898
  %v3078 = vmul.f32 %v2378, %v2903
  %v3079 = vmul.f32 %v2379, %v2908
  %v3080 = vmul.f32 %v2380, %v2913
  %v3081 = vmul.f32 %v2381, %v2918
  %v3082 = vmul.f32 %v2382, %v2923
  %v3083 = vmul.f32 %v2383, %v2928
  %v3084 = vmul.f32 %v2384, %v2933
  %v3085 = vmul.f32 %v2385, %v2938
  %v3086 = vmul.f32 %v2386, %v2943
  %v3087 = vmul.f32 %v2387, %v2948
  %v3088 = vmul.f32 %v2388, %v2953
  %v3089 = vmul.f32 %v2389, %v2958
  %v3090 = vmul.f32 %v2390, %v2963
  %v3091 = vmul.f32 %v2391, %v2968
  %v3092 = vmul.f32 %v2392, %v2973
  %v3093 = vmul.f32 %v2393, %v2978
  %v3094 = vmul.f32 %v2394, %v2983
  %v3095 = vmul.f32 %v2395, %v2988
  %v3096 = vmul.f32 %v2396, %v2993
  %v3097 = vmul.f32 %v2397, %v2998
  %v3098 = vmul.f32 %v2398, %v3003
  %v3099 = vmul.f32 %v2399, %v3008
  %v3100 = vmul.f32 %v2400, %v3013
  %v3101 = vmul.f32 %v2401, %v3018
  %v3102 = vmul.f32 %v2402, %v3023
  %v3103 = vmul.f32 %v2403, %v3028
  %v3104 = vmul.f32 %v2404, %v3033
  %v3105 = vmul.f32 %v2405, %v3038
  %v3106 = vmul.f32 %v2406, %v3043
  %v3107 = vmul.f32 %v2407, %v3048
  %v3108 = vmul.f32 %v2408, %v3053
  %v3109 = vmul.f32 %v2409, %v3058
  %3111 = vset.pattern.permute.xlu0 1
  %3112 = vperm.xlu0 %3111, %v967
  %v3113 = vpop.permute.xlu0 %3112
  %3116 = vset.pattern.permute.xlu0 1
  %3117 = vperm.xlu0 %3116, %v968
  %v3118 = vpop.permute.xlu0 %3117
  %3121 = vset.pattern.permute.xlu0 1
  %3122 = vperm.xlu0 %3121, %v969
  %v3123 = vpop.permute.xlu0 %3122
  %3126 = vset.pattern.permute.xlu0 1
  %3127 = vperm.xlu0 %3126, %v970
  %v3128 = vpop.permute.xlu0 %3127
  %3131 = vset.pattern.permute.xlu0 1
  %3132 = vperm.xlu0 %3131, %v971
  %v3133 = vpop.permute.xlu0 %3132
  %3136 = vset.pattern.permute.xlu0 1
  %3137 = vperm.xlu0 %3136, %v972
  %v3138 = vpop.permute.xlu0 %3137
  %3141 = vset.pattern.permute.xlu0 1
  %3142 = vperm.xlu0 %3141, %v973
  %v3143 = vpop.permute.xlu0 %3142
  %3146 = vset.pattern.permute.xlu0 1
  %3147 = vperm.xlu0 %3146, %v974
  %v3148 = vpop.permute.xlu0 %3147
  %3151 = vset.pattern.permute.xlu0 1
  %3152 = vperm.xlu0 %3151, %v975
  %v3153 = vpop.permute.xlu0 %3152
  %3156 = vset.pattern.permute.xlu0 1
  %3157 = vperm.xlu0 %3156, %v976
  %v3158 = vpop.permute.xlu0 %3157
  %3161 = vset.pattern.permute.xlu0 1
  %3162 = vperm.xlu0 %3161, %v977
  %v3163 = vpop.permute.xlu0 %3162
  %3166 = vset.pattern.permute.xlu0 1
  %3167 = vperm.xlu0 %3166, %v978
  %v3168 = vpop.permute.xlu0 %3167
  %3171 = vset.pattern.permute.xlu0 1
  %3172 = vperm.xlu0 %3171, %v979
  %v3173 = vpop.permute.xlu0 %3172
  %3176 = vset.pattern.permute.xlu0 1
  %3177 = vperm.xlu0 %3176, %v980
  %v3178 = vpop.permute.xlu0 %3177
  %3181 = vset.pattern.permute.xlu0 1
  %3182 = vperm.xlu0 %3181, %v981
  %v3183 = vpop.permute.xlu0 %3182
  %3186 = vset.pattern.permute.xlu0 1
  %3187 = vperm.xlu0 %3186, %v982
  %v3188 = vpop.permute.xlu0 %3187
  %3191 = vset.pattern.permute.xlu0 1
  %3192 = vperm.xlu0 %3191, %v983
  %v3193 = vpop.permute.xlu0 %3192
  %3196 = vset.pattern.permute.xlu0 1
  %3197 = vperm.xlu0 %3196, %v984
  %v3198 = vpop.permute.xlu0 %3197
  %3201 = vset.pattern.permute.xlu0 1
  %3202 = vperm.xlu0 %3201, %v985
  %v3203 = vpop.permute.xlu0 %3202
  %3206 = vset.pattern.permute.xlu0 1
  %3207 = vperm.xlu0 %3206, %v986
  %v3208 = vpop.permute.xlu0 %3207
  %3211 = vset.pattern.permute.xlu0 1
  %3212 = vperm.xlu0 %3211, %v987
  %v3213 = vpop.permute.xlu0 %3212
  %3216 = vset.pattern.permute.xlu0 1
  %3217 = vperm.xlu0 %3216, %v988
  %v3218 = vpop.permute.xlu0 %3217
  %3221 = vset.pattern.permute.xlu0 1
  %3222 = vperm.xlu0 %3221, %v989
  %v3223 = vpop.permute.xlu0 %3222
  %3226 = vset.pattern.permute.xlu0 1
  %3227 = vperm.xlu0 %3226, %v990
  %v3228 = vpop.permute.xlu0 %3227
  %3231 = vset.pattern.permute.xlu0 1
  %3232 = vperm.xlu0 %3231, %v991
  %v3233 = vpop.permute.xlu0 %3232
  %3236 = vset.pattern.permute.xlu0 1
  %3237 = vperm.xlu0 %3236, %v992
  %v3238 = vpop.permute.xlu0 %3237
  %3241 = vset.pattern.permute.xlu0 1
  %3242 = vperm.xlu0 %3241, %v993
  %v3243 = vpop.permute.xlu0 %3242
  %3246 = vset.pattern.permute.xlu0 1
  %3247 = vperm.xlu0 %3246, %v994
  %v3248 = vpop.permute.xlu0 %3247
  %3251 = vset.pattern.permute.xlu0 1
  %3252 = vperm.xlu0 %3251, %v995
  %v3253 = vpop.permute.xlu0 %3252
  %3256 = vset.pattern.permute.xlu0 1
  %3257 = vperm.xlu0 %3256, %v996
  %v3258 = vpop.permute.xlu0 %3257
  %3261 = vset.pattern.permute.xlu0 1
  %3262 = vperm.xlu0 %3261, %v997
  %v3263 = vpop.permute.xlu0 %3262
  %3266 = vset.pattern.permute.xlu0 1
  %3267 = vperm.xlu0 %3266, %v998
  %v3268 = vpop.permute.xlu0 %3267
  %3271 = vset.pattern.permute.xlu0 1
  %3272 = vperm.xlu0 %3271, %v999
  %v3273 = vpop.permute.xlu0 %3272
  %3276 = vset.pattern.permute.xlu0 1
  %3277 = vperm.xlu0 %3276, %v1000
  %v3278 = vpop.permute.xlu0 %3277
  %3281 = vset.pattern.permute.xlu0 1
  %3282 = vperm.xlu0 %3281, %v1001
  %v3283 = vpop.permute.xlu0 %3282
  %3286 = vset.pattern.permute.xlu0 1
  %3287 = vperm.xlu0 %3286, %v1002
  %v3288 = vpop.permute.xlu0 %3287
  %3291 = vset.pattern.permute.xlu0 1
  %3292 = vperm.xlu0 %3291, %v1003
  %v3293 = vpop.permute.xlu0 %3292
  %3296 = vset.pattern.permute.xlu0 1
  %3297 = vperm.xlu0 %3296, %v1004
  %v3298 = vpop.permute.xlu0 %3297
  %3301 = vset.pattern.permute.xlu0 1
  %3302 = vperm.xlu0 %3301, %v1005
  %v3303 = vpop.permute.xlu0 %3302
  %3306 = vset.pattern.permute.xlu0 1
  %3307 = vperm.xlu0 %3306, %v1006
  %v3308 = vpop.permute.xlu0 %3307
  %3311 = vset.pattern.permute.xlu0 1
  %3312 = vperm.xlu0 %3311, %v1007
  %v3313 = vpop.permute.xlu0 %3312
  %3316 = vset.pattern.permute.xlu0 1
  %3317 = vperm.xlu0 %3316, %v1008
  %v3318 = vpop.permute.xlu0 %3317
  %3321 = vset.pattern.permute.xlu0 1
  %3322 = vperm.xlu0 %3321, %v1009
  %v3323 = vpop.permute.xlu0 %3322
  %3326 = vset.pattern.permute.xlu0 1
  %3327 = vperm.xlu0 %3326, %v1010
  %v3328 = vpop.permute.xlu0 %3327
  %3331 = vset.pattern.permute.xlu0 1
  %3332 = vperm.xlu0 %3331, %v1011
  %v3333 = vpop.permute.xlu0 %3332
  %3336 = vset.pattern.permute.xlu0 1
  %3337 = vperm.xlu0 %3336, %v1012
  %v3338 = vpop.permute.xlu0 %3337
  %3341 = vset.pattern.permute.xlu0 1
  %3342 = vperm.xlu0 %3341, %v1013
  %v3343 = vpop.permute.xlu0 %3342
  %3346 = vset.pattern.permute.xlu0 1
  %3347 = vperm.xlu0 %3346, %v1014
  %v3348 = vpop.permute.xlu0 %3347
  %3351 = vset.pattern.permute.xlu0 1
  %3352 = vperm.xlu0 %3351, %v1015
  %v3353 = vpop.permute.xlu0 %3352
  %3356 = vset.pattern.permute.xlu0 1
  %3357 = vperm.xlu0 %3356, %v1016
  %v3358 = vpop.permute.xlu0 %3357
  %v3360 = vadd.f32 %v3060, %v3113
  %v3361 = vadd.f32 %v3061, %v3118
  %v3362 = vadd.f32 %v3062, %v3123
  %v3363 = vadd.f32 %v3063, %v3128
  %v3364 = vadd.f32 %v3064, %v3133
  %v3365 = vadd.f32 %v3065, %v3138
  %v3366 = vadd.f32 %v3066, %v3143
  %v3367 = vadd.f32 %v3067, %v3148
  %v3368 = vadd.f32 %v3068, %v3153
  %v3369 = vadd.f32 %v3069, %v3158
  %v3370 = vadd.f32 %v3070, %v3163
  %v3371 = vadd.f32 %v3071, %v3168
  %v3372 = vadd.f32 %v3072, %v3173
  %v3373 = vadd.f32 %v3073, %v3178
  %v3374 = vadd.f32 %v3074, %v3183
  %v3375 = vadd.f32 %v3075, %v3188
  %v3376 = vadd.f32 %v3076, %v3193
  %v3377 = vadd.f32 %v3077, %v3198
  %v3378 = vadd.f32 %v3078, %v3203
  %v3379 = vadd.f32 %v3079, %v3208
  %v3380 = vadd.f32 %v3080, %v3213
  %v3381 = vadd.f32 %v3081, %v3218
  %v3382 = vadd.f32 %v3082, %v3223
  %v3383 = vadd.f32 %v3083, %v3228
  %v3384 = vadd.f32 %v3084, %v3233
  %v3385 = vadd.f32 %v3085, %v3238
  %v3386 = vadd.f32 %v3086, %v3243
  %v3387 = vadd.f32 %v3087, %v3248
  %v3388 = vadd.f32 %v3088, %v3253
  %v3389 = vadd.f32 %v3089, %v3258
  %v3390 = vadd.f32 %v3090, %v3263
  %v3391 = vadd.f32 %v3091, %v3268
  %v3392 = vadd.f32 %v3092, %v3273
  %v3393 = vadd.f32 %v3093, %v3278
  %v3394 = vadd.f32 %v3094, %v3283
  %v3395 = vadd.f32 %v3095, %v3288
  %v3396 = vadd.f32 %v3096, %v3293
  %v3397 = vadd.f32 %v3097, %v3298
  %v3398 = vadd.f32 %v3098, %v3303
  %v3399 = vadd.f32 %v3099, %v3308
  %v3400 = vadd.f32 %v3100, %v3313
  %v3401 = vadd.f32 %v3101, %v3318
  %v3402 = vadd.f32 %v3102, %v3323
  %v3403 = vadd.f32 %v3103, %v3328
  %v3404 = vadd.f32 %v3104, %v3333
  %v3405 = vadd.f32 %v3105, %v3338
  %v3406 = vadd.f32 %v3106, %v3343
  %v3407 = vadd.f32 %v3107, %v3348
  %v3408 = vadd.f32 %v3108, %v3353
  %v3409 = vadd.f32 %v3109, %v3358
  %v3410 = vadd.f32 %v3360, %v917
  %v3411 = vadd.f32 %v3361, %v918
  %v3412 = vadd.f32 %v3362, %v919
  %v3413 = vadd.f32 %v3363, %v920
  %v3414 = vadd.f32 %v3364, %v921
  %v3415 = vadd.f32 %v3365, %v922
  %v3416 = vadd.f32 %v3366, %v923
  %v3417 = vadd.f32 %v3367, %v924
  %v3418 = vadd.f32 %v3368, %v925
  %v3419 = vadd.f32 %v3369, %v926
  %v3420 = vadd.f32 %v3370, %v927
  %v3421 = vadd.f32 %v3371, %v928
  %v3422 = vadd.f32 %v3372, %v929
  %v3423 = vadd.f32 %v3373, %v930
  %v3424 = vadd.f32 %v3374, %v931
  %v3425 = vadd.f32 %v3375, %v932
  %v3426 = vadd.f32 %v3376, %v933
  %v3427 = vadd.f32 %v3377, %v934
  %v3428 = vadd.f32 %v3378, %v935
  %v3429 = vadd.f32 %v3379, %v936
  %v3430 = vadd.f32 %v3380, %v937
  %v3431 = vadd.f32 %v3381, %v938
  %v3432 = vadd.f32 %v3382, %v939
  %v3433 = vadd.f32 %v3383, %v940
  %v3434 = vadd.f32 %v3384, %v941
  %v3435 = vadd.f32 %v3385, %v942
  %v3436 = vadd.f32 %v3386, %v943
  %v3437 = vadd.f32 %v3387, %v944
  %v3438 = vadd.f32 %v3388, %v945
  %v3439 = vadd.f32 %v3389, %v946
  %v3440 = vadd.f32 %v3390, %v947
  %v3441 = vadd.f32 %v3391, %v948
  %v3442 = vadd.f32 %v3392, %v949
  %v3443 = vadd.f32 %v3393, %v950
  %v3444 = vadd.f32 %v3394, %v951
  %v3445 = vadd.f32 %v3395, %v952
  %v3446 = vadd.f32 %v3396, %v953
  %v3447 = vadd.f32 %v3397, %v954
  %v3448 = vadd.f32 %v3398, %v955
  %v3449 = vadd.f32 %v3399, %v956
  %v3450 = vadd.f32 %v3400, %v957
  %v3451 = vadd.f32 %v3401, %v958
  %v3452 = vadd.f32 %v3402, %v959
  %v3453 = vadd.f32 %v3403, %v960
  %v3454 = vadd.f32 %v3404, %v961
  %v3455 = vadd.f32 %v3405, %v962
  %v3456 = vadd.f32 %v3406, %v963
  %v3457 = vadd.f32 %v3407, %v964
  %v3458 = vadd.f32 %v3408, %v965
  %v3459 = vadd.f32 %v3409, %v966
  %v3460 = vmax.f32 %v3410, 0.0
  %v3461 = vmax.f32 %v3411, 0.0
  %v3462 = vmax.f32 %v3412, 0.0
  %v3463 = vmax.f32 %v3413, 0.0
  %v3464 = vmax.f32 %v3414, 0.0
  %v3465 = vmax.f32 %v3415, 0.0
  %v3466 = vmax.f32 %v3416, 0.0
  %v3467 = vmax.f32 %v3417, 0.0
  %v3468 = vmax.f32 %v3418, 0.0
  %v3469 = vmax.f32 %v3419, 0.0
  %v3470 = vmax.f32 %v3420, 0.0
  %v3471 = vmax.f32 %v3421, 0.0
  %v3472 = vmax.f32 %v3422, 0.0
  %v3473 = vmax.f32 %v3423, 0.0
  %v3474 = vmax.f32 %v3424, 0.0
  %v3475 = vmax.f32 %v3425, 0.0
  %v3476 = vmax.f32 %v3426, 0.0
  %v3477 = vmax.f32 %v3427, 0.0
  %v3478 = vmax.f32 %v3428, 0.0
  %v3479 = vmax.f32 %v3429, 0.0
  %v3480 = vmax.f32 %v3430, 0.0
  %v3481 = vmax.f32 %v3431, 0.0
  %v3482 = vmax.f32 %v3432, 0.0
  %v3483 = vmax.f32 %v3433, 0.0
  %v3484 = vmax.f32 %v3434, 0.0
  %v3485 = vmax.f32 %v3435, 0.0
  %v3486 = vmax.f32 %v3436, 0.0
  %v3487 = vmax.f32 %v3437, 0.0
  %v3488 = vmax.f32 %v3438, 0.0
  %v3489 = vmax.f32 %v3439, 0.0
  %v3490 = vmax.f32 %v3440, 0.0
  %v3491 = vmax.f32 %v3441, 0.0
  %v3492 = vmax.f32 %v3442, 0.0
  %v3493 = vmax.f32 %v3443, 0.0
  %v3494 = vmax.f32 %v3444, 0.0
  %v3495 = vmax.f32 %v3445, 0.0
  %v3496 = vmax.f32 %v3446, 0.0
  %v3497 = vmax.f32 %v3447, 0.0
  %v3498 = vmax.f32 %v3448, 0.0
  %v3499 = vmax.f32 %v3449, 0.0
  %v3500 = vmax.f32 %v3450, 0.0
  %v3501 = vmax.f32 %v3451, 0.0
  %v3502 = vmax.f32 %v3452, 0.0
  %v3503 = vmax.f32 %v3453, 0.0
  %v3504 = vmax.f32 %v3454, 0.0
  %v3505 = vmax.f32 %v3455, 0.0
  %v3506 = vmax.f32 %v3456, 0.0
  %v3507 = vmax.f32 %v3457, 0.0
  %v3508 = vmax.f32 %v3458, 0.0
  %v3509 = vmax.f32 %v3459, 0.0
  %s3510 = smul.u32 4, 50
  %s3511 = smul.u32 %s3510, 4
  %s3512 = sshll.u32 %s3511, 4
  %3513 = dma.done [#allocation3], %s3512
  %v3514 = vld [vmem:[#allocation2] sm:$0xff]
  %v3515 = vld [vmem:[#allocation2 + $0x8] sm:$0xff]
  %v3516 = vld [vmem:[#allocation2 + $0x10] sm:$0xff]
  %v3517 = vld [vmem:[#allocation2 + $0x18] sm:$0xff]
  %v3518 = vld [vmem:[#allocation2 + $0x20] sm:$0xff]
  %v3519 = vld [vmem:[#allocation2 + $0x28] sm:$0xff]
  %v3520 = vld [vmem:[#allocation2 + $0x30] sm:$0xff]
  %v3521 = vld [vmem:[#allocation2 + $0x38] sm:$0xff]
  %v3522 = vld [vmem:[#allocation2 + $0x40] sm:$0xff]
  %v3523 = vld [vmem:[#allocation2 + $0x48] sm:$0xff]
  %v3524 = vld [vmem:[#allocation2 + $0x50] sm:$0xff]
  %v3525 = vld [vmem:[#allocation2 + $0x58] sm:$0xff]
  %v3526 = vld [vmem:[#allocation2 + $0x60] sm:$0xff]
  %v3527 = vld [vmem:[#allocation2 + $0x68] sm:$0xff]
  %v3528 = vld [vmem:[#allocation2 + $0x70] sm:$0xff]
  %v3529 = vld [vmem:[#allocation2 + $0x78] sm:$0xff]
  %v3530 = vld [vmem:[#allocation2 + $0x80] sm:$0xff]
  %v3531 = vld [vmem:[#allocation2 + $0x88] sm:$0xff]
  %v3532 = vld [vmem:[#allocation2 + $0x90] sm:$0xff]
  %v3533 = vld [vmem:[#allocation2 + $0x98] sm:$0xff]
  %v3534 = vld [vmem:[#allocation2 + $0xa0] sm:$0xff]
  %v3535 = vld [vmem:[#allocation2 + $0xa8] sm:$0xff]
  %v3536 = vld [vmem:[#allocation2 + $0xb0] sm:$0xff]
  %v3537 = vld [vmem:[#allocation2 + $0xb8] sm:$0xff]
  %v3538 = vld [vmem:[#allocation2 + $0xc0] sm:$0xff]
  %v3539 = vld [vmem:[#allocation2 + $0xc8] sm:$0xff]
  %v3540 = vld [vmem:[#allocation2 + $0xd0] sm:$0xff]
  %v3541 = vld [vmem:[#allocation2 + $0xd8] sm:$0xff]
  %v3542 = vld [vmem:[#allocation2 + $0xe0] sm:$0xff]
  %v3543 = vld [vmem:[#allocation2 + $0xe8] sm:$0xff]
  %v3544 = vld [vmem:[#allocation2 + $0xf0] sm:$0xff]
  %v3545 = vld [vmem:[#allocation2 + $0xf8] sm:$0xff]
  %v3546 = vld [vmem:[#allocation2 + $0x100] sm:$0xff]
  %v3547 = vld [vmem:[#allocation2 + $0x108] sm:$0xff]
  %v3548 = vld [vmem:[#allocation2 + $0x110] sm:$0xff]
  %v3549 = vld [vmem:[#allocation2 + $0x118] sm:$0xff]
  %v3550 = vld [vmem:[#allocation2 + $0x120] sm:$0xff]
  %v3551 = vld [vmem:[#allocation2 + $0x128] sm:$0xff]
  %v3552 = vld [vmem:[#allocation2 + $0x130] sm:$0xff]
  %v3553 = vld [vmem:[#allocation2 + $0x138] sm:$0xff]
  %v3554 = vld [vmem:[#allocation2 + $0x140] sm:$0xff]
  %v3555 = vld [vmem:[#allocation2 + $0x148] sm:$0xff]
  %v3556 = vld [vmem:[#allocation2 + $0x150] sm:$0xff]
  %v3557 = vld [vmem:[#allocation2 + $0x158] sm:$0xff]
  %v3558 = vld [vmem:[#allocation2 + $0x160] sm:$0xff]
  %v3559 = vld [vmem:[#allocation2 + $0x168] sm:$0xff]
  %v3560 = vld [vmem:[#allocation2 + $0x170] sm:$0xff]
  %v3561 = vld [vmem:[#allocation2 + $0x178] sm:$0xff]
  %v3562 = vld [vmem:[#allocation2 + $0x180] sm:$0xff]
  %v3563 = vld [vmem:[#allocation2 + $0x188] sm:$0xff]
  %v3564 = vld [vmem:[#allocation2 + $0x190] sm:$0xff]
  %v3565 = vld [vmem:[#allocation2 + $0x198] sm:$0xff]
  %v3566 = vld [vmem:[#allocation2 + $0x1a0] sm:$0xff]
  %v3567 = vld [vmem:[#allocation2 + $0x1a8] sm:$0xff]
  %v3568 = vld [vmem:[#allocation2 + $0x1b0] sm:$0xff]
  %v3569 = vld [vmem:[#allocation2 + $0x1b8] sm:$0xff]
  %v3570 = vld [vmem:[#allocation2 + $0x1c0] sm:$0xff]
  %v3571 = vld [vmem:[#allocation2 + $0x1c8] sm:$0xff]
  %v3572 = vld [vmem:[#allocation2 + $0x1d0] sm:$0xff]
  %v3573 = vld [vmem:[#allocation2 + $0x1d8] sm:$0xff]
  %v3574 = vld [vmem:[#allocation2 + $0x1e0] sm:$0xff]
  %v3575 = vld [vmem:[#allocation2 + $0x1e8] sm:$0xff]
  %v3576 = vld [vmem:[#allocation2 + $0x1f0] sm:$0xff]
  %v3577 = vld [vmem:[#allocation2 + $0x1f8] sm:$0xff]
  %v3578 = vld [vmem:[#allocation2 + $0x200] sm:$0xff]
  %v3579 = vld [vmem:[#allocation2 + $0x208] sm:$0xff]
  %v3580 = vld [vmem:[#allocation2 + $0x210] sm:$0xff]
  %v3581 = vld [vmem:[#allocation2 + $0x218] sm:$0xff]
  %v3582 = vld [vmem:[#allocation2 + $0x220] sm:$0xff]
  %v3583 = vld [vmem:[#allocation2 + $0x228] sm:$0xff]
  %v3584 = vld [vmem:[#allocation2 + $0x230] sm:$0xff]
  %v3585 = vld [vmem:[#allocation2 + $0x238] sm:$0xff]
  %v3586 = vld [vmem:[#allocation2 + $0x240] sm:$0xff]
  %v3587 = vld [vmem:[#allocation2 + $0x248] sm:$0xff]
  %v3588 = vld [vmem:[#allocation2 + $0x250] sm:$0xff]
  %v3589 = vld [vmem:[#allocation2 + $0x258] sm:$0xff]
  %v3590 = vld [vmem:[#allocation2 + $0x260] sm:$0xff]
  %v3591 = vld [vmem:[#allocation2 + $0x268] sm:$0xff]
  %v3592 = vld [vmem:[#allocation2 + $0x270] sm:$0xff]
  %v3593 = vld [vmem:[#allocation2 + $0x278] sm:$0xff]
  %v3594 = vld [vmem:[#allocation2 + $0x280] sm:$0xff]
  %v3595 = vld [vmem:[#allocation2 + $0x288] sm:$0xff]
  %v3596 = vld [vmem:[#allocation2 + $0x290] sm:$0xff]
  %v3597 = vld [vmem:[#allocation2 + $0x298] sm:$0xff]
  %v3598 = vld [vmem:[#allocation2 + $0x2a0] sm:$0xff]
  %v3599 = vld [vmem:[#allocation2 + $0x2a8] sm:$0xff]
  %v3600 = vld [vmem:[#allocation2 + $0x2b0] sm:$0xff]
  %v3601 = vld [vmem:[#allocation2 + $0x2b8] sm:$0xff]
  %v3602 = vld [vmem:[#allocation2 + $0x2c0] sm:$0xff]
  %v3603 = vld [vmem:[#allocation2 + $0x2c8] sm:$0xff]
  %v3604 = vld [vmem:[#allocation2 + $0x2d0] sm:$0xff]
  %v3605 = vld [vmem:[#allocation2 + $0x2d8] sm:$0xff]
  %v3606 = vld [vmem:[#allocation2 + $0x2e0] sm:$0xff]
  %v3607 = vld [vmem:[#allocation2 + $0x2e8] sm:$0xff]
  %v3608 = vld [vmem:[#allocation2 + $0x2f0] sm:$0xff]
  %v3609 = vld [vmem:[#allocation2 + $0x2f8] sm:$0xff]
  %v3610 = vld [vmem:[#allocation2 + $0x300] sm:$0xff]
  %v3611 = vld [vmem:[#allocation2 + $0x308] sm:$0xff]
  %v3612 = vld [vmem:[#allocation2 + $0x310] sm:$0xff]
  %v3613 = vld [vmem:[#allocation2 + $0x318] sm:$0xff]
  %v3614 = vpack.c.bf16 %v3461, %v3460
  %v3615 = vpack.c.bf16 %v3463, %v3462
  %v3616 = vpack.c.bf16 %v3465, %v3464
  %v3617 = vpack.c.bf16 %v3467, %v3466
  %v3618 = vpack.c.bf16 %v3469, %v3468
  %v3619 = vpack.c.bf16 %v3471, %v3470
  %v3620 = vpack.c.bf16 %v3473, %v3472
  %v3621 = vpack.c.bf16 %v3475, %v3474
  %v3622 = vpack.c.bf16 %v3477, %v3476
  %v3623 = vpack.c.bf16 %v3479, %v3478
  %v3624 = vpack.c.bf16 %v3481, %v3480
  %v3625 = vpack.c.bf16 %v3483, %v3482
  %v3626 = vpack.c.bf16 %v3485, %v3484
  %v3627 = vpack.c.bf16 %v3487, %v3486
  %v3628 = vpack.c.bf16 %v3489, %v3488
  %v3629 = vpack.c.bf16 %v3491, %v3490
  %v3630 = vpack.c.bf16 %v3493, %v3492
  %v3631 = vpack.c.bf16 %v3495, %v3494
  %v3632 = vpack.c.bf16 %v3497, %v3496
  %v3633 = vpack.c.bf16 %v3499, %v3498
  %v3634 = vpack.c.bf16 %v3501, %v3500
  %v3635 = vpack.c.bf16 %v3503, %v3502
  %v3636 = vpack.c.bf16 %v3505, %v3504
  %v3637 = vpack.c.bf16 %v3507, %v3506
  %v3638 = vpack.c.bf16 %v3509, %v3508
  %v3640 = vsel %vm1617, %v3517, 0
  %v3643 = vsel %vm1617, %v3521, 0
  %v3646 = vsel %vm1617, %v3525, 0
  %v3649 = vsel %vm1617, %v3529, 0
  %v3652 = vsel %vm1617, %v3533, 0
  %v3655 = vsel %vm1617, %v3537, 0
  %v3658 = vsel %vm1617, %v3541, 0
  %v3661 = vsel %vm1617, %v3545, 0
  %v3664 = vsel %vm1617, %v3549, 0
  %v3667 = vsel %vm1617, %v3553, 0
  %v3670 = vsel %vm1617, %v3557, 0
  %v3673 = vsel %vm1617, %v3561, 0
  %v3676 = vsel %vm1617, %v3565, 0
  %v3679 = vsel %vm1617, %v3569, 0
  %v3682 = vsel %vm1617, %v3573, 0
  %v3685 = vsel %vm1617, %v3577, 0
  %v3688 = vsel %vm1617, %v3581, 0
  %v3691 = vsel %vm1617, %v3585, 0
  %v3694 = vsel %vm1617, %v3589, 0
  %v3697 = vsel %vm1617, %v3593, 0
  %v3700 = vsel %vm1617, %v3597, 0
  %v3703 = vsel %vm1617, %v3601, 0
  %v3706 = vsel %vm1617, %v3605, 0
  %v3709 = vsel %vm1617, %v3609, 0
  %v3712 = vsel %vm1617, %v3613, 0
  %3714 = vmatprep.subr.bf16.mxu0 0
  %3715 = vmatpush1.bf16.msra.mxu0 %v3614
  %3716 = vmatprep.subr.bf16.mxu0 0
  %3717 = vmatpush1.bf16.msra.mxu0 %v3615
  %3718 = vmatprep.subr.bf16.mxu0 0
  %3719 = vmatpush1.bf16.msra.mxu0 %v3616
  %3720 = vmatprep.subr.bf16.mxu0 0
  %3721 = vmatpush1.bf16.msra.mxu0 %v3617
  %3722 = vmatprep.subr.bf16.mxu0 0
  %3723 = vmatpush1.bf16.msra.mxu0 %v3618
  %3724 = vmatprep.subr.bf16.mxu0 0
  %3725 = vmatpush1.bf16.msra.mxu0 %v3619
  %3726 = vmatprep.subr.bf16.mxu0 0
  %3727 = vmatpush1.bf16.msra.mxu0 %v3620
  %3728 = vmatprep.subr.bf16.mxu0 0
  %3729 = vmatpush1.bf16.msra.mxu0 %v3621
  %3730 = vmatprep.subr.bf16.mxu0 0
  %3731 = vmatpush1.bf16.msra.mxu0 %v3622
  %3732 = vmatprep.subr.bf16.mxu0 0
  %3733 = vmatpush1.bf16.msra.mxu0 %v3623
  %3734 = vmatprep.subr.bf16.mxu0 0
  %3735 = vmatpush1.bf16.msra.mxu0 %v3624
  %3736 = vmatprep.subr.bf16.mxu0 0
  %3737 = vmatpush1.bf16.msra.mxu0 %v3625
  %3738 = vmatprep.subr.bf16.mxu0 0
  %3739 = vmatpush1.bf16.msra.mxu0 %v3626
  %3740 = vmatprep.subr.bf16.mxu0 0
  %3741 = vmatpush1.bf16.msra.mxu0 %v3627
  %3742 = vmatprep.subr.bf16.mxu0 0
  %3743 = vmatpush1.bf16.msra.mxu0 %v3628
  %3744 = vmatprep.subr.bf16.mxu0 0
  %3745 = vmatpush1.bf16.msra.mxu0 %v3629
  %3746 = vmatprep.mubr.bf16.mxu0 %v3515
  %3747 = vmatmul.mubr.bf16.gmra.mrb[0].mxu0 %v3514
  %v3748 = vpop.f32.mrb[0].mxu0
  %v3749 = vadd.f32 0.0, %v3748
  %v3750 = vpop.f32.mrb[0].mxu0
  %v3751 = vpop.f32.mrb[0].mxu0
  %v3752 = vadd.f32 0.0, %v3751
  %v3753 = vpop.f32.mrb[0].mxu0
  %3754 = vmatprep.mubr.bf16.mxu0 %v3519
  %3755 = vmatmul.mubr.bf16.gmra.mrb[0].mxu0 %v3518
  %v3756 = vpop.f32.mrb[0].mxu0
  %v3757 = vadd.f32 0.0, %v3756
  %v3758 = vpop.f32.mrb[0].mxu0
  %v3759 = vpop.f32.mrb[0].mxu0
  %v3760 = vadd.f32 0.0, %v3759
  %v3761 = vpop.f32.mrb[0].mxu0
  %3762 = vmatprep.mubr.bf16.mxu0 %v3523
  %3763 = vmatmul.mubr.bf16.gmra.mrb[0].mxu0 %v3522
  %v3764 = vpop.f32.mrb[0].mxu0
  %v3765 = vadd.f32 0.0, %v3764
  %v3766 = vpop.f32.mrb[0].mxu0
  %v3767 = vpop.f32.mrb[0].mxu0
  %v3768 = vadd.f32 0.0, %v3767
  %v3769 = vpop.f32.mrb[0].mxu0
  %3770 = vmatprep.mubr.bf16.mxu0 %v3527
  %3771 = vmatmul.mubr.bf16.gmra.mrb[0].mxu0 %v3526
  %v3772 = vpop.f32.mrb[0].mxu0
  %v3773 = vadd.f32 0.0, %v3772
  %v3774 = vpop.f32.mrb[0].mxu0
  %v3775 = vpop.f32.mrb[0].mxu0
  %v3776 = vadd.f32 0.0, %v3775
  %v3777 = vpop.f32.mrb[0].mxu0
  %3778 = vmatprep.mubr.bf16.mxu0 %v3531
  %3779 = vmatmul.mubr.bf16.gmra.mrb[0].mxu0 %v3530
  %v3780 = vpop.f32.mrb[0].mxu0
  %v3781 = vadd.f32 0.0, %v3780
  %v3782 = vpop.f32.mrb[0].mxu0
  %v3783 = vpop.f32.mrb[0].mxu0
  %v3784 = vadd.f32 0.0, %v3783
  %v3785 = vpop.f32.mrb[0].mxu0
  %3786 = vmatprep.mubr.bf16.mxu0 %v3535
  %3787 = vmatmul.mubr.bf16.gmra.mrb[0].mxu0 %v3534
  %v3788 = vpop.f32.mrb[0].mxu0
  %v3789 = vadd.f32 0.0, %v3788
  %v3790 = vpop.f32.mrb[0].mxu0
  %v3791 = vpop.f32.mrb[0].mxu0
  %v3792 = vadd.f32 0.0, %v3791
  %v3793 = vpop.f32.mrb[0].mxu0
  %3794 = vmatprep.mubr.bf16.mxu0 %v3539
  %3795 = vmatmul.mubr.bf16.gmra.mrb[0].mxu0 %v3538
  %v3796 = vpop.f32.mrb[0].mxu0
  %v3797 = vadd.f32 0.0, %v3796
  %v3798 = vpop.f32.mrb[0].mxu0
  %v3799 = vpop.f32.mrb[0].mxu0
  %v3800 = vadd.f32 0.0, %v3799
  %v3801 = vpop.f32.mrb[0].mxu0
  %3802 = vmatprep.mubr.bf16.mxu0 %v3543
  %3803 = vmatmul.mubr.bf16.gmra.mrb[0].mxu0 %v3542
  %v3804 = vpop.f32.mrb[0].mxu0
  %v3805 = vadd.f32 0.0, %v3804
  %v3806 = vpop.f32.mrb[0].mxu0
  %v3807 = vpop.f32.mrb[0].mxu0
  %v3808 = vadd.f32 0.0, %v3807
  %v3809 = vpop.f32.mrb[0].mxu0
  %3810 = vmatprep.mubr.bf16.mxu0 %v3547
  %3811 = vmatmul.mubr.bf16.gmra.mrb[0].mxu0 %v3546
  %v3812 = vpop.f32.mrb[0].mxu0
  %v3813 = vadd.f32 0.0, %v3812
  %v3814 = vpop.f32.mrb[0].mxu0
  %v3815 = vpop.f32.mrb[0].mxu0
  %v3816 = vadd.f32 0.0, %v3815
  %v3817 = vpop.f32.mrb[0].mxu0
  %3818 = vmatprep.mubr.bf16.mxu0 %v3551
  %3819 = vmatmul.mubr.bf16.gmra.mrb[0].mxu0 %v3550
  %v3820 = vpop.f32.mrb[0].mxu0
  %v3821 = vadd.f32 0.0, %v3820
  %v3822 = vpop.f32.mrb[0].mxu0
  %v3823 = vpop.f32.mrb[0].mxu0
  %v3824 = vadd.f32 0.0, %v3823
  %v3825 = vpop.f32.mrb[0].mxu0
  %3826 = vmatprep.mubr.bf16.mxu0 %v3555
  %3827 = vmatmul.mubr.bf16.gmra.mrb[0].mxu0 %v3554
  %v3828 = vpop.f32.mrb[0].mxu0
  %v3829 = vadd.f32 0.0, %v3828
  %v3830 = vpop.f32.mrb[0].mxu0
  %v3831 = vpop.f32.mrb[0].mxu0
  %v3832 = vadd.f32 0.0, %v3831
  %v3833 = vpop.f32.mrb[0].mxu0
  %3834 = vmatprep.mubr.bf16.mxu0 %v3559
  %3835 = vmatmul.mubr.bf16.gmra.mrb[0].mxu0 %v3558
  %v3836 = vpop.f32.mrb[0].mxu0
  %v3837 = vadd.f32 0.0, %v3836
  %v3838 = vpop.f32.mrb[0].mxu0
  %v3839 = vpop.f32.mrb[0].mxu0
  %v3840 = vadd.f32 0.0, %v3839
  %v3841 = vpop.f32.mrb[0].mxu0
  %3842 = vmatprep.mubr.bf16.mxu0 %v3563
  %3843 = vmatmul.mubr.bf16.gmra.mrb[0].mxu0 %v3562
  %v3844 = vpop.f32.mrb[0].mxu0
  %v3845 = vadd.f32 0.0, %v3844
  %v3846 = vpop.f32.mrb[0].mxu0
  %v3847 = vpop.f32.mrb[0].mxu0
  %v3848 = vadd.f32 0.0, %v3847
  %v3849 = vpop.f32.mrb[0].mxu0
  %3850 = vmatprep.mubr.bf16.mxu0 %v3567
  %3851 = vmatmul.mubr.bf16.gmra.mrb[0].mxu0 %v3566
  %v3852 = vpop.f32.mrb[0].mxu0
  %v3853 = vadd.f32 0.0, %v3852
  %v3854 = vpop.f32.mrb[0].mxu0
  %v3855 = vpop.f32.mrb[0].mxu0
  %v3856 = vadd.f32 0.0, %v3855
  %v3857 = vpop.f32.mrb[0].mxu0
  %3858 = vmatprep.mubr.bf16.mxu0 %v3571
  %3859 = vmatmul.mubr.bf16.gmra.mrb[0].mxu0 %v3570
  %v3860 = vpop.f32.mrb[0].mxu0
  %v3861 = vadd.f32 0.0, %v3860
  %v3862 = vpop.f32.mrb[0].mxu0
  %v3863 = vpop.f32.mrb[0].mxu0
  %v3864 = vadd.f32 0.0, %v3863
  %v3865 = vpop.f32.mrb[0].mxu0
  %3866 = vmatprep.mubr.bf16.mxu0 %v3575
  %3867 = vmatmul.mubr.bf16.gmra.mrb[0].mxu0 %v3574
  %v3868 = vpop.f32.mrb[0].mxu0
  %v3869 = vadd.f32 0.0, %v3868
  %v3870 = vpop.f32.mrb[0].mxu0
  %v3871 = vpop.f32.mrb[0].mxu0
  %v3872 = vadd.f32 0.0, %v3871
  %v3873 = vpop.f32.mrb[0].mxu0
  %3874 = vmatprep.mubr.bf16.mxu0 %v3579
  %3875 = vmatmul.mubr.bf16.gmra.mrb[0].mxu0 %v3578
  %v3876 = vpop.f32.mrb[0].mxu0
  %v3877 = vadd.f32 0.0, %v3876
  %v3878 = vpop.f32.mrb[0].mxu0
  %v3879 = vpop.f32.mrb[0].mxu0
  %v3880 = vadd.f32 0.0, %v3879
  %v3881 = vpop.f32.mrb[0].mxu0
  %3882 = vmatprep.mubr.bf16.mxu0 %v3583
  %3883 = vmatmul.mubr.bf16.gmra.mrb[0].mxu0 %v3582
  %v3884 = vpop.f32.mrb[0].mxu0
  %v3885 = vadd.f32 0.0, %v3884
  %v3886 = vpop.f32.mrb[0].mxu0
  %v3887 = vpop.f32.mrb[0].mxu0
  %v3888 = vadd.f32 0.0, %v3887
  %v3889 = vpop.f32.mrb[0].mxu0
  %3890 = vmatprep.mubr.bf16.mxu0 %v3587
  %3891 = vmatmul.mubr.bf16.gmra.mrb[0].mxu0 %v3586
  %v3892 = vpop.f32.mrb[0].mxu0
  %v3893 = vadd.f32 0.0, %v3892
  %v3894 = vpop.f32.mrb[0].mxu0
  %v3895 = vpop.f32.mrb[0].mxu0
  %v3896 = vadd.f32 0.0, %v3895
  %v3897 = vpop.f32.mrb[0].mxu0
  %3898 = vmatprep.mubr.bf16.mxu0 %v3591
  %3899 = vmatmul.mubr.bf16.gmra.mrb[0].mxu0 %v3590
  %v3900 = vpop.f32.mrb[0].mxu0
  %v3901 = vadd.f32 0.0, %v3900
  %v3902 = vpop.f32.mrb[0].mxu0
  %v3903 = vpop.f32.mrb[0].mxu0
  %v3904 = vadd.f32 0.0, %v3903
  %v3905 = vpop.f32.mrb[0].mxu0
  %3906 = vmatprep.mubr.bf16.mxu0 %v3595
  %3907 = vmatmul.mubr.bf16.gmra.mrb[0].mxu0 %v3594
  %v3908 = vpop.f32.mrb[0].mxu0
  %v3909 = vadd.f32 0.0, %v3908
  %v3910 = vpop.f32.mrb[0].mxu0
  %v3911 = vpop.f32.mrb[0].mxu0
  %v3912 = vadd.f32 0.0, %v3911
  %v3913 = vpop.f32.mrb[0].mxu0
  %3914 = vmatprep.mubr.bf16.mxu0 %v3599
  %3915 = vmatmul.mubr.bf16.gmra.mrb[0].mxu0 %v3598
  %v3916 = vpop.f32.mrb[0].mxu0
  %v3917 = vadd.f32 0.0, %v3916
  %v3918 = vpop.f32.mrb[0].mxu0
  %v3919 = vpop.f32.mrb[0].mxu0
  %v3920 = vadd.f32 0.0, %v3919
  %v3921 = vpop.f32.mrb[0].mxu0
  %3922 = vmatprep.mubr.bf16.mxu0 %v3603
  %3923 = vmatmul.mubr.bf16.gmra.mrb[0].mxu0 %v3602
  %v3924 = vpop.f32.mrb[0].mxu0
  %v3925 = vadd.f32 0.0, %v3924
  %v3926 = vpop.f32.mrb[0].mxu0
  %v3927 = vpop.f32.mrb[0].mxu0
  %v3928 = vadd.f32 0.0, %v3927
  %v3929 = vpop.f32.mrb[0].mxu0
  %3930 = vmatprep.mubr.bf16.mxu0 %v3607
  %3931 = vmatmul.mubr.bf16.gmra.mrb[0].mxu0 %v3606
  %v3932 = vpop.f32.mrb[0].mxu0
  %v3933 = vadd.f32 0.0, %v3932
  %v3934 = vpop.f32.mrb[0].mxu0
  %v3935 = vpop.f32.mrb[0].mxu0
  %v3936 = vadd.f32 0.0, %v3935
  %v3937 = vpop.f32.mrb[0].mxu0
  %3938 = vmatprep.mubr.bf16.mxu0 %v3611
  %3939 = vmatmul.mubr.bf16.gmra.mrb[0].mxu0 %v3610
  %v3940 = vpop.f32.mrb[0].mxu0
  %v3941 = vadd.f32 0.0, %v3940
  %v3942 = vpop.f32.mrb[0].mxu0
  %v3943 = vpop.f32.mrb[0].mxu0
  %v3944 = vadd.f32 0.0, %v3943
  %v3945 = vpop.f32.mrb[0].mxu0
  %3946 = vdwg.mxu0
  %3947 = vmatprep.subr.bf16.mxu0 0
  %3948 = vmatpush1.bf16.msra.mxu0 %v3630
  %3949 = vmatprep.subr.bf16.mxu0 0
  %3950 = vmatpush1.bf16.msra.mxu0 %v3631
  %3951 = vmatprep.subr.bf16.mxu0 0
  %3952 = vmatpush1.bf16.msra.mxu0 %v3632
  %3953 = vmatprep.subr.bf16.mxu0 0
  %3954 = vmatpush1.bf16.msra.mxu0 %v3633
  %3955 = vmatprep.subr.bf16.mxu0 0
  %3956 = vmatpush1.bf16.msra.mxu0 %v3634
  %3957 = vmatprep.subr.bf16.mxu0 0
  %3958 = vmatpush1.bf16.msra.mxu0 %v3635
  %3959 = vmatprep.subr.bf16.mxu0 0
  %3960 = vmatpush1.bf16.msra.mxu0 %v3636
  %3961 = vmatprep.subr.bf16.mxu0 0
  %3962 = vmatpush1.bf16.msra.mxu0 %v3637
  %3963 = vmatprep.subr.bf16.mxu0 0
  %3964 = vmatpush1.bf16.msra.mxu0 %v3638
  %3965 = vmatprep.subr.bf16.mxu0 0
  %3966 = vmatpush1.bf16.msra.mxu0 0
  %3967 = vmatprep.subr.bf16.mxu0 0
  %3968 = vmatpush1.bf16.msra.mxu0 0
  %3969 = vmatprep.subr.bf16.mxu0 0
  %3970 = vmatpush1.bf16.msra.mxu0 0
  %3971 = vmatprep.subr.bf16.mxu0 0
  %3972 = vmatpush1.bf16.msra.mxu0 0
  %3973 = vmatprep.subr.bf16.mxu0 0
  %3974 = vmatpush1.bf16.msra.mxu0 0
  %3975 = vmatprep.subr.bf16.mxu0 0
  %3976 = vmatpush1.bf16.msra.mxu0 0
  %3977 = vmatprep.subr.bf16.mxu0 0
  %3978 = vmatpush1.bf16.msra.mxu0 0
  %3979 = vmatprep.mubr.bf16.mxu0 %v3640
  %3980 = vmatmul.mubr.bf16.gmra.mrb[0].mxu0 %v3516
  %v3981 = vpop.f32.mrb[0].mxu0
  %v3982 = vadd.f32 %v3749, %v3981
  %v3983 = vpop.f32.mrb[0].mxu0
  %v3984 = vpop.f32.mrb[0].mxu0
  %v3985 = vadd.f32 %v3752, %v3984
  %v3986 = vpop.f32.mrb[0].mxu0
  %3987 = vmatprep.mubr.bf16.mxu0 %v3643
  %3988 = vmatmul.mubr.bf16.gmra.mrb[0].mxu0 %v3520
  %v3989 = vpop.f32.mrb[0].mxu0
  %v3990 = vadd.f32 %v3757, %v3989
  %v3991 = vpop.f32.mrb[0].mxu0
  %v3992 = vpop.f32.mrb[0].mxu0
  %v3993 = vadd.f32 %v3760, %v3992
  %v3994 = vpop.f32.mrb[0].mxu0
  %3995 = vmatprep.mubr.bf16.mxu0 %v3646
  %3996 = vmatmul.mubr.bf16.gmra.mrb[0].mxu0 %v3524
  %v3997 = vpop.f32.mrb[0].mxu0
  %v3998 = vadd.f32 %v3765, %v3997
  %v3999 = vpop.f32.mrb[0].mxu0
  %v4000 = vpop.f32.mrb[0].mxu0
  %v4001 = vadd.f32 %v3768, %v4000
  %v4002 = vpop.f32.mrb[0].mxu0
  %4003 = vmatprep.mubr.bf16.mxu0 %v3649
  %4004 = vmatmul.mubr.bf16.gmra.mrb[0].mxu0 %v3528
  %v4005 = vpop.f32.mrb[0].mxu0
  %v4006 = vadd.f32 %v3773, %v4005
  %v4007 = vpop.f32.mrb[0].mxu0
  %v4008 = vpop.f32.mrb[0].mxu0
  %v4009 = vadd.f32 %v3776, %v4008
  %v4010 = vpop.f32.mrb[0].mxu0
  %4011 = vmatprep.mubr.bf16.mxu0 %v3652
  %4012 = vmatmul.mubr.bf16.gmra.mrb[0].mxu0 %v3532
  %v4013 = vpop.f32.mrb[0].mxu0
  %v4014 = vadd.f32 %v3781, %v4013
  %v4015 = vpop.f32.mrb[0].mxu0
  %v4016 = vpop.f32.mrb[0].mxu0
  %v4017 = vadd.f32 %v3784, %v4016
  %v4018 = vpop.f32.mrb[0].mxu0
  %4019 = vmatprep.mubr.bf16.mxu0 %v3655
  %4020 = vmatmul.mubr.bf16.gmra.mrb[0].mxu0 %v3536
  %v4021 = vpop.f32.mrb[0].mxu0
  %v4022 = vadd.f32 %v3789, %v4021
  %v4023 = vpop.f32.mrb[0].mxu0
  %v4024 = vpop.f32.mrb[0].mxu0
  %v4025 = vadd.f32 %v3792, %v4024
  %v4026 = vpop.f32.mrb[0].mxu0
  %4027 = vmatprep.mubr.bf16.mxu0 %v3658
  %4028 = vmatmul.mubr.bf16.gmra.mrb[0].mxu0 %v3540
  %v4029 = vpop.f32.mrb[0].mxu0
  %v4030 = vadd.f32 %v3797, %v4029
  %v4031 = vpop.f32.mrb[0].mxu0
  %v4032 = vpop.f32.mrb[0].mxu0
  %v4033 = vadd.f32 %v3800, %v4032
  %v4034 = vpop.f32.mrb[0].mxu0
  %4035 = vmatprep.mubr.bf16.mxu0 %v3661
  %4036 = vmatmul.mubr.bf16.gmra.mrb[0].mxu0 %v3544
  %v4037 = vpop.f32.mrb[0].mxu0
  %v4038 = vadd.f32 %v3805, %v4037
  %v4039 = vpop.f32.mrb[0].mxu0
  %v4040 = vpop.f32.mrb[0].mxu0
  %v4041 = vadd.f32 %v3808, %v4040
  %v4042 = vpop.f32.mrb[0].mxu0
  %4043 = vmatprep.mubr.bf16.mxu0 %v3664
  %4044 = vmatmul.mubr.bf16.gmra.mrb[0].mxu0 %v3548
  %v4045 = vpop.f32.mrb[0].mxu0
  %v4046 = vadd.f32 %v3813, %v4045
  %v4047 = vpop.f32.mrb[0].mxu0
  %v4048 = vpop.f32.mrb[0].mxu0
  %v4049 = vadd.f32 %v3816, %v4048
  %v4050 = vpop.f32.mrb[0].mxu0
  %4051 = vmatprep.mubr.bf16.mxu0 %v3667
  %4052 = vmatmul.mubr.bf16.gmra.mrb[0].mxu0 %v3552
  %v4053 = vpop.f32.mrb[0].mxu0
  %v4054 = vadd.f32 %v3821, %v4053
  %v4055 = vpop.f32.mrb[0].mxu0
  %v4056 = vpop.f32.mrb[0].mxu0
  %v4057 = vadd.f32 %v3824, %v4056
  %v4058 = vpop.f32.mrb[0].mxu0
  %4059 = vmatprep.mubr.bf16.mxu0 %v3670
  %4060 = vmatmul.mubr.bf16.gmra.mrb[0].mxu0 %v3556
  %v4061 = vpop.f32.mrb[0].mxu0
  %v4062 = vadd.f32 %v3829, %v4061
  %v4063 = vpop.f32.mrb[0].mxu0
  %v4064 = vpop.f32.mrb[0].mxu0
  %v4065 = vadd.f32 %v3832, %v4064
  %v4066 = vpop.f32.mrb[0].mxu0
  %4067 = vmatprep.mubr.bf16.mxu0 %v3673
  %4068 = vmatmul.mubr.bf16.gmra.mrb[0].mxu0 %v3560
  %v4069 = vpop.f32.mrb[0].mxu0
  %v4070 = vadd.f32 %v3837, %v4069
  %v4071 = vpop.f32.mrb[0].mxu0
  %v4072 = vpop.f32.mrb[0].mxu0
  %v4073 = vadd.f32 %v3840, %v4072
  %v4074 = vpop.f32.mrb[0].mxu0
  %4075 = vmatprep.mubr.bf16.mxu0 %v3676
  %4076 = vmatmul.mubr.bf16.gmra.mrb[0].mxu0 %v3564
  %v4077 = vpop.f32.mrb[0].mxu0
  %v4078 = vadd.f32 %v3845, %v4077
  %v4079 = vpop.f32.mrb[0].mxu0
  %v4080 = vpop.f32.mrb[0].mxu0
  %v4081 = vadd.f32 %v3848, %v4080
  %v4082 = vpop.f32.mrb[0].mxu0
  %4083 = vmatprep.mubr.bf16.mxu0 %v3679
  %4084 = vmatmul.mubr.bf16.gmra.mrb[0].mxu0 %v3568
  %v4085 = vpop.f32.mrb[0].mxu0
  %v4086 = vadd.f32 %v3853, %v4085
  %v4087 = vpop.f32.mrb[0].mxu0
  %v4088 = vpop.f32.mrb[0].mxu0
  %v4089 = vadd.f32 %v3856, %v4088
  %v4090 = vpop.f32.mrb[0].mxu0
  %4091 = vmatprep.mubr.bf16.mxu0 %v3682
  %4092 = vmatmul.mubr.bf16.gmra.mrb[0].mxu0 %v3572
  %v4093 = vpop.f32.mrb[0].mxu0
  %v4094 = vadd.f32 %v3861, %v4093
  %v4095 = vpop.f32.mrb[0].mxu0
  %v4096 = vpop.f32.mrb[0].mxu0
  %v4097 = vadd.f32 %v3864, %v4096
  %v4098 = vpop.f32.mrb[0].mxu0
  %4099 = vmatprep.mubr.bf16.mxu0 %v3685
  %4100 = vmatmul.mubr.bf16.gmra.mrb[0].mxu0 %v3576
  %v4101 = vpop.f32.mrb[0].mxu0
  %v4102 = vadd.f32 %v3869, %v4101
  %v4103 = vpop.f32.mrb[0].mxu0
  %v4104 = vpop.f32.mrb[0].mxu0
  %v4105 = vadd.f32 %v3872, %v4104
  %v4106 = vpop.f32.mrb[0].mxu0
  %4107 = vmatprep.mubr.bf16.mxu0 %v3688
  %4108 = vmatmul.mubr.bf16.gmra.mrb[0].mxu0 %v3580
  %v4109 = vpop.f32.mrb[0].mxu0
  %v4110 = vadd.f32 %v3877, %v4109
  %v4111 = vpop.f32.mrb[0].mxu0
  %v4112 = vpop.f32.mrb[0].mxu0
  %v4113 = vadd.f32 %v3880, %v4112
  %v4114 = vpop.f32.mrb[0].mxu0
  %4115 = vmatprep.mubr.bf16.mxu0 %v3691
  %4116 = vmatmul.mubr.bf16.gmra.mrb[0].mxu0 %v3584
  %v4117 = vpop.f32.mrb[0].mxu0
  %v4118 = vadd.f32 %v3885, %v4117
  %v4119 = vpop.f32.mrb[0].mxu0
  %v4120 = vpop.f32.mrb[0].mxu0
  %v4121 = vadd.f32 %v3888, %v4120
  %v4122 = vpop.f32.mrb[0].mxu0
  %4123 = vmatprep.mubr.bf16.mxu0 %v3694
  %4124 = vmatmul.mubr.bf16.gmra.mrb[0].mxu0 %v3588
  %v4125 = vpop.f32.mrb[0].mxu0
  %v4126 = vadd.f32 %v3893, %v4125
  %v4127 = vpop.f32.mrb[0].mxu0
  %v4128 = vpop.f32.mrb[0].mxu0
  %v4129 = vadd.f32 %v3896, %v4128
  %v4130 = vpop.f32.mrb[0].mxu0
  %4131 = vmatprep.mubr.bf16.mxu0 %v3697
  %4132 = vmatmul.mubr.bf16.gmra.mrb[0].mxu0 %v3592
  %v4133 = vpop.f32.mrb[0].mxu0
  %v4134 = vadd.f32 %v3901, %v4133
  %v4135 = vpop.f32.mrb[0].mxu0
  %v4136 = vpop.f32.mrb[0].mxu0
  %v4137 = vadd.f32 %v3904, %v4136
  %v4138 = vpop.f32.mrb[0].mxu0
  %4139 = vmatprep.mubr.bf16.mxu0 %v3700
  %4140 = vmatmul.mubr.bf16.gmra.mrb[0].mxu0 %v3596
  %v4141 = vpop.f32.mrb[0].mxu0
  %v4142 = vadd.f32 %v3909, %v4141
  %v4143 = vpop.f32.mrb[0].mxu0
  %v4144 = vpop.f32.mrb[0].mxu0
  %v4145 = vadd.f32 %v3912, %v4144
  %v4146 = vpop.f32.mrb[0].mxu0
  %4147 = vmatprep.mubr.bf16.mxu0 %v3703
  %4148 = vmatmul.mubr.bf16.gmra.mrb[0].mxu0 %v3600
  %v4149 = vpop.f32.mrb[0].mxu0
  %v4150 = vadd.f32 %v3917, %v4149
  %v4151 = vpop.f32.mrb[0].mxu0
  %v4152 = vpop.f32.mrb[0].mxu0
  %v4153 = vadd.f32 %v3920, %v4152
  %v4154 = vpop.f32.mrb[0].mxu0
  %4155 = vmatprep.mubr.bf16.mxu0 %v3706
  %4156 = vmatmul.mubr.bf16.gmra.mrb[0].mxu0 %v3604
  %v4157 = vpop.f32.mrb[0].mxu0
  %v4158 = vadd.f32 %v3925, %v4157
  %v4159 = vpop.f32.mrb[0].mxu0
  %v4160 = vpop.f32.mrb[0].mxu0
  %v4161 = vadd.f32 %v3928, %v4160
  %v4162 = vpop.f32.mrb[0].mxu0
  %4163 = vmatprep.mubr.bf16.mxu0 %v3709
  %4164 = vmatmul.mubr.bf16.gmra.mrb[0].mxu0 %v3608
  %v4165 = vpop.f32.mrb[0].mxu0
  %v4166 = vadd.f32 %v3933, %v4165
  %v4167 = vpop.f32.mrb[0].mxu0
  %v4168 = vpop.f32.mrb[0].mxu0
  %v4169 = vadd.f32 %v3936, %v4168
  %v4170 = vpop.f32.mrb[0].mxu0
  %4171 = vmatprep.mubr.bf16.mxu0 %v3712
  %4172 = vmatmul.mubr.bf16.gmra.mrb[0].mxu0 %v3612
  %v4173 = vpop.f32.mrb[0].mxu0
  %v4174 = vadd.f32 %v3941, %v4173
  %v4175 = vpop.f32.mrb[0].mxu0
  %v4176 = vpop.f32.mrb[0].mxu0
  %v4177 = vadd.f32 %v3944, %v4176
  %v4178 = vpop.f32.mrb[0].mxu0
  %4179 = vdwg.mxu0
  %v4180 = vsel %vm2159, %v3982, 0.0
  %4181 = vadd.xlane.f32.xlu0 %v4180
  %v4182 = vpop.xlane.xlu0 %4181
  %v4183 = vsel %vm2159, %v3985, 0.0
  %4184 = vadd.xlane.f32.xlu0 %v4183
  %v4185 = vpop.xlane.xlu0 %4184
  %v4186 = vsel %vm2159, %v3990, 0.0
  %4187 = vadd.xlane.f32.xlu0 %v4186
  %v4188 = vpop.xlane.xlu0 %4187
  %v4189 = vsel %vm2159, %v3993, 0.0
  %4190 = vadd.xlane.f32.xlu0 %v4189
  %v4191 = vpop.xlane.xlu0 %4190
  %v4192 = vsel %vm2159, %v3998, 0.0
  %4193 = vadd.xlane.f32.xlu0 %v4192
  %v4194 = vpop.xlane.xlu0 %4193
  %v4195 = vsel %vm2159, %v4001, 0.0
  %4196 = vadd.xlane.f32.xlu0 %v4195
  %v4197 = vpop.xlane.xlu0 %4196
  %v4198 = vsel %vm2159, %v4006, 0.0
  %4199 = vadd.xlane.f32.xlu0 %v4198
  %v4200 = vpop.xlane.xlu0 %4199
  %v4201 = vsel %vm2159, %v4009, 0.0
  %4202 = vadd.xlane.f32.xlu0 %v4201
  %v4203 = vpop.xlane.xlu0 %4202
  %v4204 = vsel %vm2159, %v4014, 0.0
  %4205 = vadd.xlane.f32.xlu0 %v4204
  %v4206 = vpop.xlane.xlu0 %4205
  %v4207 = vsel %vm2159, %v4017, 0.0
  %4208 = vadd.xlane.f32.xlu0 %v4207
  %v4209 = vpop.xlane.xlu0 %4208
  %v4210 = vsel %vm2159, %v4022, 0.0
  %4211 = vadd.xlane.f32.xlu0 %v4210
  %v4212 = vpop.xlane.xlu0 %4211
  %v4213 = vsel %vm2159, %v4025, 0.0
  %4214 = vadd.xlane.f32.xlu0 %v4213
  %v4215 = vpop.xlane.xlu0 %4214
  %v4216 = vsel %vm2159, %v4030, 0.0
  %4217 = vadd.xlane.f32.xlu0 %v4216
  %v4218 = vpop.xlane.xlu0 %4217
  %v4219 = vsel %vm2159, %v4033, 0.0
  %4220 = vadd.xlane.f32.xlu0 %v4219
  %v4221 = vpop.xlane.xlu0 %4220
  %v4222 = vsel %vm2159, %v4038, 0.0
  %4223 = vadd.xlane.f32.xlu0 %v4222
  %v4224 = vpop.xlane.xlu0 %4223
  %v4225 = vsel %vm2159, %v4041, 0.0
  %4226 = vadd.xlane.f32.xlu0 %v4225
  %v4227 = vpop.xlane.xlu0 %4226
  %v4228 = vsel %vm2159, %v4046, 0.0
  %4229 = vadd.xlane.f32.xlu0 %v4228
  %v4230 = vpop.xlane.xlu0 %4229
  %v4231 = vsel %vm2159, %v4049, 0.0
  %4232 = vadd.xlane.f32.xlu0 %v4231
  %v4233 = vpop.xlane.xlu0 %4232
  %v4234 = vsel %vm2159, %v4054, 0.0
  %4235 = vadd.xlane.f32.xlu0 %v4234
  %v4236 = vpop.xlane.xlu0 %4235
  %v4237 = vsel %vm2159, %v4057, 0.0
  %4238 = vadd.xlane.f32.xlu0 %v4237
  %v4239 = vpop.xlane.xlu0 %4238
  %v4240 = vsel %vm2159, %v4062, 0.0
  %4241 = vadd.xlane.f32.xlu0 %v4240
  %v4242 = vpop.xlane.xlu0 %4241
  %v4243 = vsel %vm2159, %v4065, 0.0
  %4244 = vadd.xlane.f32.xlu0 %v4243
  %v4245 = vpop.xlane.xlu0 %4244
  %v4246 = vsel %vm2159, %v4070, 0.0
  %4247 = vadd.xlane.f32.xlu0 %v4246
  %v4248 = vpop.xlane.xlu0 %4247
  %v4249 = vsel %vm2159, %v4073, 0.0
  %4250 = vadd.xlane.f32.xlu0 %v4249
  %v4251 = vpop.xlane.xlu0 %4250
  %v4252 = vsel %vm2159, %v4078, 0.0
  %4253 = vadd.xlane.f32.xlu0 %v4252
  %v4254 = vpop.xlane.xlu0 %4253
  %v4255 = vsel %vm2159, %v4081, 0.0
  %4256 = vadd.xlane.f32.xlu0 %v4255
  %v4257 = vpop.xlane.xlu0 %4256
  %v4258 = vsel %vm2159, %v4086, 0.0
  %4259 = vadd.xlane.f32.xlu0 %v4258
  %v4260 = vpop.xlane.xlu0 %4259
  %v4261 = vsel %vm2159, %v4089, 0.0
  %4262 = vadd.xlane.f32.xlu0 %v4261
  %v4263 = vpop.xlane.xlu0 %4262
  %v4264 = vsel %vm2159, %v4094, 0.0
  %4265 = vadd.xlane.f32.xlu0 %v4264
  %v4266 = vpop.xlane.xlu0 %4265
  %v4267 = vsel %vm2159, %v4097, 0.0
  %4268 = vadd.xlane.f32.xlu0 %v4267
  %v4269 = vpop.xlane.xlu0 %4268
  %v4270 = vsel %vm2159, %v4102, 0.0
  %4271 = vadd.xlane.f32.xlu0 %v4270
  %v4272 = vpop.xlane.xlu0 %4271
  %v4273 = vsel %vm2159, %v4105, 0.0
  %4274 = vadd.xlane.f32.xlu0 %v4273
  %v4275 = vpop.xlane.xlu0 %4274
  %v4276 = vsel %vm2159, %v4110, 0.0
  %4277 = vadd.xlane.f32.xlu0 %v4276
  %v4278 = vpop.xlane.xlu0 %4277
  %v4279 = vsel %vm2159, %v4113, 0.0
  %4280 = vadd.xlane.f32.xlu0 %v4279
  %v4281 = vpop.xlane.xlu0 %4280
  %v4282 = vsel %vm2159, %v4118, 0.0
  %4283 = vadd.xlane.f32.xlu0 %v4282
  %v4284 = vpop.xlane.xlu0 %4283
  %v4285 = vsel %vm2159, %v4121, 0.0
  %4286 = vadd.xlane.f32.xlu0 %v4285
  %v4287 = vpop.xlane.xlu0 %4286
  %v4288 = vsel %vm2159, %v4126, 0.0
  %4289 = vadd.xlane.f32.xlu0 %v4288
  %v4290 = vpop.xlane.xlu0 %4289
  %v4291 = vsel %vm2159, %v4129, 0.0
  %4292 = vadd.xlane.f32.xlu0 %v4291
  %v4293 = vpop.xlane.xlu0 %4292
  %v4294 = vsel %vm2159, %v4134, 0.0
  %4295 = vadd.xlane.f32.xlu0 %v4294
  %v4296 = vpop.xlane.xlu0 %4295
  %v4297 = vsel %vm2159, %v4137, 0.0
  %4298 = vadd.xlane.f32.xlu0 %v4297
  %v4299 = vpop.xlane.xlu0 %4298
  %v4300 = vsel %vm2159, %v4142, 0.0
  %4301 = vadd.xlane.f32.xlu0 %v4300
  %v4302 = vpop.xlane.xlu0 %4301
  %v4303 = vsel %vm2159, %v4145, 0.0
  %4304 = vadd.xlane.f32.xlu0 %v4303
  %v4305 = vpop.xlane.xlu0 %4304
  %v4306 = vsel %vm2159, %v4150, 0.0
  %4307 = vadd.xlane.f32.xlu0 %v4306
  %v4308 = vpop.xlane.xlu0 %4307
  %v4309 = vsel %vm2159, %v4153, 0.0
  %4310 = vadd.xlane.f32.xlu0 %v4309
  %v4311 = vpop.xlane.xlu0 %4310
  %v4312 = vsel %vm2159, %v4158, 0.0
  %4313 = vadd.xlane.f32.xlu0 %v4312
  %v4314 = vpop.xlane.xlu0 %4313
  %v4315 = vsel %vm2159, %v4161, 0.0
  %4316 = vadd.xlane.f32.xlu0 %v4315
  %v4317 = vpop.xlane.xlu0 %4316
  %v4318 = vsel %vm2159, %v4166, 0.0
  %4319 = vadd.xlane.f32.xlu0 %v4318
  %v4320 = vpop.xlane.xlu0 %4319
  %v4321 = vsel %vm2159, %v4169, 0.0
  %4322 = vadd.xlane.f32.xlu0 %v4321
  %v4323 = vpop.xlane.xlu0 %4322
  %v4324 = vsel %vm2159, %v4174, 0.0
  %4325 = vadd.xlane.f32.xlu0 %v4324
  %v4326 = vpop.xlane.xlu0 %4325
  %v4327 = vsel %vm2159, %v4177, 0.0
  %4328 = vadd.xlane.f32.xlu0 %v4327
  %v4329 = vpop.xlane.xlu0 %4328
  %v4330 = vmul.f32 %v4182, 0.020408163
  %v4331 = vmul.f32 %v4185, 0.020408163
  %v4332 = vmul.f32 %v4188, 0.020408163
  %v4333 = vmul.f32 %v4191, 0.020408163
  %v4334 = vmul.f32 %v4194, 0.020408163
  %v4335 = vmul.f32 %v4197, 0.020408163
  %v4336 = vmul.f32 %v4200, 0.020408163
  %v4337 = vmul.f32 %v4203, 0.020408163
  %v4338 = vmul.f32 %v4206, 0.020408163
  %v4339 = vmul.f32 %v4209, 0.020408163
  %v4340 = vmul.f32 %v4212, 0.020408163
  %v4341 = vmul.f32 %v4215, 0.020408163
  %v4342 = vmul.f32 %v4218, 0.020408163
  %v4343 = vmul.f32 %v4221, 0.020408163
  %v4344 = vmul.f32 %v4224, 0.020408163
  %v4345 = vmul.f32 %v4227, 0.020408163
  %v4346 = vmul.f32 %v4230, 0.020408163
  %v4347 = vmul.f32 %v4233, 0.020408163
  %v4348 = vmul.f32 %v4236, 0.020408163
  %v4349 = vmul.f32 %v4239, 0.020408163
  %v4350 = vmul.f32 %v4242, 0.020408163
  %v4351 = vmul.f32 %v4245, 0.020408163
  %v4352 = vmul.f32 %v4248, 0.020408163
  %v4353 = vmul.f32 %v4251, 0.020408163
  %v4354 = vmul.f32 %v4254, 0.020408163
  %v4355 = vmul.f32 %v4257, 0.020408163
  %v4356 = vmul.f32 %v4260, 0.020408163
  %v4357 = vmul.f32 %v4263, 0.020408163
  %v4358 = vmul.f32 %v4266, 0.020408163
  %v4359 = vmul.f32 %v4269, 0.020408163
  %v4360 = vmul.f32 %v4272, 0.020408163
  %v4361 = vmul.f32 %v4275, 0.020408163
  %v4362 = vmul.f32 %v4278, 0.020408163
  %v4363 = vmul.f32 %v4281, 0.020408163
  %v4364 = vmul.f32 %v4284, 0.020408163
  %v4365 = vmul.f32 %v4287, 0.020408163
  %v4366 = vmul.f32 %v4290, 0.020408163
  %v4367 = vmul.f32 %v4293, 0.020408163
  %v4368 = vmul.f32 %v4296, 0.020408163
  %v4369 = vmul.f32 %v4299, 0.020408163
  %v4370 = vmul.f32 %v4302, 0.020408163
  %v4371 = vmul.f32 %v4305, 0.020408163
  %v4372 = vmul.f32 %v4308, 0.020408163
  %v4373 = vmul.f32 %v4311, 0.020408163
  %v4374 = vmul.f32 %v4314, 0.020408163
  %v4375 = vmul.f32 %v4317, 0.020408163
  %v4376 = vmul.f32 %v4320, 0.020408163
  %v4377 = vmul.f32 %v4323, 0.020408163
  %v4378 = vmul.f32 %v4326, 0.020408163
  %v4379 = vmul.f32 %v4329, 0.020408163
  %v4380 = vsub.f32 %v3982, %v4330
  %v4381 = vsub.f32 %v3985, %v4331
  %v4382 = vsub.f32 %v3990, %v4332
  %v4383 = vsub.f32 %v3993, %v4333
  %v4384 = vsub.f32 %v3998, %v4334
  %v4385 = vsub.f32 %v4001, %v4335
  %v4386 = vsub.f32 %v4006, %v4336
  %v4387 = vsub.f32 %v4009, %v4337
  %v4388 = vsub.f32 %v4014, %v4338
  %v4389 = vsub.f32 %v4017, %v4339
  %v4390 = vsub.f32 %v4022, %v4340
  %v4391 = vsub.f32 %v4025, %v4341
  %v4392 = vsub.f32 %v4030, %v4342
  %v4393 = vsub.f32 %v4033, %v4343
  %v4394 = vsub.f32 %v4038, %v4344
  %v4395 = vsub.f32 %v4041, %v4345
  %v4396 = vsub.f32 %v4046, %v4346
  %v4397 = vsub.f32 %v4049, %v4347
  %v4398 = vsub.f32 %v4054, %v4348
  %v4399 = vsub.f32 %v4057, %v4349
  %v4400 = vsub.f32 %v4062, %v4350
  %v4401 = vsub.f32 %v4065, %v4351
  %v4402 = vsub.f32 %v4070, %v4352
  %v4403 = vsub.f32 %v4073, %v4353
  %v4404 = vsub.f32 %v4078, %v4354
  %v4405 = vsub.f32 %v4081, %v4355
  %v4406 = vsub.f32 %v4086, %v4356
  %v4407 = vsub.f32 %v4089, %v4357
  %v4408 = vsub.f32 %v4094, %v4358
  %v4409 = vsub.f32 %v4097, %v4359
  %v4410 = vsub.f32 %v4102, %v4360
  %v4411 = vsub.f32 %v4105, %v4361
  %v4412 = vsub.f32 %v4110, %v4362
  %v4413 = vsub.f32 %v4113, %v4363
  %v4414 = vsub.f32 %v4118, %v4364
  %v4415 = vsub.f32 %v4121, %v4365
  %v4416 = vsub.f32 %v4126, %v4366
  %v4417 = vsub.f32 %v4129, %v4367
  %v4418 = vsub.f32 %v4134, %v4368
  %v4419 = vsub.f32 %v4137, %v4369
  %v4420 = vsub.f32 %v4142, %v4370
  %v4421 = vsub.f32 %v4145, %v4371
  %v4422 = vsub.f32 %v4150, %v4372
  %v4423 = vsub.f32 %v4153, %v4373
  %v4424 = vsub.f32 %v4158, %v4374
  %v4425 = vsub.f32 %v4161, %v4375
  %v4426 = vsub.f32 %v4166, %v4376
  %v4427 = vsub.f32 %v4169, %v4377
  %v4428 = vsub.f32 %v4174, %v4378
  %v4429 = vsub.f32 %v4177, %v4379
  %v4430 = vmul.f32 %v4380, %v4380
  %v4431 = vmul.f32 %v4381, %v4381
  %v4432 = vmul.f32 %v4382, %v4382
  %v4433 = vmul.f32 %v4383, %v4383
  %v4434 = vmul.f32 %v4384, %v4384
  %v4435 = vmul.f32 %v4385, %v4385
  %v4436 = vmul.f32 %v4386, %v4386
  %v4437 = vmul.f32 %v4387, %v4387
  %v4438 = vmul.f32 %v4388, %v4388
  %v4439 = vmul.f32 %v4389, %v4389
  %v4440 = vmul.f32 %v4390, %v4390
  %v4441 = vmul.f32 %v4391, %v4391
  %v4442 = vmul.f32 %v4392, %v4392
  %v4443 = vmul.f32 %v4393, %v4393
  %v4444 = vmul.f32 %v4394, %v4394
  %v4445 = vmul.f32 %v4395, %v4395
  %v4446 = vmul.f32 %v4396, %v4396
  %v4447 = vmul.f32 %v4397, %v4397
  %v4448 = vmul.f32 %v4398, %v4398
  %v4449 = vmul.f32 %v4399, %v4399
  %v4450 = vmul.f32 %v4400, %v4400
  %v4451 = vmul.f32 %v4401, %v4401
  %v4452 = vmul.f32 %v4402, %v4402
  %v4453 = vmul.f32 %v4403, %v4403
  %v4454 = vmul.f32 %v4404, %v4404
  %v4455 = vmul.f32 %v4405, %v4405
  %v4456 = vmul.f32 %v4406, %v4406
  %v4457 = vmul.f32 %v4407, %v4407
  %v4458 = vmul.f32 %v4408, %v4408
  %v4459 = vmul.f32 %v4409, %v4409
  %v4460 = vmul.f32 %v4410, %v4410
  %v4461 = vmul.f32 %v4411, %v4411
  %v4462 = vmul.f32 %v4412, %v4412
  %v4463 = vmul.f32 %v4413, %v4413
  %v4464 = vmul.f32 %v4414, %v4414
  %v4465 = vmul.f32 %v4415, %v4415
  %v4466 = vmul.f32 %v4416, %v4416
  %v4467 = vmul.f32 %v4417, %v4417
  %v4468 = vmul.f32 %v4418, %v4418
  %v4469 = vmul.f32 %v4419, %v4419
  %v4470 = vmul.f32 %v4420, %v4420
  %v4471 = vmul.f32 %v4421, %v4421
  %v4472 = vmul.f32 %v4422, %v4422
  %v4473 = vmul.f32 %v4423, %v4423
  %v4474 = vmul.f32 %v4424, %v4424
  %v4475 = vmul.f32 %v4425, %v4425
  %v4476 = vmul.f32 %v4426, %v4426
  %v4477 = vmul.f32 %v4427, %v4427
  %v4478 = vmul.f32 %v4428, %v4428
  %v4479 = vmul.f32 %v4429, %v4429
  %v4480 = vsel %vm2159, %v4430, 0.0
  %4481 = vadd.xlane.f32.xlu0 %v4480
  %v4482 = vpop.xlane.xlu0 %4481
  %v4483 = vsel %vm2159, %v4431, 0.0
  %4484 = vadd.xlane.f32.xlu0 %v4483
  %v4485 = vpop.xlane.xlu0 %4484
  %v4486 = vsel %vm2159, %v4432, 0.0
  %4487 = vadd.xlane.f32.xlu0 %v4486
  %v4488 = vpop.xlane.xlu0 %4487
  %v4489 = vsel %vm2159, %v4433, 0.0
  %4490 = vadd.xlane.f32.xlu0 %v4489
  %v4491 = vpop.xlane.xlu0 %4490
  %v4492 = vsel %vm2159, %v4434, 0.0
  %4493 = vadd.xlane.f32.xlu0 %v4492
  %v4494 = vpop.xlane.xlu0 %4493
  %v4495 = vsel %vm2159, %v4435, 0.0
  %4496 = vadd.xlane.f32.xlu0 %v4495
  %v4497 = vpop.xlane.xlu0 %4496
  %v4498 = vsel %vm2159, %v4436, 0.0
  %4499 = vadd.xlane.f32.xlu0 %v4498
  %v4500 = vpop.xlane.xlu0 %4499
  %v4501 = vsel %vm2159, %v4437, 0.0
  %4502 = vadd.xlane.f32.xlu0 %v4501
  %v4503 = vpop.xlane.xlu0 %4502
  %v4504 = vsel %vm2159, %v4438, 0.0
  %4505 = vadd.xlane.f32.xlu0 %v4504
  %v4506 = vpop.xlane.xlu0 %4505
  %v4507 = vsel %vm2159, %v4439, 0.0
  %4508 = vadd.xlane.f32.xlu0 %v4507
  %v4509 = vpop.xlane.xlu0 %4508
  %v4510 = vsel %vm2159, %v4440, 0.0
  %4511 = vadd.xlane.f32.xlu0 %v4510
  %v4512 = vpop.xlane.xlu0 %4511
  %v4513 = vsel %vm2159, %v4441, 0.0
  %4514 = vadd.xlane.f32.xlu0 %v4513
  %v4515 = vpop.xlane.xlu0 %4514
  %v4516 = vsel %vm2159, %v4442, 0.0
  %4517 = vadd.xlane.f32.xlu0 %v4516
  %v4518 = vpop.xlane.xlu0 %4517
  %v4519 = vsel %vm2159, %v4443, 0.0
  %4520 = vadd.xlane.f32.xlu0 %v4519
  %v4521 = vpop.xlane.xlu0 %4520
  %v4522 = vsel %vm2159, %v4444, 0.0
  %4523 = vadd.xlane.f32.xlu0 %v4522
  %v4524 = vpop.xlane.xlu0 %4523
  %v4525 = vsel %vm2159, %v4445, 0.0
  %4526 = vadd.xlane.f32.xlu0 %v4525
  %v4527 = vpop.xlane.xlu0 %4526
  %v4528 = vsel %vm2159, %v4446, 0.0
  %4529 = vadd.xlane.f32.xlu0 %v4528
  %v4530 = vpop.xlane.xlu0 %4529
  %v4531 = vsel %vm2159, %v4447, 0.0
  %4532 = vadd.xlane.f32.xlu0 %v4531
  %v4533 = vpop.xlane.xlu0 %4532
  %v4534 = vsel %vm2159, %v4448, 0.0
  %4535 = vadd.xlane.f32.xlu0 %v4534
  %v4536 = vpop.xlane.xlu0 %4535
  %v4537 = vsel %vm2159, %v4449, 0.0
  %4538 = vadd.xlane.f32.xlu0 %v4537
  %v4539 = vpop.xlane.xlu0 %4538
  %v4540 = vsel %vm2159, %v4450, 0.0
  %4541 = vadd.xlane.f32.xlu0 %v4540
  %v4542 = vpop.xlane.xlu0 %4541
  %v4543 = vsel %vm2159, %v4451, 0.0
  %4544 = vadd.xlane.f32.xlu0 %v4543
  %v4545 = vpop.xlane.xlu0 %4544
  %v4546 = vsel %vm2159, %v4452, 0.0
  %4547 = vadd.xlane.f32.xlu0 %v4546
  %v4548 = vpop.xlane.xlu0 %4547
  %v4549 = vsel %vm2159, %v4453, 0.0
  %4550 = vadd.xlane.f32.xlu0 %v4549
  %v4551 = vpop.xlane.xlu0 %4550
  %v4552 = vsel %vm2159, %v4454, 0.0
  %4553 = vadd.xlane.f32.xlu0 %v4552
  %v4554 = vpop.xlane.xlu0 %4553
  %v4555 = vsel %vm2159, %v4455, 0.0
  %4556 = vadd.xlane.f32.xlu0 %v4555
  %v4557 = vpop.xlane.xlu0 %4556
  %v4558 = vsel %vm2159, %v4456, 0.0
  %4559 = vadd.xlane.f32.xlu0 %v4558
  %v4560 = vpop.xlane.xlu0 %4559
  %v4561 = vsel %vm2159, %v4457, 0.0
  %4562 = vadd.xlane.f32.xlu0 %v4561
  %v4563 = vpop.xlane.xlu0 %4562
  %v4564 = vsel %vm2159, %v4458, 0.0
  %4565 = vadd.xlane.f32.xlu0 %v4564
  %v4566 = vpop.xlane.xlu0 %4565
  %v4567 = vsel %vm2159, %v4459, 0.0
  %4568 = vadd.xlane.f32.xlu0 %v4567
  %v4569 = vpop.xlane.xlu0 %4568
  %v4570 = vsel %vm2159, %v4460, 0.0
  %4571 = vadd.xlane.f32.xlu0 %v4570
  %v4572 = vpop.xlane.xlu0 %4571
  %v4573 = vsel %vm2159, %v4461, 0.0
  %4574 = vadd.xlane.f32.xlu0 %v4573
  %v4575 = vpop.xlane.xlu0 %4574
  %v4576 = vsel %vm2159, %v4462, 0.0
  %4577 = vadd.xlane.f32.xlu0 %v4576
  %v4578 = vpop.xlane.xlu0 %4577
  %v4579 = vsel %vm2159, %v4463, 0.0
  %4580 = vadd.xlane.f32.xlu0 %v4579
  %v4581 = vpop.xlane.xlu0 %4580
  %v4582 = vsel %vm2159, %v4464, 0.0
  %4583 = vadd.xlane.f32.xlu0 %v4582
  %v4584 = vpop.xlane.xlu0 %4583
  %v4585 = vsel %vm2159, %v4465, 0.0
  %4586 = vadd.xlane.f32.xlu0 %v4585
  %v4587 = vpop.xlane.xlu0 %4586
  %v4588 = vsel %vm2159, %v4466, 0.0
  %4589 = vadd.xlane.f32.xlu0 %v4588
  %v4590 = vpop.xlane.xlu0 %4589
  %v4591 = vsel %vm2159, %v4467, 0.0
  %4592 = vadd.xlane.f32.xlu0 %v4591
  %v4593 = vpop.xlane.xlu0 %4592
  %v4594 = vsel %vm2159, %v4468, 0.0
  %4595 = vadd.xlane.f32.xlu0 %v4594
  %v4596 = vpop.xlane.xlu0 %4595
  %v4597 = vsel %vm2159, %v4469, 0.0
  %4598 = vadd.xlane.f32.xlu0 %v4597
  %v4599 = vpop.xlane.xlu0 %4598
  %v4600 = vsel %vm2159, %v4470, 0.0
  %4601 = vadd.xlane.f32.xlu0 %v4600
  %v4602 = vpop.xlane.xlu0 %4601
  %v4603 = vsel %vm2159, %v4471, 0.0
  %4604 = vadd.xlane.f32.xlu0 %v4603
  %v4605 = vpop.xlane.xlu0 %4604
  %v4606 = vsel %vm2159, %v4472, 0.0
  %4607 = vadd.xlane.f32.xlu0 %v4606
  %v4608 = vpop.xlane.xlu0 %4607
  %v4609 = vsel %vm2159, %v4473, 0.0
  %4610 = vadd.xlane.f32.xlu0 %v4609
  %v4611 = vpop.xlane.xlu0 %4610
  %v4612 = vsel %vm2159, %v4474, 0.0
  %4613 = vadd.xlane.f32.xlu0 %v4612
  %v4614 = vpop.xlane.xlu0 %4613
  %v4615 = vsel %vm2159, %v4475, 0.0
  %4616 = vadd.xlane.f32.xlu0 %v4615
  %v4617 = vpop.xlane.xlu0 %4616
  %v4618 = vsel %vm2159, %v4476, 0.0
  %4619 = vadd.xlane.f32.xlu0 %v4618
  %v4620 = vpop.xlane.xlu0 %4619
  %v4621 = vsel %vm2159, %v4477, 0.0
  %4622 = vadd.xlane.f32.xlu0 %v4621
  %v4623 = vpop.xlane.xlu0 %4622
  %v4624 = vsel %vm2159, %v4478, 0.0
  %4625 = vadd.xlane.f32.xlu0 %v4624
  %v4626 = vpop.xlane.xlu0 %4625
  %v4627 = vsel %vm2159, %v4479, 0.0
  %4628 = vadd.xlane.f32.xlu0 %v4627
  %v4629 = vpop.xlane.xlu0 %4628
  %v4630 = vmul.f32 %v4482, 0.020408163
  %v4631 = vmul.f32 %v4485, 0.020408163
  %v4632 = vmul.f32 %v4488, 0.020408163
  %v4633 = vmul.f32 %v4491, 0.020408163
  %v4634 = vmul.f32 %v4494, 0.020408163
  %v4635 = vmul.f32 %v4497, 0.020408163
  %v4636 = vmul.f32 %v4500, 0.020408163
  %v4637 = vmul.f32 %v4503, 0.020408163
  %v4638 = vmul.f32 %v4506, 0.020408163
  %v4639 = vmul.f32 %v4509, 0.020408163
  %v4640 = vmul.f32 %v4512, 0.020408163
  %v4641 = vmul.f32 %v4515, 0.020408163
  %v4642 = vmul.f32 %v4518, 0.020408163
  %v4643 = vmul.f32 %v4521, 0.020408163
  %v4644 = vmul.f32 %v4524, 0.020408163
  %v4645 = vmul.f32 %v4527, 0.020408163
  %v4646 = vmul.f32 %v4530, 0.020408163
  %v4647 = vmul.f32 %v4533, 0.020408163
  %v4648 = vmul.f32 %v4536, 0.020408163
  %v4649 = vmul.f32 %v4539, 0.020408163
  %v4650 = vmul.f32 %v4542, 0.020408163
  %v4651 = vmul.f32 %v4545, 0.020408163
  %v4652 = vmul.f32 %v4548, 0.020408163
  %v4653 = vmul.f32 %v4551, 0.020408163
  %v4654 = vmul.f32 %v4554, 0.020408163
  %v4655 = vmul.f32 %v4557, 0.020408163
  %v4656 = vmul.f32 %v4560, 0.020408163
  %v4657 = vmul.f32 %v4563, 0.020408163
  %v4658 = vmul.f32 %v4566, 0.020408163
  %v4659 = vmul.f32 %v4569, 0.020408163
  %v4660 = vmul.f32 %v4572, 0.020408163
  %v4661 = vmul.f32 %v4575, 0.020408163
  %v4662 = vmul.f32 %v4578, 0.020408163
  %v4663 = vmul.f32 %v4581, 0.020408163
  %v4664 = vmul.f32 %v4584, 0.020408163
  %v4665 = vmul.f32 %v4587, 0.020408163
  %v4666 = vmul.f32 %v4590, 0.020408163
  %v4667 = vmul.f32 %v4593, 0.020408163
  %v4668 = vmul.f32 %v4596, 0.020408163
  %v4669 = vmul.f32 %v4599, 0.020408163
  %v4670 = vmul.f32 %v4602, 0.020408163
  %v4671 = vmul.f32 %v4605, 0.020408163
  %v4672 = vmul.f32 %v4608, 0.020408163
  %v4673 = vmul.f32 %v4611, 0.020408163
  %v4674 = vmul.f32 %v4614, 0.020408163
  %v4675 = vmul.f32 %v4617, 0.020408163
  %v4676 = vmul.f32 %v4620, 0.020408163
  %v4677 = vmul.f32 %v4623, 0.020408163
  %v4678 = vmul.f32 %v4626, 0.020408163
  %v4679 = vmul.f32 %v4629, 0.020408163
  %v4680 = vadd.f32 %v4630, 1e-05
  %v4681 = vadd.f32 %v4631, 1e-05
  %v4682 = vadd.f32 %v4632, 1e-05
  %v4683 = vadd.f32 %v4633, 1e-05
  %v4684 = vadd.f32 %v4634, 1e-05
  %v4685 = vadd.f32 %v4635, 1e-05
  %v4686 = vadd.f32 %v4636, 1e-05
  %v4687 = vadd.f32 %v4637, 1e-05
  %v4688 = vadd.f32 %v4638, 1e-05
  %v4689 = vadd.f32 %v4639, 1e-05
  %v4690 = vadd.f32 %v4640, 1e-05
  %v4691 = vadd.f32 %v4641, 1e-05
  %v4692 = vadd.f32 %v4642, 1e-05
  %v4693 = vadd.f32 %v4643, 1e-05
  %v4694 = vadd.f32 %v4644, 1e-05
  %v4695 = vadd.f32 %v4645, 1e-05
  %v4696 = vadd.f32 %v4646, 1e-05
  %v4697 = vadd.f32 %v4647, 1e-05
  %v4698 = vadd.f32 %v4648, 1e-05
  %v4699 = vadd.f32 %v4649, 1e-05
  %v4700 = vadd.f32 %v4650, 1e-05
  %v4701 = vadd.f32 %v4651, 1e-05
  %v4702 = vadd.f32 %v4652, 1e-05
  %v4703 = vadd.f32 %v4653, 1e-05
  %v4704 = vadd.f32 %v4654, 1e-05
  %v4705 = vadd.f32 %v4655, 1e-05
  %v4706 = vadd.f32 %v4656, 1e-05
  %v4707 = vadd.f32 %v4657, 1e-05
  %v4708 = vadd.f32 %v4658, 1e-05
  %v4709 = vadd.f32 %v4659, 1e-05
  %v4710 = vadd.f32 %v4660, 1e-05
  %v4711 = vadd.f32 %v4661, 1e-05
  %v4712 = vadd.f32 %v4662, 1e-05
  %v4713 = vadd.f32 %v4663, 1e-05
  %v4714 = vadd.f32 %v4664, 1e-05
  %v4715 = vadd.f32 %v4665, 1e-05
  %v4716 = vadd.f32 %v4666, 1e-05
  %v4717 = vadd.f32 %v4667, 1e-05
  %v4718 = vadd.f32 %v4668, 1e-05
  %v4719 = vadd.f32 %v4669, 1e-05
  %v4720 = vadd.f32 %v4670, 1e-05
  %v4721 = vadd.f32 %v4671, 1e-05
  %v4722 = vadd.f32 %v4672, 1e-05
  %v4723 = vadd.f32 %v4673, 1e-05
  %v4724 = vadd.f32 %v4674, 1e-05
  %v4725 = vadd.f32 %v4675, 1e-05
  %v4726 = vadd.f32 %v4676, 1e-05
  %v4727 = vadd.f32 %v4677, 1e-05
  %v4728 = vadd.f32 %v4678, 1e-05
  %v4729 = vadd.f32 %v4679, 1e-05
  %v4730 = vrsqrt.pop %v4680
  %v4731 = vrsqrt.pop %v4681
  %v4732 = vrsqrt.pop %v4682
  %v4733 = vrsqrt.pop %v4683
  %v4734 = vrsqrt.pop %v4684
  %v4735 = vrsqrt.pop %v4685
  %v4736 = vrsqrt.pop %v4686
  %v4737 = vrsqrt.pop %v4687
  %v4738 = vrsqrt.pop %v4688
  %v4739 = vrsqrt.pop %v4689
  %v4740 = vrsqrt.pop %v4690
  %v4741 = vrsqrt.pop %v4691
  %v4742 = vrsqrt.pop %v4692
  %v4743 = vrsqrt.pop %v4693
  %v4744 = vrsqrt.pop %v4694
  %v4745 = vrsqrt.pop %v4695
  %v4746 = vrsqrt.pop %v4696
  %v4747 = vrsqrt.pop %v4697
  %v4748 = vrsqrt.pop %v4698
  %v4749 = vrsqrt.pop %v4699
  %v4750 = vrsqrt.pop %v4700
  %v4751 = vrsqrt.pop %v4701
  %v4752 = vrsqrt.pop %v4702
  %v4753 = vrsqrt.pop %v4703
  %v4754 = vrsqrt.pop %v4704
  %v4755 = vrsqrt.pop %v4705
  %v4756 = vrsqrt.pop %v4706
  %v4757 = vrsqrt.pop %v4707
  %v4758 = vrsqrt.pop %v4708
  %v4759 = vrsqrt.pop %v4709
  %v4760 = vrsqrt.pop %v4710
  %v4761 = vrsqrt.pop %v4711
  %v4762 = vrsqrt.pop %v4712
  %v4763 = vrsqrt.pop %v4713
  %v4764 = vrsqrt.pop %v4714
  %v4765 = vrsqrt.pop %v4715
  %v4766 = vrsqrt.pop %v4716
  %v4767 = vrsqrt.pop %v4717
  %v4768 = vrsqrt.pop %v4718
  %v4769 = vrsqrt.pop %v4719
  %v4770 = vrsqrt.pop %v4720
  %v4771 = vrsqrt.pop %v4721
  %v4772 = vrsqrt.pop %v4722
  %v4773 = vrsqrt.pop %v4723
  %v4774 = vrsqrt.pop %v4724
  %v4775 = vrsqrt.pop %v4725
  %v4776 = vrsqrt.pop %v4726
  %v4777 = vrsqrt.pop %v4727
  %v4778 = vrsqrt.pop %v4728
  %v4779 = vrsqrt.pop %v4729
  %v4780 = vmul.f32 %v967, %v4730
  %v4781 = vmul.f32 %v968, %v4731
  %v4782 = vmul.f32 %v969, %v4732
  %v4783 = vmul.f32 %v970, %v4733
  %v4784 = vmul.f32 %v971, %v4734
  %v4785 = vmul.f32 %v972, %v4735
  %v4786 = vmul.f32 %v973, %v4736
  %v4787 = vmul.f32 %v974, %v4737
  %v4788 = vmul.f32 %v975, %v4738
  %v4789 = vmul.f32 %v976, %v4739
  %v4790 = vmul.f32 %v977, %v4740
  %v4791 = vmul.f32 %v978, %v4741
  %v4792 = vmul.f32 %v979, %v4742
  %v4793 = vmul.f32 %v980, %v4743
  %v4794 = vmul.f32 %v981, %v4744
  %v4795 = vmul.f32 %v982, %v4745
  %v4796 = vmul.f32 %v983, %v4746
  %v4797 = vmul.f32 %v984, %v4747
  %v4798 = vmul.f32 %v985, %v4748
  %v4799 = vmul.f32 %v986, %v4749
  %v4800 = vmul.f32 %v987, %v4750
  %v4801 = vmul.f32 %v988, %v4751
  %v4802 = vmul.f32 %v989, %v4752
  %v4803 = vmul.f32 %v990, %v4753
  %v4804 = vmul.f32 %v991, %v4754
  %v4805 = vmul.f32 %v992, %v4755
  %v4806 = vmul.f32 %v993, %v4756
  %v4807 = vmul.f32 %v994, %v4757
  %v4808 = vmul.f32 %v995, %v4758
  %v4809 = vmul.f32 %v996, %v4759
  %v4810 = vmul.f32 %v997, %v4760
  %v4811 = vmul.f32 %v998, %v4761
  %v4812 = vmul.f32 %v999, %v4762
  %v4813 = vmul.f32 %v1000, %v4763
  %v4814 = vmul.f32 %v1001, %v4764
  %v4815 = vmul.f32 %v1002, %v4765
  %v4816 = vmul.f32 %v1003, %v4766
  %v4817 = vmul.f32 %v1004, %v4767
  %v4818 = vmul.f32 %v1005, %v4768
  %v4819 = vmul.f32 %v1006, %v4769
  %v4820 = vmul.f32 %v1007, %v4770
  %v4821 = vmul.f32 %v1008, %v4771
  %v4822 = vmul.f32 %v1009, %v4772
  %v4823 = vmul.f32 %v1010, %v4773
  %v4824 = vmul.f32 %v1011, %v4774
  %v4825 = vmul.f32 %v1012, %v4775
  %v4826 = vmul.f32 %v1013, %v4776
  %v4827 = vmul.f32 %v1014, %v4777
  %v4828 = vmul.f32 %v1015, %v4778
  %v4829 = vmul.f32 %v1016, %v4779
  %4831 = vset.pattern.permute.xlu0 2
  %4832 = vperm.xlu0 %4831, %v4780
  %v4833 = vpop.permute.xlu0 %4832
  %4836 = vset.pattern.permute.xlu0 2
  %4837 = vperm.xlu0 %4836, %v4781
  %v4838 = vpop.permute.xlu0 %4837
  %4841 = vset.pattern.permute.xlu0 2
  %4842 = vperm.xlu0 %4841, %v4782
  %v4843 = vpop.permute.xlu0 %4842
  %4846 = vset.pattern.permute.xlu0 2
  %4847 = vperm.xlu0 %4846, %v4783
  %v4848 = vpop.permute.xlu0 %4847
  %4851 = vset.pattern.permute.xlu0 2
  %4852 = vperm.xlu0 %4851, %v4784
  %v4853 = vpop.permute.xlu0 %4852
  %4856 = vset.pattern.permute.xlu0 2
  %4857 = vperm.xlu0 %4856, %v4785
  %v4858 = vpop.permute.xlu0 %4857
  %4861 = vset.pattern.permute.xlu0 2
  %4862 = vperm.xlu0 %4861, %v4786
  %v4863 = vpop.permute.xlu0 %4862
  %4866 = vset.pattern.permute.xlu0 2
  %4867 = vperm.xlu0 %4866, %v4787
  %v4868 = vpop.permute.xlu0 %4867
  %4871 = vset.pattern.permute.xlu0 2
  %4872 = vperm.xlu0 %4871, %v4788
  %v4873 = vpop.permute.xlu0 %4872
  %4876 = vset.pattern.permute.xlu0 2
  %4877 = vperm.xlu0 %4876, %v4789
  %v4878 = vpop.permute.xlu0 %4877
  %4881 = vset.pattern.permute.xlu0 2
  %4882 = vperm.xlu0 %4881, %v4790
  %v4883 = vpop.permute.xlu0 %4882
  %4886 = vset.pattern.permute.xlu0 2
  %4887 = vperm.xlu0 %4886, %v4791
  %v4888 = vpop.permute.xlu0 %4887
  %4891 = vset.pattern.permute.xlu0 2
  %4892 = vperm.xlu0 %4891, %v4792
  %v4893 = vpop.permute.xlu0 %4892
  %4896 = vset.pattern.permute.xlu0 2
  %4897 = vperm.xlu0 %4896, %v4793
  %v4898 = vpop.permute.xlu0 %4897
  %4901 = vset.pattern.permute.xlu0 2
  %4902 = vperm.xlu0 %4901, %v4794
  %v4903 = vpop.permute.xlu0 %4902
  %4906 = vset.pattern.permute.xlu0 2
  %4907 = vperm.xlu0 %4906, %v4795
  %v4908 = vpop.permute.xlu0 %4907
  %4911 = vset.pattern.permute.xlu0 2
  %4912 = vperm.xlu0 %4911, %v4796
  %v4913 = vpop.permute.xlu0 %4912
  %4916 = vset.pattern.permute.xlu0 2
  %4917 = vperm.xlu0 %4916, %v4797
  %v4918 = vpop.permute.xlu0 %4917
  %4921 = vset.pattern.permute.xlu0 2
  %4922 = vperm.xlu0 %4921, %v4798
  %v4923 = vpop.permute.xlu0 %4922
  %4926 = vset.pattern.permute.xlu0 2
  %4927 = vperm.xlu0 %4926, %v4799
  %v4928 = vpop.permute.xlu0 %4927
  %4931 = vset.pattern.permute.xlu0 2
  %4932 = vperm.xlu0 %4931, %v4800
  %v4933 = vpop.permute.xlu0 %4932
  %4936 = vset.pattern.permute.xlu0 2
  %4937 = vperm.xlu0 %4936, %v4801
  %v4938 = vpop.permute.xlu0 %4937
  %4941 = vset.pattern.permute.xlu0 2
  %4942 = vperm.xlu0 %4941, %v4802
  %v4943 = vpop.permute.xlu0 %4942
  %4946 = vset.pattern.permute.xlu0 2
  %4947 = vperm.xlu0 %4946, %v4803
  %v4948 = vpop.permute.xlu0 %4947
  %4951 = vset.pattern.permute.xlu0 2
  %4952 = vperm.xlu0 %4951, %v4804
  %v4953 = vpop.permute.xlu0 %4952
  %4956 = vset.pattern.permute.xlu0 2
  %4957 = vperm.xlu0 %4956, %v4805
  %v4958 = vpop.permute.xlu0 %4957
  %4961 = vset.pattern.permute.xlu0 2
  %4962 = vperm.xlu0 %4961, %v4806
  %v4963 = vpop.permute.xlu0 %4962
  %4966 = vset.pattern.permute.xlu0 2
  %4967 = vperm.xlu0 %4966, %v4807
  %v4968 = vpop.permute.xlu0 %4967
  %4971 = vset.pattern.permute.xlu0 2
  %4972 = vperm.xlu0 %4971, %v4808
  %v4973 = vpop.permute.xlu0 %4972
  %4976 = vset.pattern.permute.xlu0 2
  %4977 = vperm.xlu0 %4976, %v4809
  %v4978 = vpop.permute.xlu0 %4977
  %4981 = vset.pattern.permute.xlu0 2
  %4982 = vperm.xlu0 %4981, %v4810
  %v4983 = vpop.permute.xlu0 %4982
  %4986 = vset.pattern.permute.xlu0 2
  %4987 = vperm.xlu0 %4986, %v4811
  %v4988 = vpop.permute.xlu0 %4987
  %4991 = vset.pattern.permute.xlu0 2
  %4992 = vperm.xlu0 %4991, %v4812
  %v4993 = vpop.permute.xlu0 %4992
  %4996 = vset.pattern.permute.xlu0 2
  %4997 = vperm.xlu0 %4996, %v4813
  %v4998 = vpop.permute.xlu0 %4997
  %5001 = vset.pattern.permute.xlu0 2
  %5002 = vperm.xlu0 %5001, %v4814
  %v5003 = vpop.permute.xlu0 %5002
  %5006 = vset.pattern.permute.xlu0 2
  %5007 = vperm.xlu0 %5006, %v4815
  %v5008 = vpop.permute.xlu0 %5007
  %5011 = vset.pattern.permute.xlu0 2
  %5012 = vperm.xlu0 %5011, %v4816
  %v5013 = vpop.permute.xlu0 %5012
  %5016 = vset.pattern.permute.xlu0 2
  %5017 = vperm.xlu0 %5016, %v4817
  %v5018 = vpop.permute.xlu0 %5017
  %5021 = vset.pattern.permute.xlu0 2
  %5022 = vperm.xlu0 %5021, %v4818
  %v5023 = vpop.permute.xlu0 %5022
  %5026 = vset.pattern.permute.xlu0 2
  %5027 = vperm.xlu0 %5026, %v4819
  %v5028 = vpop.permute.xlu0 %5027
  %5031 = vset.pattern.permute.xlu0 2
  %5032 = vperm.xlu0 %5031, %v4820
  %v5033 = vpop.permute.xlu0 %5032
  %5036 = vset.pattern.permute.xlu0 2
  %5037 = vperm.xlu0 %5036, %v4821
  %v5038 = vpop.permute.xlu0 %5037
  %5041 = vset.pattern.permute.xlu0 2
  %5042 = vperm.xlu0 %5041, %v4822
  %v5043 = vpop.permute.xlu0 %5042
  %5046 = vset.pattern.permute.xlu0 2
  %5047 = vperm.xlu0 %5046, %v4823
  %v5048 = vpop.permute.xlu0 %5047
  %5051 = vset.pattern.permute.xlu0 2
  %5052 = vperm.xlu0 %5051, %v4824
  %v5053 = vpop.permute.xlu0 %5052
  %5056 = vset.pattern.permute.xlu0 2
  %5057 = vperm.xlu0 %5056, %v4825
  %v5058 = vpop.permute.xlu0 %5057
  %5061 = vset.pattern.permute.xlu0 2
  %5062 = vperm.xlu0 %5061, %v4826
  %v5063 = vpop.permute.xlu0 %5062
  %5066 = vset.pattern.permute.xlu0 2
  %5067 = vperm.xlu0 %5066, %v4827
  %v5068 = vpop.permute.xlu0 %5067
  %5071 = vset.pattern.permute.xlu0 2
  %5072 = vperm.xlu0 %5071, %v4828
  %v5073 = vpop.permute.xlu0 %5072
  %5076 = vset.pattern.permute.xlu0 2
  %5077 = vperm.xlu0 %5076, %v4829
  %v5078 = vpop.permute.xlu0 %5077
  %v5080 = vmul.f32 %v4380, %v4833
  %v5081 = vmul.f32 %v4381, %v4838
  %v5082 = vmul.f32 %v4382, %v4843
  %v5083 = vmul.f32 %v4383, %v4848
  %v5084 = vmul.f32 %v4384, %v4853
  %v5085 = vmul.f32 %v4385, %v4858
  %v5086 = vmul.f32 %v4386, %v4863
  %v5087 = vmul.f32 %v4387, %v4868
  %v5088 = vmul.f32 %v4388, %v4873
  %v5089 = vmul.f32 %v4389, %v4878
  %v5090 = vmul.f32 %v4390, %v4883
  %v5091 = vmul.f32 %v4391, %v4888
  %v5092 = vmul.f32 %v4392, %v4893
  %v5093 = vmul.f32 %v4393, %v4898
  %v5094 = vmul.f32 %v4394, %v4903
  %v5095 = vmul.f32 %v4395, %v4908
  %v5096 = vmul.f32 %v4396, %v4913
  %v5097 = vmul.f32 %v4397, %v4918
  %v5098 = vmul.f32 %v4398, %v4923
  %v5099 = vmul.f32 %v4399, %v4928
  %v5100 = vmul.f32 %v4400, %v4933
  %v5101 = vmul.f32 %v4401, %v4938
  %v5102 = vmul.f32 %v4402, %v4943
  %v5103 = vmul.f32 %v4403, %v4948
  %v5104 = vmul.f32 %v4404, %v4953
  %v5105 = vmul.f32 %v4405, %v4958
  %v5106 = vmul.f32 %v4406, %v4963
  %v5107 = vmul.f32 %v4407, %v4968
  %v5108 = vmul.f32 %v4408, %v4973
  %v5109 = vmul.f32 %v4409, %v4978
  %v5110 = vmul.f32 %v4410, %v4983
  %v5111 = vmul.f32 %v4411, %v4988
  %v5112 = vmul.f32 %v4412, %v4993
  %v5113 = vmul.f32 %v4413, %v4998
  %v5114 = vmul.f32 %v4414, %v5003
  %v5115 = vmul.f32 %v4415, %v5008
  %v5116 = vmul.f32 %v4416, %v5013
  %v5117 = vmul.f32 %v4417, %v5018
  %v5118 = vmul.f32 %v4418, %v5023
  %v5119 = vmul.f32 %v4419, %v5028
  %v5120 = vmul.f32 %v4420, %v5033
  %v5121 = vmul.f32 %v4421, %v5038
  %v5122 = vmul.f32 %v4422, %v5043
  %v5123 = vmul.f32 %v4423, %v5048
  %v5124 = vmul.f32 %v4424, %v5053
  %v5125 = vmul.f32 %v4425, %v5058
  %v5126 = vmul.f32 %v4426, %v5063
  %v5127 = vmul.f32 %v4427, %v5068
  %v5128 = vmul.f32 %v4428, %v5073
  %v5129 = vmul.f32 %v4429, %v5078
  %5130 = vset.pattern.permute.xlu0 3
  %5131 = vperm.xlu0 %5130, %v967
  %v5132 = vpop.permute.xlu0 %5131
  %5134 = vset.pattern.permute.xlu0 3
  %5135 = vperm.xlu0 %5134, %v968
  %v5136 = vpop.permute.xlu0 %5135
  %5138 = vset.pattern.permute.xlu0 3
  %5139 = vperm.xlu0 %5138, %v969
  %v5140 = vpop.permute.xlu0 %5139
  %5142 = vset.pattern.permute.xlu0 3
  %5143 = vperm.xlu0 %5142, %v970
  %v5144 = vpop.permute.xlu0 %5143
  %5146 = vset.pattern.permute.xlu0 3
  %5147 = vperm.xlu0 %5146, %v971
  %v5148 = vpop.permute.xlu0 %5147
  %5150 = vset.pattern.permute.xlu0 3
  %5151 = vperm.xlu0 %5150, %v972
  %v5152 = vpop.permute.xlu0 %5151
  %5154 = vset.pattern.permute.xlu0 3
  %5155 = vperm.xlu0 %5154, %v973
  %v5156 = vpop.permute.xlu0 %5155
  %5158 = vset.pattern.permute.xlu0 3
  %5159 = vperm.xlu0 %5158, %v974
  %v5160 = vpop.permute.xlu0 %5159
  %5162 = vset.pattern.permute.xlu0 3
  %5163 = vperm.xlu0 %5162, %v975
  %v5164 = vpop.permute.xlu0 %5163
  %5166 = vset.pattern.permute.xlu0 3
  %5167 = vperm.xlu0 %5166, %v976
  %v5168 = vpop.permute.xlu0 %5167
  %5170 = vset.pattern.permute.xlu0 3
  %5171 = vperm.xlu0 %5170, %v977
  %v5172 = vpop.permute.xlu0 %5171
  %5174 = vset.pattern.permute.xlu0 3
  %5175 = vperm.xlu0 %5174, %v978
  %v5176 = vpop.permute.xlu0 %5175
  %5178 = vset.pattern.permute.xlu0 3
  %5179 = vperm.xlu0 %5178, %v979
  %v5180 = vpop.permute.xlu0 %5179
  %5182 = vset.pattern.permute.xlu0 3
  %5183 = vperm.xlu0 %5182, %v980
  %v5184 = vpop.permute.xlu0 %5183
  %5186 = vset.pattern.permute.xlu0 3
  %5187 = vperm.xlu0 %5186, %v981
  %v5188 = vpop.permute.xlu0 %5187
  %5190 = vset.pattern.permute.xlu0 3
  %5191 = vperm.xlu0 %5190, %v982
  %v5192 = vpop.permute.xlu0 %5191
  %5194 = vset.pattern.permute.xlu0 3
  %5195 = vperm.xlu0 %5194, %v983
  %v5196 = vpop.permute.xlu0 %5195
  %5198 = vset.pattern.permute.xlu0 3
  %5199 = vperm.xlu0 %5198, %v984
  %v5200 = vpop.permute.xlu0 %5199
  %5202 = vset.pattern.permute.xlu0 3
  %5203 = vperm.xlu0 %5202, %v985
  %v5204 = vpop.permute.xlu0 %5203
  %5206 = vset.pattern.permute.xlu0 3
  %5207 = vperm.xlu0 %5206, %v986
  %v5208 = vpop.permute.xlu0 %5207
  %5210 = vset.pattern.permute.xlu0 3
  %5211 = vperm.xlu0 %5210, %v987
  %v5212 = vpop.permute.xlu0 %5211
  %5214 = vset.pattern.permute.xlu0 3
  %5215 = vperm.xlu0 %5214, %v988
  %v5216 = vpop.permute.xlu0 %5215
  %5218 = vset.pattern.permute.xlu0 3
  %5219 = vperm.xlu0 %5218, %v989
  %v5220 = vpop.permute.xlu0 %5219
  %5222 = vset.pattern.permute.xlu0 3
  %5223 = vperm.xlu0 %5222, %v990
  %v5224 = vpop.permute.xlu0 %5223
  %5226 = vset.pattern.permute.xlu0 3
  %5227 = vperm.xlu0 %5226, %v991
  %v5228 = vpop.permute.xlu0 %5227
  %5230 = vset.pattern.permute.xlu0 3
  %5231 = vperm.xlu0 %5230, %v992
  %v5232 = vpop.permute.xlu0 %5231
  %5234 = vset.pattern.permute.xlu0 3
  %5235 = vperm.xlu0 %5234, %v993
  %v5236 = vpop.permute.xlu0 %5235
  %5238 = vset.pattern.permute.xlu0 3
  %5239 = vperm.xlu0 %5238, %v994
  %v5240 = vpop.permute.xlu0 %5239
  %5242 = vset.pattern.permute.xlu0 3
  %5243 = vperm.xlu0 %5242, %v995
  %v5244 = vpop.permute.xlu0 %5243
  %5246 = vset.pattern.permute.xlu0 3
  %5247 = vperm.xlu0 %5246, %v996
  %v5248 = vpop.permute.xlu0 %5247
  %5250 = vset.pattern.permute.xlu0 3
  %5251 = vperm.xlu0 %5250, %v997
  %v5252 = vpop.permute.xlu0 %5251
  %5254 = vset.pattern.permute.xlu0 3
  %5255 = vperm.xlu0 %5254, %v998
  %v5256 = vpop.permute.xlu0 %5255
  %5258 = vset.pattern.permute.xlu0 3
  %5259 = vperm.xlu0 %5258, %v999
  %v5260 = vpop.permute.xlu0 %5259
  %5262 = vset.pattern.permute.xlu0 3
  %5263 = vperm.xlu0 %5262, %v1000
  %v5264 = vpop.permute.xlu0 %5263
  %5266 = vset.pattern.permute.xlu0 3
  %5267 = vperm.xlu0 %5266, %v1001
  %v5268 = vpop.permute.xlu0 %5267
  %5270 = vset.pattern.permute.xlu0 3
  %5271 = vperm.xlu0 %5270, %v1002
  %v5272 = vpop.permute.xlu0 %5271
  %5274 = vset.pattern.permute.xlu0 3
  %5275 = vperm.xlu0 %5274, %v1003
  %v5276 = vpop.permute.xlu0 %5275
  %5278 = vset.pattern.permute.xlu0 3
  %5279 = vperm.xlu0 %5278, %v1004
  %v5280 = vpop.permute.xlu0 %5279
  %5282 = vset.pattern.permute.xlu0 3
  %5283 = vperm.xlu0 %5282, %v1005
  %v5284 = vpop.permute.xlu0 %5283
  %5286 = vset.pattern.permute.xlu0 3
  %5287 = vperm.xlu0 %5286, %v1006
  %v5288 = vpop.permute.xlu0 %5287
  %5290 = vset.pattern.permute.xlu0 3
  %5291 = vperm.xlu0 %5290, %v1007
  %v5292 = vpop.permute.xlu0 %5291
  %5294 = vset.pattern.permute.xlu0 3
  %5295 = vperm.xlu0 %5294, %v1008
  %v5296 = vpop.permute.xlu0 %5295
  %5298 = vset.pattern.permute.xlu0 3
  %5299 = vperm.xlu0 %5298, %v1009
  %v5300 = vpop.permute.xlu0 %5299
  %5302 = vset.pattern.permute.xlu0 3
  %5303 = vperm.xlu0 %5302, %v1010
  %v5304 = vpop.permute.xlu0 %5303
  %5306 = vset.pattern.permute.xlu0 3
  %5307 = vperm.xlu0 %5306, %v1011
  %v5308 = vpop.permute.xlu0 %5307
  %5310 = vset.pattern.permute.xlu0 3
  %5311 = vperm.xlu0 %5310, %v1012
  %v5312 = vpop.permute.xlu0 %5311
  %5314 = vset.pattern.permute.xlu0 3
  %5315 = vperm.xlu0 %5314, %v1013
  %v5316 = vpop.permute.xlu0 %5315
  %5318 = vset.pattern.permute.xlu0 3
  %5319 = vperm.xlu0 %5318, %v1014
  %v5320 = vpop.permute.xlu0 %5319
  %5322 = vset.pattern.permute.xlu0 3
  %5323 = vperm.xlu0 %5322, %v1015
  %v5324 = vpop.permute.xlu0 %5323
  %5326 = vset.pattern.permute.xlu0 3
  %5327 = vperm.xlu0 %5326, %v1016
  %v5328 = vpop.permute.xlu0 %5327
  %v5330 = vadd.f32 %v5080, %v5132
  %v5331 = vadd.f32 %v5081, %v5136
  %v5332 = vadd.f32 %v5082, %v5140
  %v5333 = vadd.f32 %v5083, %v5144
  %v5334 = vadd.f32 %v5084, %v5148
  %v5335 = vadd.f32 %v5085, %v5152
  %v5336 = vadd.f32 %v5086, %v5156
  %v5337 = vadd.f32 %v5087, %v5160
  %v5338 = vadd.f32 %v5088, %v5164
  %v5339 = vadd.f32 %v5089, %v5168
  %v5340 = vadd.f32 %v5090, %v5172
  %v5341 = vadd.f32 %v5091, %v5176
  %v5342 = vadd.f32 %v5092, %v5180
  %v5343 = vadd.f32 %v5093, %v5184
  %v5344 = vadd.f32 %v5094, %v5188
  %v5345 = vadd.f32 %v5095, %v5192
  %v5346 = vadd.f32 %v5096, %v5196
  %v5347 = vadd.f32 %v5097, %v5200
  %v5348 = vadd.f32 %v5098, %v5204
  %v5349 = vadd.f32 %v5099, %v5208
  %v5350 = vadd.f32 %v5100, %v5212
  %v5351 = vadd.f32 %v5101, %v5216
  %v5352 = vadd.f32 %v5102, %v5220
  %v5353 = vadd.f32 %v5103, %v5224
  %v5354 = vadd.f32 %v5104, %v5228
  %v5355 = vadd.f32 %v5105, %v5232
  %v5356 = vadd.f32 %v5106, %v5236
  %v5357 = vadd.f32 %v5107, %v5240
  %v5358 = vadd.f32 %v5108, %v5244
  %v5359 = vadd.f32 %v5109, %v5248
  %v5360 = vadd.f32 %v5110, %v5252
  %v5361 = vadd.f32 %v5111, %v5256
  %v5362 = vadd.f32 %v5112, %v5260
  %v5363 = vadd.f32 %v5113, %v5264
  %v5364 = vadd.f32 %v5114, %v5268
  %v5365 = vadd.f32 %v5115, %v5272
  %v5366 = vadd.f32 %v5116, %v5276
  %v5367 = vadd.f32 %v5117, %v5280
  %v5368 = vadd.f32 %v5118, %v5284
  %v5369 = vadd.f32 %v5119, %v5288
  %v5370 = vadd.f32 %v5120, %v5292
  %v5371 = vadd.f32 %v5121, %v5296
  %v5372 = vadd.f32 %v5122, %v5300
  %v5373 = vadd.f32 %v5123, %v5304
  %v5374 = vadd.f32 %v5124, %v5308
  %v5375 = vadd.f32 %v5125, %v5312
  %v5376 = vadd.f32 %v5126, %v5316
  %v5377 = vadd.f32 %v5127, %v5320
  %v5378 = vadd.f32 %v5128, %v5324
  %v5379 = vadd.f32 %v5129, %v5328
  %5380 = vst.msk [vmem:[%s5] sm:$0xff] %vm2159, %v5330
  %5381 = vst.msk [vmem:[%s5 + $0x8] sm:$0xff] %vm2159, %v5331
  %5382 = vst.msk [vmem:[%s5 + $0x10] sm:$0xff] %vm2159, %v5332
  %5383 = vst.msk [vmem:[%s5 + $0x18] sm:$0xff] %vm2159, %v5333
  %5384 = vst.msk [vmem:[%s5 + $0x20] sm:$0xff] %vm2159, %v5334
  %5385 = vst.msk [vmem:[%s5 + $0x28] sm:$0xff] %vm2159, %v5335
  %5386 = vst.msk [vmem:[%s5 + $0x30] sm:$0xff] %vm2159, %v5336
  %5387 = vst.msk [vmem:[%s5 + $0x38] sm:$0xff] %vm2159, %v5337
  %5388 = vst.msk [vmem:[%s5 + $0x40] sm:$0xff] %vm2159, %v5338
  %5389 = vst.msk [vmem:[%s5 + $0x48] sm:$0xff] %vm2159, %v5339
  %5390 = vst.msk [vmem:[%s5 + $0x50] sm:$0xff] %vm2159, %v5340
  %5391 = vst.msk [vmem:[%s5 + $0x58] sm:$0xff] %vm2159, %v5341
  %5392 = vst.msk [vmem:[%s5 + $0x60] sm:$0xff] %vm2159, %v5342
  %5393 = vst.msk [vmem:[%s5 + $0x68] sm:$0xff] %vm2159, %v5343
  %5394 = vst.msk [vmem:[%s5 + $0x70] sm:$0xff] %vm2159, %v5344
  %5395 = vst.msk [vmem:[%s5 + $0x78] sm:$0xff] %vm2159, %v5345
  %5396 = vst.msk [vmem:[%s5 + $0x80] sm:$0xff] %vm2159, %v5346
  %5397 = vst.msk [vmem:[%s5 + $0x88] sm:$0xff] %vm2159, %v5347
  %5398 = vst.msk [vmem:[%s5 + $0x90] sm:$0xff] %vm2159, %v5348
  %5399 = vst.msk [vmem:[%s5 + $0x98] sm:$0xff] %vm2159, %v5349
  %5400 = vst.msk [vmem:[%s5 + $0xa0] sm:$0xff] %vm2159, %v5350
  %5401 = vst.msk [vmem:[%s5 + $0xa8] sm:$0xff] %vm2159, %v5351
  %5402 = vst.msk [vmem:[%s5 + $0xb0] sm:$0xff] %vm2159, %v5352
  %5403 = vst.msk [vmem:[%s5 + $0xb8] sm:$0xff] %vm2159, %v5353
  %5404 = vst.msk [vmem:[%s5 + $0xc0] sm:$0xff] %vm2159, %v5354
  %5405 = vst.msk [vmem:[%s5 + $0xc8] sm:$0xff] %vm2159, %v5355
  %5406 = vst.msk [vmem:[%s5 + $0xd0] sm:$0xff] %vm2159, %v5356
  %5407 = vst.msk [vmem:[%s5 + $0xd8] sm:$0xff] %vm2159, %v5357
  %5408 = vst.msk [vmem:[%s5 + $0xe0] sm:$0xff] %vm2159, %v5358
  %5409 = vst.msk [vmem:[%s5 + $0xe8] sm:$0xff] %vm2159, %v5359
  %5410 = vst.msk [vmem:[%s5 + $0xf0] sm:$0xff] %vm2159, %v5360
  %5411 = vst.msk [vmem:[%s5 + $0xf8] sm:$0xff] %vm2159, %v5361
  %5412 = vst.msk [vmem:[%s5 + $0x100] sm:$0xff] %vm2159, %v5362
  %5413 = vst.msk [vmem:[%s5 + $0x108] sm:$0xff] %vm2159, %v5363
  %5414 = vst.msk [vmem:[%s5 + $0x110] sm:$0xff] %vm2159, %v5364
  %5415 = vst.msk [vmem:[%s5 + $0x118] sm:$0xff] %vm2159, %v5365
  %5416 = vst.msk [vmem:[%s5 + $0x120] sm:$0xff] %vm2159, %v5366
  %5417 = vst.msk [vmem:[%s5 + $0x128] sm:$0xff] %vm2159, %v5367
  %5418 = vst.msk [vmem:[%s5 + $0x130] sm:$0xff] %vm2159, %v5368
  %5419 = vst.msk [vmem:[%s5 + $0x138] sm:$0xff] %vm2159, %v5369
  %5420 = vst.msk [vmem:[%s5 + $0x140] sm:$0xff] %vm2159, %v5370
  %5421 = vst.msk [vmem:[%s5 + $0x148] sm:$0xff] %vm2159, %v5371
  %5422 = vst.msk [vmem:[%s5 + $0x150] sm:$0xff] %vm2159, %v5372
  %5423 = vst.msk [vmem:[%s5 + $0x158] sm:$0xff] %vm2159, %v5373
  %5424 = vst.msk [vmem:[%s5 + $0x160] sm:$0xff] %vm2159, %v5374
  %5425 = vst.msk [vmem:[%s5 + $0x168] sm:$0xff] %vm2159, %v5375
  %5426 = vst.msk [vmem:[%s5 + $0x170] sm:$0xff] %vm2159, %v5376
  %5427 = vst.msk [vmem:[%s5 + $0x178] sm:$0xff] %vm2159, %v5377
  %5428 = vst.msk [vmem:[%s5 + $0x180] sm:$0xff] %vm2159, %v5378
  %5429 = vst.msk [vmem:[%s5 + $0x188] sm:$0xff] %vm2159, %v5379
  // Predicated region
  $region55: #{model_forward.1} parent=0 // pred_check
    _
  $region56: #{model_forward.1} parent=0 // pred_check_branch
    %5431 = sbr.rel (0) target = $region58
  $region57: #{model_forward.1} parent=0 // pred_region
    _
  $region58: #{model_forward.1} parent=0 // pred_fallthru
    _
  // Predicated region
  $region59: #{model_forward.1} parent=0 // pred_check
    _
  $region60: #{model_forward.1} parent=0 // pred_check_branch
    %5433 = sbr.rel (0) target = $region62
  $region61: #{model_forward.1} parent=0 // pred_region
    _
  $region62: #{model_forward.1} parent=0 // pred_fallthru
    _
  %5434 = vsyncmov [#allocation3]
  %s5435 = vpop.sfrf %5434
  %p5436 = scmp.eq.s32.totalorder %s5435, 0
  %p5437 = pneg %p5436
  %5439 = shalt.err (%p5437)

</llo_original>
